<compile_context>
chip_gen: v6e
topology: v6e:2x2x1
jax: 0.10.0
libtpu: 0.0.40
codegen_flags: <defaults>
</compile_context>

<pallas_src>
import functools

import jax
import jax.numpy as jnp
from jax.experimental import pallas as pl
from jax.experimental.pallas import tpu as pltpu


def _leaky(v):
    # nn.LeakyReLU(0.1)
    return jnp.where(v > 0, v, 0.1 * v)


def dagmm_kernel(
    x_ref,                                  # (TILE_N, input_dim)  row-major block
    ew1, eb1, ew2, eb2, ew3, eb3,           # encoder linears  (out, in) / (out, 1)
    dw1, db1, dw2, db2, dw3, db3,           # decoder linears
    gw1, gb1, gw2, gb2,                     # estimation linears
    dect_ref, zgt_ref,
):
    f32 = jnp.float32
    x_rm = x_ref[...]                                           # (T, in)
    input_dim = x_rm.shape[1]

    # Lane-dense transpose x_rm -> (in, T) via an identity NT matmul on the MXU
    # (XLU-free, always supported; HIGHEST precision so no bf16 truncation of x).
    rows = jax.lax.broadcasted_iota(jnp.int32, (input_dim, input_dim), 0)
    cols = jax.lax.broadcasted_iota(jnp.int32, (input_dim, input_dim), 1)
    eye = (rows == cols).astype(f32)
    x = jax.lax.dot_general(
        eye, x_rm, (((1,), (1,)), ((), ())),
        preferred_element_type=f32,
        precision=jax.lax.Precision.HIGHEST)                    # (in, T)

    # ---------------- encoder ----------------
    h = _leaky(jnp.dot(ew1[...], x, preferred_element_type=f32) + eb1[...])
    # Dropout(0.5) -> identity at inference
    h = _leaky(jnp.dot(ew2[...], h, preferred_element_type=f32) + eb2[...])
    enc = jnp.dot(ew3[...], h, preferred_element_type=f32) + eb3[...]   # (z, T)

    # ---------------- decoder ----------------
    d = _leaky(enc)
    d = _leaky(jnp.dot(dw1[...], d, preferred_element_type=f32) + db1[...])
    d = _leaky(jnp.dot(dw2[...], d, preferred_element_type=f32) + db2[...])
    logits_dec = jnp.dot(dw3[...], d, preferred_element_type=f32) + db3[...]
    dec = 1.0 / (1.0 + jnp.exp(-logits_dec))                    # exact sigmoid
    dect_ref[...] = dec                                         # (in, T)

    # ---- reconstruction features (reductions over features = sublane axis) ----
    eps = jnp.float32(1e-8)
    x_sq = jnp.sum(x * x, axis=0, keepdims=True)                # (1, T)
    d_sq = jnp.sum(dec * dec, axis=0, keepdims=True)
    dot_xd = jnp.sum(x * dec, axis=0, keepdims=True)
    x_norm = jnp.maximum(jnp.sqrt(x_sq), eps)                   # F.cosine_similarity eps
    d_norm = jnp.maximum(jnp.sqrt(d_sq), eps)
    rec_cosine = dot_xd / (x_norm * d_norm)
    diff = x - dec
    rec_euclid = jnp.sqrt(jnp.sum(diff * diff, axis=0, keepdims=True)) / x_norm

    # z = concat([enc, eu, cos]) built in registers
    z = jnp.concatenate([enc, rec_euclid, rec_cosine], axis=0)  # (latent, T)

    # ---------------- estimation net ----------------
    e = jnp.tanh(jnp.dot(gw1[...], z, preferred_element_type=f32) + gb1[...])
    # Dropout(0.5) -> identity at inference
    logits = jnp.dot(gw2[...], e, preferred_element_type=f32) + gb2[...]  # (n_gmm, T)
    m = jnp.max(logits, axis=0, keepdims=True)
    ex = jnp.exp(logits - m)
    gamma = ex / jnp.sum(ex, axis=0, keepdims=True)             # exact softmax

    # Fused (latent + n_gmm, T) store: one full sublane group, single pipeline.
    zgt_ref[...] = jnp.concatenate([z, gamma], axis=0)


_ARG_ORDER = (
    "ew1", "eb1", "ew2", "eb2", "ew3", "eb3",
    "dw1", "db1", "dw2", "db2", "dw3", "db3",
    "gw1", "gb1", "gw2", "gb2",
)


@functools.partial(jax.jit, static_argnames=("tile_n",))
def dagmm_forward(x, params, *, tile_n=4096):
    """Returns (enc, dec, z, gamma) in row-major (N, feature) layout."""
    N, input_dim = x.shape
    hidden_dim = params["ew1"].shape[0]
    z_dim = params["ew3"].shape[0]
    latent_dim = z_dim + 2
    n_gmm = params["gw2"].shape[0]
    zg_dim = latent_dim + n_gmm

    # Batch tile: always a multiple of 128 lanes, large enough to amortize the
    # ~0.35us/step overhead, and at least 2 grid steps when the batch allows it
    # so the "parallel" batch axis actually uses both TensorCores on v7x.
    tile_n = max(128, (int(tile_n) // 128) * 128)
    cols = pl.cdiv(N, 128) * 128
    if cols >= 256:
        tile_n = min(tile_n, pl.cdiv(cols // 2, 128) * 128)
    tile_n = min(tile_n, cols)
    n_pad = pl.cdiv(N, tile_n) * tile_n
    grid = (n_pad // tile_n,)

    x_in = x.astype(jnp.float32)
    if n_pad != N:
        x_in = jnp.pad(x_in, ((0, n_pad - N), (0, 0)))

    weight_args = [params[k] for k in _ARG_ORDER]

    def resident(a):
        # Whole-array block, same block index every step -> stays VMEM-resident.
        return pl.BlockSpec(a.shape, lambda i: (0, 0))

    in_specs = [
        # x streamed row-major (contiguous rows; last dim == full array dim).
        pl.BlockSpec((tile_n, input_dim), lambda i: (i, 0)),
    ] + [resident(a) for a in weight_args]

    out_specs = (
        pl.BlockSpec((input_dim, tile_n), lambda i: (0, i)),    # dec^T
        pl.BlockSpec((zg_dim, tile_n), lambda i: (0, i)),       # [z; gamma]^T
    )
    out_shapes = (
        jax.ShapeDtypeStruct((input_dim, n_pad), jnp.float32),
        jax.ShapeDtypeStruct((zg_dim, n_pad), jnp.float32),
    )

    flops = 2 * n_pad * (
        input_dim * input_dim                      # in-kernel MXU transpose
        + input_dim * hidden_dim + hidden_dim * hidden_dim + hidden_dim * z_dim
        + z_dim * hidden_dim + hidden_dim * hidden_dim + hidden_dim * input_dim
        + latent_dim * 10 + 10 * n_gmm)
    transcendentals = n_pad * (input_dim + 10 + n_gmm + 4)
    param_bytes = sum(int(a.size) for a in weight_args) * 4
    bytes_accessed = 4 * n_pad * (2 * input_dim + zg_dim) + param_bytes

    dect, zgt = pl.pallas_call(
        dagmm_kernel,
        grid=grid,
        in_specs=in_specs,
        out_specs=out_specs,
        out_shape=out_shapes,
        compiler_params=pltpu.CompilerParams(
            # Batch axis is embarrassingly parallel: shards across the 2 TCs on
            # v7x (grid has >= 2 steps whenever N >= 256), no-op on v5e/v6e.
            dimension_semantics=("parallel",),
            vmem_limit_bytes=32 * 1024 * 1024,
        ),
        cost_estimate=pl.CostEstimate(
            flops=flops,
            transcendentals=transcendentals,
            bytes_accessed=bytes_accessed,
        ),
    )(x_in, *weight_args)

    # Back to row-major, drop batch padding; enc is rows [0:z_dim] of z.
    dec = dect[:, :N].T
    zg = zgt[:, :N].T
    z = zg[:, :latent_dim]
    gamma = zg[:, latent_dim:]
    enc = z[:, :z_dim]
    return enc, dec, z, gamma


def dagmm_reference(x, params):
    """Pure-JAX reference (same math) for validation."""
    def lin(h, w, b):
        return h @ w.T + b[:, 0]

    leaky = lambda v: jnp.where(v > 0, v, 0.1 * v)
    h = leaky(lin(x, params["ew1"], params["eb1"]))
    h = leaky(lin(h, params["ew2"], params["eb2"]))
    enc = lin(h, params["ew3"], params["eb3"])
    d = leaky(enc)
    d = leaky(lin(d, params["dw1"], params["db1"]))
    d = leaky(lin(d, params["dw2"], params["db2"]))
    dec = jax.nn.sigmoid(lin(d, params["dw3"], params["db3"]))
    eps = 1e-8
    x_n = jnp.maximum(jnp.linalg.norm(x, axis=1), eps)
    d_n = jnp.maximum(jnp.linalg.norm(dec, axis=1), eps)
    cos = jnp.sum(x * dec, axis=1) / (x_n * d_n)
    euc = jnp.linalg.norm(x - dec, axis=1) / x_n
    z = jnp.concatenate([enc, euc[:, None], cos[:, None]], axis=1)
    e = jnp.tanh(lin(z, params["gw1"], params["gb1"]))
    logits = lin(e, params["gw2"], params["gb2"])
    gamma = jax.nn.softmax(logits, axis=1)
    return enc, dec, z, gamma


def init_params(key, input_dim, hidden_dim, z_dim, n_gmm):
    """Deterministic synthetic parameters in PyTorch (out, in) layout."""
    latent_dim = z_dim + 2
    shapes = {
        # encoder: in->hid, hid->hid, hid->z
        "ew1": (hidden_dim, input_dim), "eb1": (hidden_dim, 1),
        "ew2": (hidden_dim, hidden_dim), "eb2": (hidden_dim, 1),
        "ew3": (z_dim, hidden_dim), "eb3": (z_dim, 1),
        # decoder: z->hid, hid->hid, hid->in
        "dw1": (hidden_dim, z_dim), "db1": (hidden_dim, 1),
        "dw2": (hidden_dim, hidden_dim), "db2": (hidden_dim, 1),
        "dw3": (input_dim, hidden_dim), "db3": (input_dim, 1),
        # estimation: latent->10, 10->n_gmm
        "gw1": (10, latent_dim), "gb1": (10, 1),
        "gw2": (n_gmm, 10), "gb2": (n_gmm, 1),
    }
    params = {}
    keys = jax.random.split(key, len(shapes))
    for k, (name, shp) in zip(keys, sorted(shapes.items())):
        params[name] = (0.1 * jax.random.normal(k, shp)).astype(jnp.float32)
    return params


if __name__ == "__main__":
    N, input_dim, hidden_dim, z_dim, n_gmm = 512, 16, 32, 4, 2

    key = jax.random.PRNGKey(0)
    kx, kp = jax.random.split(key)
    x = jax.random.normal(kx, (N, input_dim), dtype=jnp.float32)
    params = init_params(kp, input_dim, hidden_dim, z_dim, n_gmm)

    enc, dec, z, gamma = jax.block_until_ready(
        dagmm_forward(x, params))          # tile_n clamps to 256 -> grid = (2,)

    assert enc.shape == (N, z_dim)
    assert dec.shape == (N, input_dim)
    assert z.shape == (N, z_dim + 2)
    assert gamma.shape == (N, n_gmm)
    assert bool(jnp.all(jnp.isfinite(gamma)))
    # gamma rows must sum to ~1 (exact softmax divide)
    assert jnp.allclose(jnp.sum(gamma, axis=1), 1.0, atol=1e-3)

    # Cross-check against pure-JAX reference.
    r_enc, r_dec, r_z, r_gamma = dagmm_reference(x, params)
    assert jnp.allclose(enc, r_enc, atol=2e-3, rtol=2e-3)
    assert jnp.allclose(dec, r_dec, atol=2e-3, rtol=2e-3)
    assert jnp.allclose(z, r_z, atol=2e-3, rtol=2e-3)
    assert jnp.allclose(gamma, r_gamma, atol=2e-3, rtol=2e-3)

    print("KERNEL_OK")
</pallas_src>

<mosaic_0001>
module attributes {stable_mosaic.version = 11 : i64} {
  func.func @dagmm_kernel(%arg0: i32, %arg1: memref<256x16xf32, #tpu.memory_space<vmem>>, %arg2: memref<32x16xf32, #tpu.memory_space<vmem>>, %arg3: memref<32x1xf32, #tpu.memory_space<vmem>>, %arg4: memref<32x32xf32, #tpu.memory_space<vmem>>, %arg5: memref<32x1xf32, #tpu.memory_space<vmem>>, %arg6: memref<4x32xf32, #tpu.memory_space<vmem>>, %arg7: memref<4x1xf32, #tpu.memory_space<vmem>>, %arg8: memref<32x4xf32, #tpu.memory_space<vmem>>, %arg9: memref<32x1xf32, #tpu.memory_space<vmem>>, %arg10: memref<32x32xf32, #tpu.memory_space<vmem>>, %arg11: memref<32x1xf32, #tpu.memory_space<vmem>>, %arg12: memref<16x32xf32, #tpu.memory_space<vmem>>, %arg13: memref<16x1xf32, #tpu.memory_space<vmem>>, %arg14: memref<10x6xf32, #tpu.memory_space<vmem>>, %arg15: memref<10x1xf32, #tpu.memory_space<vmem>>, %arg16: memref<2x10xf32, #tpu.memory_space<vmem>>, %arg17: memref<2x1xf32, #tpu.memory_space<vmem>>, %arg18: memref<16x256xf32, #tpu.memory_space<vmem>>, %arg19: memref<8x256xf32, #tpu.memory_space<vmem>>) attributes {dimension_semantics = [#tpu.dimension_semantics<parallel>], iteration_bounds = array<i64: 2>, scalar_prefetch = 0 : i64, scratch_operands = 0 : i64, tpu.core_type = #tpu.core_type<tc>, window_params = [{transform_indices = @transform_0, window_bounds = array<i64: 256, 16>}, {pipeline_mode = #tpu.pipeline_mode<synchronous>, transform_indices = @transform_1, window_bounds = array<i64: 32, 16>}, {pipeline_mode = #tpu.pipeline_mode<synchronous>, transform_indices = @transform_2, window_bounds = array<i64: 32, 1>}, {pipeline_mode = #tpu.pipeline_mode<synchronous>, transform_indices = @transform_3, window_bounds = array<i64: 32, 32>}, {pipeline_mode = #tpu.pipeline_mode<synchronous>, transform_indices = @transform_4, window_bounds = array<i64: 32, 1>}, {pipeline_mode = #tpu.pipeline_mode<synchronous>, transform_indices = @transform_5, window_bounds = array<i64: 4, 32>}, {pipeline_mode = #tpu.pipeline_mode<synchronous>, transform_indices = @transform_6, window_bounds = array<i64: 4, 1>}, {pipeline_mode = #tpu.pipeline_mode<synchronous>, transform_indices = @transform_7, window_bounds = array<i64: 32, 4>}, {pipeline_mode = #tpu.pipeline_mode<synchronous>, transform_indices = @transform_8, window_bounds = array<i64: 32, 1>}, {pipeline_mode = #tpu.pipeline_mode<synchronous>, transform_indices = @transform_9, window_bounds = array<i64: 32, 32>}, {pipeline_mode = #tpu.pipeline_mode<synchronous>, transform_indices = @transform_10, window_bounds = array<i64: 32, 1>}, {pipeline_mode = #tpu.pipeline_mode<synchronous>, transform_indices = @transform_11, window_bounds = array<i64: 16, 32>}, {pipeline_mode = #tpu.pipeline_mode<synchronous>, transform_indices = @transform_12, window_bounds = array<i64: 16, 1>}, {pipeline_mode = #tpu.pipeline_mode<synchronous>, transform_indices = @transform_13, window_bounds = array<i64: 10, 6>}, {pipeline_mode = #tpu.pipeline_mode<synchronous>, transform_indices = @transform_14, window_bounds = array<i64: 10, 1>}, {pipeline_mode = #tpu.pipeline_mode<synchronous>, transform_indices = @transform_15, window_bounds = array<i64: 2, 10>}, {pipeline_mode = #tpu.pipeline_mode<synchronous>, transform_indices = @transform_16, window_bounds = array<i64: 2, 1>}, {transform_indices = @transform_17, window_bounds = array<i64: 16, 256>}, {transform_indices = @transform_18, window_bounds = array<i64: 8, 256>}]} {
    %c0 = arith.constant 0 : index
    %c0_0 = arith.constant 0 : index
    %0 = vector.load %arg1[%c0, %c0_0] : memref<256x16xf32, #tpu.memory_space<vmem>>, vector<256x16xf32>
    %1 = tpu.iota {dimensions = array<i32: 0>} : vector<16x16xi32>
    %2 = tpu.iota {dimensions = array<i32: 1>} : vector<16x16xi32>
    %3 = arith.cmpi eq, %1, %2 : vector<16x16xi32>
    %4 = arith.extui %3 : vector<16x16xi1> to vector<16x16xi32>
    %5 = arith.sitofp %4 : vector<16x16xi32> to vector<16x16xf32>
    %cst = arith.constant dense<0.000000e+00> : vector<16x256xf32>
    %6 = tpu.matmul %5, %0, %cst {dimension_numbers = #tpu.dot_dimension_numbers<[1], [1], [0], [0], [0, 0, 1, 0], [], []>, precision = #tpu.contract_precision<fp32>} : vector<16x16xf32>, vector<256x16xf32>, vector<16x256xf32> -> vector<16x256xf32>
    %c0_1 = arith.constant 0 : index
    %c0_2 = arith.constant 0 : index
    %7 = vector.load %arg2[%c0_1, %c0_2] : memref<32x16xf32, #tpu.memory_space<vmem>>, vector<32x16xf32>
    %cst_3 = arith.constant dense<0.000000e+00> : vector<32x256xf32>
    %8 = tpu.matmul %7, %6, %cst_3 {dimension_numbers = #tpu.dot_dimension_numbers<[1], [0], [0], [1], [0, 0, 1, 1], [], []>} : vector<32x16xf32>, vector<16x256xf32>, vector<32x256xf32> -> vector<32x256xf32>
    %c0_4 = arith.constant 0 : index
    %c0_5 = arith.constant 0 : index
    %9 = vector.load %arg3[%c0_4, %c0_5] : memref<32x1xf32, #tpu.memory_space<vmem>>, vector<32x1xf32>
    %10 = vector.broadcast %9 : vector<32x1xf32> to vector<32x256xf32>
    %11 = arith.addf %8, %10 : vector<32x256xf32>
    %cst_6 = arith.constant 0.000000e+00 : f32
    %12 = vector.broadcast %cst_6 : f32 to vector<32x256xf32>
    %13 = arith.cmpf ogt, %11, %12 : vector<32x256xf32>
    %cst_7 = arith.constant 1.000000e-01 : f32
    %14 = vector.broadcast %cst_7 : f32 to vector<32x256xf32>
    %15 = arith.mulf %14, %11 : vector<32x256xf32>
    %16 = arith.select %13, %11, %15 : vector<32x256xi1>, vector<32x256xf32>
    %c0_8 = arith.constant 0 : index
    %c0_9 = arith.constant 0 : index
    %17 = vector.load %arg4[%c0_8, %c0_9] : memref<32x32xf32, #tpu.memory_space<vmem>>, vector<32x32xf32>
    %cst_10 = arith.constant dense<0.000000e+00> : vector<32x256xf32>
    %18 = tpu.matmul %17, %16, %cst_10 {dimension_numbers = #tpu.dot_dimension_numbers<[1], [0], [0], [1], [0, 0, 1, 1], [], []>} : vector<32x32xf32>, vector<32x256xf32>, vector<32x256xf32> -> vector<32x256xf32>
    %c0_11 = arith.constant 0 : index
    %c0_12 = arith.constant 0 : index
    %19 = vector.load %arg5[%c0_11, %c0_12] : memref<32x1xf32, #tpu.memory_space<vmem>>, vector<32x1xf32>
    %20 = vector.broadcast %19 : vector<32x1xf32> to vector<32x256xf32>
    %21 = arith.addf %18, %20 : vector<32x256xf32>
    %cst_13 = arith.constant 0.000000e+00 : f32
    %22 = vector.broadcast %cst_13 : f32 to vector<32x256xf32>
    %23 = arith.cmpf ogt, %21, %22 : vector<32x256xf32>
    %cst_14 = arith.constant 1.000000e-01 : f32
    %24 = vector.broadcast %cst_14 : f32 to vector<32x256xf32>
    %25 = arith.mulf %24, %21 : vector<32x256xf32>
    %26 = arith.select %23, %21, %25 : vector<32x256xi1>, vector<32x256xf32>
    %c0_15 = arith.constant 0 : index
    %c0_16 = arith.constant 0 : index
    %27 = vector.load %arg6[%c0_15, %c0_16] : memref<4x32xf32, #tpu.memory_space<vmem>>, vector<4x32xf32>
    %cst_17 = arith.constant dense<0.000000e+00> : vector<4x256xf32>
    %28 = tpu.matmul %27, %26, %cst_17 {dimension_numbers = #tpu.dot_dimension_numbers<[1], [0], [0], [1], [0, 0, 1, 1], [], []>} : vector<4x32xf32>, vector<32x256xf32>, vector<4x256xf32> -> vector<4x256xf32>
    %c0_18 = arith.constant 0 : index
    %c0_19 = arith.constant 0 : index
    %29 = vector.load %arg7[%c0_18, %c0_19] : memref<4x1xf32, #tpu.memory_space<vmem>>, vector<4x1xf32>
    %30 = vector.broadcast %29 : vector<4x1xf32> to vector<4x256xf32>
    %31 = arith.addf %28, %30 : vector<4x256xf32>
    %cst_20 = arith.constant 0.000000e+00 : f32
    %32 = vector.broadcast %cst_20 : f32 to vector<4x256xf32>
    %33 = arith.cmpf ogt, %31, %32 : vector<4x256xf32>
    %cst_21 = arith.constant 1.000000e-01 : f32
    %34 = vector.broadcast %cst_21 : f32 to vector<4x256xf32>
    %35 = arith.mulf %34, %31 : vector<4x256xf32>
    %36 = arith.select %33, %31, %35 : vector<4x256xi1>, vector<4x256xf32>
    %c0_22 = arith.constant 0 : index
    %c0_23 = arith.constant 0 : index
    %37 = vector.load %arg8[%c0_22, %c0_23] : memref<32x4xf32, #tpu.memory_space<vmem>>, vector<32x4xf32>
    %cst_24 = arith.constant dense<0.000000e+00> : vector<32x256xf32>
    %38 = tpu.matmul %37, %36, %cst_24 {dimension_numbers = #tpu.dot_dimension_numbers<[1], [0], [0], [1], [0, 0, 1, 1], [], []>} : vector<32x4xf32>, vector<4x256xf32>, vector<32x256xf32> -> vector<32x256xf32>
    %c0_25 = arith.constant 0 : index
    %c0_26 = arith.constant 0 : index
    %39 = vector.load %arg9[%c0_25, %c0_26] : memref<32x1xf32, #tpu.memory_space<vmem>>, vector<32x1xf32>
    %40 = vector.broadcast %39 : vector<32x1xf32> to vector<32x256xf32>
    %41 = arith.addf %38, %40 : vector<32x256xf32>
    %cst_27 = arith.constant 0.000000e+00 : f32
    %42 = vector.broadcast %cst_27 : f32 to vector<32x256xf32>
    %43 = arith.cmpf ogt, %41, %42 : vector<32x256xf32>
    %cst_28 = arith.constant 1.000000e-01 : f32
    %44 = vector.broadcast %cst_28 : f32 to vector<32x256xf32>
    %45 = arith.mulf %44, %41 : vector<32x256xf32>
    %46 = arith.select %43, %41, %45 : vector<32x256xi1>, vector<32x256xf32>
    %c0_29 = arith.constant 0 : index
    %c0_30 = arith.constant 0 : index
    %47 = vector.load %arg10[%c0_29, %c0_30] : memref<32x32xf32, #tpu.memory_space<vmem>>, vector<32x32xf32>
    %cst_31 = arith.constant dense<0.000000e+00> : vector<32x256xf32>
    %48 = tpu.matmul %47, %46, %cst_31 {dimension_numbers = #tpu.dot_dimension_numbers<[1], [0], [0], [1], [0, 0, 1, 1], [], []>} : vector<32x32xf32>, vector<32x256xf32>, vector<32x256xf32> -> vector<32x256xf32>
    %c0_32 = arith.constant 0 : index
    %c0_33 = arith.constant 0 : index
    %49 = vector.load %arg11[%c0_32, %c0_33] : memref<32x1xf32, #tpu.memory_space<vmem>>, vector<32x1xf32>
    %50 = vector.broadcast %49 : vector<32x1xf32> to vector<32x256xf32>
    %51 = arith.addf %48, %50 : vector<32x256xf32>
    %cst_34 = arith.constant 0.000000e+00 : f32
    %52 = vector.broadcast %cst_34 : f32 to vector<32x256xf32>
    %53 = arith.cmpf ogt, %51, %52 : vector<32x256xf32>
    %cst_35 = arith.constant 1.000000e-01 : f32
    %54 = vector.broadcast %cst_35 : f32 to vector<32x256xf32>
    %55 = arith.mulf %54, %51 : vector<32x256xf32>
    %56 = arith.select %53, %51, %55 : vector<32x256xi1>, vector<32x256xf32>
    %c0_36 = arith.constant 0 : index
    %c0_37 = arith.constant 0 : index
    %57 = vector.load %arg12[%c0_36, %c0_37] : memref<16x32xf32, #tpu.memory_space<vmem>>, vector<16x32xf32>
    %cst_38 = arith.constant dense<0.000000e+00> : vector<16x256xf32>
    %58 = tpu.matmul %57, %56, %cst_38 {dimension_numbers = #tpu.dot_dimension_numbers<[1], [0], [0], [1], [0, 0, 1, 1], [], []>} : vector<16x32xf32>, vector<32x256xf32>, vector<16x256xf32> -> vector<16x256xf32>
    %c0_39 = arith.constant 0 : index
    %c0_40 = arith.constant 0 : index
    %59 = vector.load %arg13[%c0_39, %c0_40] : memref<16x1xf32, #tpu.memory_space<vmem>>, vector<16x1xf32>
    %60 = vector.broadcast %59 : vector<16x1xf32> to vector<16x256xf32>
    %61 = arith.addf %58, %60 : vector<16x256xf32>
    %cst_41 = arith.constant 0.000000e+00 : f32
    %62 = vector.broadcast %cst_41 : f32 to vector<16x256xf32>
    %63 = arith.subf %62, %61 : vector<16x256xf32>
    %64 = math.exp %63 : vector<16x256xf32>
    %cst_42 = arith.constant 1.000000e+00 : f32
    %65 = vector.broadcast %cst_42 : f32 to vector<16x256xf32>
    %66 = arith.addf %65, %64 : vector<16x256xf32>
    %cst_43 = arith.constant 1.000000e+00 : f32
    %67 = vector.broadcast %cst_43 : f32 to vector<16x256xf32>
    %68 = arith.divf %67, %66 : vector<16x256xf32>
    %c0_44 = arith.constant 0 : index
    %c0_45 = arith.constant 0 : index
    %69 = vector.load %arg18[%c0_44, %c0_45] : memref<16x256xf32, #tpu.memory_space<vmem>>, vector<16x256xf32>
    tpu.vector_store %arg18[%c0_44, %c0_45], %68 {strides = array<i32>} : memref<16x256xf32, #tpu.memory_space<vmem>>, vector<16x256xf32>,
    %70 = arith.mulf %6, %6 : vector<16x256xf32>
    %cst_46 = arith.constant dense<0.000000e+00> : vector<256xf32>
    %71 = vector.multi_reduction <add>, %70, %cst_46 [0] : vector<16x256xf32> to vector<256xf32>
    %72 = vector.shape_cast %71 : vector<256xf32> to vector<1x256xf32>
    %73 = arith.mulf %68, %68 : vector<16x256xf32>
    %cst_47 = arith.constant dense<0.000000e+00> : vector<256xf32>
    %74 = vector.multi_reduction <add>, %73, %cst_47 [0] : vector<16x256xf32> to vector<256xf32>
    %75 = vector.shape_cast %74 : vector<256xf32> to vector<1x256xf32>
    %76 = arith.mulf %6, %68 : vector<16x256xf32>
    %cst_48 = arith.constant dense<0.000000e+00> : vector<256xf32>
    %77 = vector.multi_reduction <add>, %76, %cst_48 [0] : vector<16x256xf32> to vector<256xf32>
    %78 = vector.shape_cast %77 : vector<256xf32> to vector<1x256xf32>
    %79 = math.sqrt %72 : vector<1x256xf32>
    %cst_49 = arith.constant 9.99999993E-9 : f32
    %80 = vector.broadcast %cst_49 : f32 to vector<1x256xf32>
    %81 = arith.maximumf %79, %80 : vector<1x256xf32>
    %82 = math.sqrt %75 : vector<1x256xf32>
    %cst_50 = arith.constant 9.99999993E-9 : f32
    %83 = vector.broadcast %cst_50 : f32 to vector<1x256xf32>
    %84 = arith.maximumf %82, %83 : vector<1x256xf32>
    %85 = arith.mulf %81, %84 : vector<1x256xf32>
    %86 = arith.divf %78, %85 : vector<1x256xf32>
    %87 = arith.subf %6, %68 : vector<16x256xf32>
    %88 = arith.mulf %87, %87 : vector<16x256xf32>
    %cst_51 = arith.constant dense<0.000000e+00> : vector<256xf32>
    %89 = vector.multi_reduction <add>, %88, %cst_51 [0] : vector<16x256xf32> to vector<256xf32>
    %90 = vector.shape_cast %89 : vector<256xf32> to vector<1x256xf32>
    %91 = math.sqrt %90 : vector<1x256xf32>
    %92 = arith.divf %91, %81 : vector<1x256xf32>
    %93 = tpu.concatenate %31, %92, %86 in 0 : vector<4x256xf32>, vector<1x256xf32>, vector<1x256xf32> -> vector<6x256xf32>
    %c0_52 = arith.constant 0 : index
    %c0_53 = arith.constant 0 : index
    %94 = vector.load %arg14[%c0_52, %c0_53] : memref<10x6xf32, #tpu.memory_space<vmem>>, vector<10x6xf32>
    %cst_54 = arith.constant dense<0.000000e+00> : vector<10x256xf32>
    %95 = tpu.matmul %94, %93, %cst_54 {dimension_numbers = #tpu.dot_dimension_numbers<[1], [0], [0], [1], [0, 0, 1, 1], [], []>} : vector<10x6xf32>, vector<6x256xf32>, vector<10x256xf32> -> vector<10x256xf32>
    %c0_55 = arith.constant 0 : index
    %c0_56 = arith.constant 0 : index
    %96 = vector.load %arg15[%c0_55, %c0_56] : memref<10x1xf32, #tpu.memory_space<vmem>>, vector<10x1xf32>
    %97 = vector.broadcast %96 : vector<10x1xf32> to vector<10x256xf32>
    %98 = arith.addf %95, %97 : vector<10x256xf32>
    %99 = math.tanh %98 : vector<10x256xf32>
    %c0_57 = arith.constant 0 : index
    %c0_58 = arith.constant 0 : index
    %100 = vector.load %arg16[%c0_57, %c0_58] : memref<2x10xf32, #tpu.memory_space<vmem>>, vector<2x10xf32>
    %cst_59 = arith.constant dense<0.000000e+00> : vector<2x256xf32>
    %101 = tpu.matmul %100, %99, %cst_59 {dimension_numbers = #tpu.dot_dimension_numbers<[1], [0], [0], [1], [0, 0, 1, 1], [], []>} : vector<2x10xf32>, vector<10x256xf32>, vector<2x256xf32> -> vector<2x256xf32>
    %c0_60 = arith.constant 0 : index
    %c0_61 = arith.constant 0 : index
    %102 = vector.load %arg17[%c0_60, %c0_61] : memref<2x1xf32, #tpu.memory_space<vmem>>, vector<2x1xf32>
    %103 = vector.broadcast %102 : vector<2x1xf32> to vector<2x256xf32>
    %104 = arith.addf %101, %103 : vector<2x256xf32>
    %cst_62 = arith.constant dense<0xFF800000> : vector<256xf32>
    %105 = vector.multi_reduction <maximumf>, %104, %cst_62 [0] : vector<2x256xf32> to vector<256xf32>
    %106 = vector.shape_cast %105 : vector<256xf32> to vector<1x256xf32>
    %107 = vector.broadcast %106 : vector<1x256xf32> to vector<2x256xf32>
    %108 = arith.subf %104, %107 : vector<2x256xf32>
    %109 = math.exp %108 : vector<2x256xf32>
    %cst_63 = arith.constant dense<0.000000e+00> : vector<256xf32>
    %110 = vector.multi_reduction <add>, %109, %cst_63 [0] : vector<2x256xf32> to vector<256xf32>
    %111 = vector.shape_cast %110 : vector<256xf32> to vector<1x256xf32>
    %112 = vector.broadcast %111 : vector<1x256xf32> to vector<2x256xf32>
    %113 = arith.divf %109, %112 : vector<2x256xf32>
    %114 = tpu.concatenate %93, %113 in 0 : vector<6x256xf32>, vector<2x256xf32> -> vector<8x256xf32>
    %c0_64 = arith.constant 0 : index
    %c0_65 = arith.constant 0 : index
    %115 = vector.load %arg19[%c0_64, %c0_65] : memref<8x256xf32, #tpu.memory_space<vmem>>, vector<8x256xf32>
    tpu.vector_store %arg19[%c0_64, %c0_65], %114 {strides = array<i32>} : memref<8x256xf32, #tpu.memory_space<vmem>>, vector<8x256xf32>,
    return
  }
  func.func @transform_0(%arg0: i32) -> (i32, i32) {
    %c0_i32 = arith.constant 0 : i32
    %c0_i32_0 = arith.constant 0 : i32
    return %arg0, %c0_i32 : i32, i32
  }
  func.func @transform_1(%arg0: i32) -> (i32, i32) {
    %c0_i32 = arith.constant 0 : i32
    %c0_i32_0 = arith.constant 0 : i32
    %c0_i32_1 = arith.constant 0 : i32
    return %c0_i32, %c0_i32_0 : i32, i32
  }
  func.func @transform_2(%arg0: i32) -> (i32, i32) {
    %c0_i32 = arith.constant 0 : i32
    %c0_i32_0 = arith.constant 0 : i32
    %c0_i32_1 = arith.constant 0 : i32
    return %c0_i32, %c0_i32_0 : i32, i32
  }
  func.func @transform_3(%arg0: i32) -> (i32, i32) {
    %c0_i32 = arith.constant 0 : i32
    %c0_i32_0 = arith.constant 0 : i32
    %c0_i32_1 = arith.constant 0 : i32
    return %c0_i32, %c0_i32_0 : i32, i32
  }
  func.func @transform_4(%arg0: i32) -> (i32, i32) {
    %c0_i32 = arith.constant 0 : i32
    %c0_i32_0 = arith.constant 0 : i32
    %c0_i32_1 = arith.constant 0 : i32
    return %c0_i32, %c0_i32_0 : i32, i32
  }
  func.func @transform_5(%arg0: i32) -> (i32, i32) {
    %c0_i32 = arith.constant 0 : i32
    %c0_i32_0 = arith.constant 0 : i32
    %c0_i32_1 = arith.constant 0 : i32
    return %c0_i32, %c0_i32_0 : i32, i32
  }
  func.func @transform_6(%arg0: i32) -> (i32, i32) {
    %c0_i32 = arith.constant 0 : i32
    %c0_i32_0 = arith.constant 0 : i32
    %c0_i32_1 = arith.constant 0 : i32
    return %c0_i32, %c0_i32_0 : i32, i32
  }
  func.func @transform_7(%arg0: i32) -> (i32, i32) {
    %c0_i32 = arith.constant 0 : i32
    %c0_i32_0 = arith.constant 0 : i32
    %c0_i32_1 = arith.constant 0 : i32
    return %c0_i32, %c0_i32_0 : i32, i32
  }
  func.func @transform_8(%arg0: i32) -> (i32, i32) {
    %c0_i32 = arith.constant 0 : i32
    %c0_i32_0 = arith.constant 0 : i32
    %c0_i32_1 = arith.constant 0 : i32
    return %c0_i32, %c0_i32_0 : i32, i32
  }
  func.func @transform_9(%arg0: i32) -> (i32, i32) {
    %c0_i32 = arith.constant 0 : i32
    %c0_i32_0 = arith.constant 0 : i32
    %c0_i32_1 = arith.constant 0 : i32
    return %c0_i32, %c0_i32_0 : i32, i32
  }
  func.func @transform_10(%arg0: i32) -> (i32, i32) {
    %c0_i32 = arith.constant 0 : i32
    %c0_i32_0 = arith.constant 0 : i32
    %c0_i32_1 = arith.constant 0 : i32
    return %c0_i32, %c0_i32_0 : i32, i32
  }
  func.func @transform_11(%arg0: i32) -> (i32, i32) {
    %c0_i32 = arith.constant 0 : i32
    %c0_i32_0 = arith.constant 0 : i32
    %c0_i32_1 = arith.constant 0 : i32
    return %c0_i32, %c0_i32_0 : i32, i32
  }
  func.func @transform_12(%arg0: i32) -> (i32, i32) {
    %c0_i32 = arith.constant 0 : i32
    %c0_i32_0 = arith.constant 0 : i32
    %c0_i32_1 = arith.constant 0 : i32
    return %c0_i32, %c0_i32_0 : i32, i32
  }
  func.func @transform_13(%arg0: i32) -> (i32, i32) {
    %c0_i32 = arith.constant 0 : i32
    %c0_i32_0 = arith.constant 0 : i32
    %c0_i32_1 = arith.constant 0 : i32
    return %c0_i32, %c0_i32_0 : i32, i32
  }
  func.func @transform_14(%arg0: i32) -> (i32, i32) {
    %c0_i32 = arith.constant 0 : i32
    %c0_i32_0 = arith.constant 0 : i32
    %c0_i32_1 = arith.constant 0 : i32
    return %c0_i32, %c0_i32_0 : i32, i32
  }
  func.func @transform_15(%arg0: i32) -> (i32, i32) {
    %c0_i32 = arith.constant 0 : i32
    %c0_i32_0 = arith.constant 0 : i32
    %c0_i32_1 = arith.constant 0 : i32
    return %c0_i32, %c0_i32_0 : i32, i32
  }
  func.func @transform_16(%arg0: i32) -> (i32, i32) {
    %c0_i32 = arith.constant 0 : i32
    %c0_i32_0 = arith.constant 0 : i32
    %c0_i32_1 = arith.constant 0 : i32
    return %c0_i32, %c0_i32_0 : i32, i32
  }
  func.func @transform_17(%arg0: i32) -> (i32, i32) {
    %c0_i32 = arith.constant 0 : i32
    %c0_i32_0 = arith.constant 0 : i32
    return %c0_i32, %arg0 : i32, i32
  }
  func.func @transform_18(%arg0: i32) -> (i32, i32) {
    %c0_i32 = arith.constant 0 : i32
    %c0_i32_0 = arith.constant 0 : i32
    return %c0_i32, %arg0 : i32, i32
  }
}

</mosaic_0001>

<llo_original>
// kernel: dagmm_forward.1
$region0: #{dagmm_forward.1}
  #allocation0 [shape = 'u32[]', space=smem, size = 0x4, offset = 0x4, fixed_abs, tag = 'smem constant byte address 0x4 - core index']
  #allocation1 [shape = 'u32[144,128]{1,0:T(1,128)}', space=vmem, size = 0x12000, scoped, tag = 'internal scratch']
  %s0 = inlined_call_operand.vmem [shape: f32[512,16], index: 0, kind: input, shape index: {}]
  %s1 = inlined_call_operand.vmem [shape: f32[32,16], index: 1, kind: input, shape index: {}]
  %s2 = inlined_call_operand.vmem [shape: f32[32,1], index: 2, kind: input, shape index: {}]
  %s3 = inlined_call_operand.vmem [shape: f32[32,32], index: 3, kind: input, shape index: {}]
  %s4 = inlined_call_operand.vmem [shape: f32[32,1], index: 4, kind: input, shape index: {}]
  %s5 = inlined_call_operand.vmem [shape: f32[4,32], index: 5, kind: input, shape index: {}]
  %s6 = inlined_call_operand.vmem [shape: f32[4,1], index: 6, kind: input, shape index: {}]
  %s7 = inlined_call_operand.vmem [shape: f32[32,4], index: 7, kind: input, shape index: {}]
  %s8 = inlined_call_operand.vmem [shape: f32[32,1], index: 8, kind: input, shape index: {}]
  %s9 = inlined_call_operand.vmem [shape: f32[32,32], index: 9, kind: input, shape index: {}]
  %s10 = inlined_call_operand.vmem [shape: f32[32,1], index: 10, kind: input, shape index: {}]
  %s11 = inlined_call_operand.vmem [shape: f32[16,32], index: 11, kind: input, shape index: {}]
  %s12 = inlined_call_operand.vmem [shape: f32[16,1], index: 12, kind: input, shape index: {}]
  %s13 = inlined_call_operand.vmem [shape: f32[10,6], index: 13, kind: input, shape index: {}]
  %s14 = inlined_call_operand.vmem [shape: f32[10,1], index: 14, kind: input, shape index: {}]
  %s15 = inlined_call_operand.vmem [shape: f32[2,10], index: 15, kind: input, shape index: {}]
  %s16 = inlined_call_operand.vmem [shape: f32[2,1], index: 16, kind: input, shape index: {}]
  %s17 = inlined_call_operand.hbm [shape: f32[16,512], index: 17, kind: output, shape index: {0}]
  %s18 = inlined_call_operand.vmem [shape: f32[8,512], index: 18, kind: output, shape index: {1}]
  %19 = xla_tuple %s17, %s18
  %s20 = sld [smem:[#allocation0]]
  $region109: #{dagmm_forward.1} parent=0
    _
  %s22 = ssub.s32 1, %s20
  %s23 = scalar_select 0, %s22, %s20
  $region1: #{dagmm_forward.1} parent=0
    #allocation2 [shape = 'u8[32768]{0}', space=vmem, size = 0x8000, scoped, tag = 'output window, operand 0']
    #allocation3 [shape = 's32[2]{0}', space=sflag, size = 0x8, scoped, tag = 'scoped memory for dagmm_forward.1']
    %24 = vsyncpa [#allocation3], 0
    %s25 = scalar_lea.sflag [#allocation3], 1
    %26 = vsyncpa %s25, 0
    loop: start=0, step=1, limit=4
    $region2: #{dagmm_forward.1} parent=1 // loop_pre_header
      _
    $region3: #{dagmm_forward.1} parent=1 // loop_header
      %s28 = sphi 0, %s32
      %p29 = scmp.ge.s32.totalorder %s28, 4
      %s38 = sphi 0, %s40
      %s41 = sphi 0, %s38
      %s42 = sphi 0, %s41
      %s58 = sphi 0, %s42
      %s62 = sphi 0, %s62
      %s64 = sphi 0, %s62
      %s65 = sphi 0, %s64
      %s79 = sphi 0, %s65
      %s83 = sphi 0, %s83
      %s85 = sphi 0, %s83
      %s86 = sphi 0, %s85
      %s100 = sphi 0, %s86
      %s104 = sphi 0, %s104
      %s106 = sphi 0, %s104
      %s107 = sphi 0, %s106
      %s121 = sphi 0, %s107
      %s125 = sphi 0, %s125
      %s127 = sphi 0, %s125
      %s128 = sphi 0, %s127
      %s142 = sphi 0, %s128
      %s146 = sphi 0, %s146
      %s148 = sphi 0, %s146
      %s149 = sphi 0, %s148
      %s163 = sphi 0, %s149
      %s167 = sphi 0, %s167
      %s169 = sphi 0, %s167
      %s170 = sphi 0, %s169
      %s184 = sphi 0, %s170
      %s188 = sphi 0, %s188
      %s190 = sphi 0, %s188
      %s191 = sphi 0, %s190
      %s205 = sphi 0, %s191
      %s209 = sphi 0, %s209
      %s211 = sphi 0, %s209
      %s212 = sphi 0, %s211
      %s226 = sphi 0, %s212
      %s230 = sphi 0, %s230
      %s232 = sphi 0, %s230
      %s233 = sphi 0, %s232
      %s247 = sphi 0, %s233
      %s251 = sphi 0, %s251
      %s253 = sphi 0, %s251
      %s254 = sphi 0, %s253
      %s268 = sphi 0, %s254
      %s272 = sphi 0, %s272
      %s274 = sphi 0, %s272
      %s275 = sphi 0, %s274
      %s289 = sphi 0, %s275
      %s293 = sphi 0, %s293
      %s295 = sphi 0, %s293
      %s296 = sphi 0, %s295
      %s310 = sphi 0, %s296
      %s314 = sphi 0, %s314
      %s316 = sphi 0, %s314
      %s317 = sphi 0, %s316
      %s331 = sphi 0, %s317
      %s335 = sphi 0, %s335
      %s337 = sphi 0, %s335
      %s338 = sphi 0, %s337
      %s352 = sphi 0, %s338
      %s356 = sphi 0, %s356
      %s358 = sphi 0, %s356
      %s359 = sphi 0, %s358
      %s373 = sphi 0, %s359
      %s377 = sphi 0, %s377
      %s379 = sphi 0, %s377
      %s380 = sphi 0, %s379
      %s394 = sphi 0, %s380
      %s400 = sphi 0, %s402
      %s403 = sphi 0, %s400
      %s404 = sphi 0, %s403
      %s420 = sphi 0, %s404
      %s426 = sphi 0, %s428
      %s429 = sphi 0, %s426
      %s430 = sphi 0, %s429
      %s446 = sphi 0, %s430
    $region4: #{dagmm_forward.1} parent=1 // loop_header_branch
      %31 = sbr.rel (%p29) target = $region8
    $region5: #{dagmm_forward.1} parent=1 // loop_body
      %s33 = ssub.s32 %s28, 1
      %s34 = ssub.s32 %s28, 2
      %s35 = sadd.s32 %s28, 1
      %s36 = ssub.s32 %s28, %s35
      %p37 = scmp.eq.s32.totalorder %s36, 0
      %s39 = sadd.s32 %s38, 1
      %s40 = scalar_select %p37, %s38, %s39
      %p43 = pneg %p37
      %p44 = scmp.eq.s32.totalorder %s28, 1
      %p45 = por %p43, %p44
      %p46 = scmp.ne.s32.totalorder %s38, %s41
      %p47 = scmp.eq.s32.totalorder %s28, 0
      %p48 = por %p46, %p47
      %p49 = scmp.ne.s32.totalorder %s38, %s41
      %p50 = scmp.eq.s32.totalorder %s33, 1
      %p51 = por %p49, %p50
      %p52 = scmp.ne.s32.totalorder %s41, %s42
      %p53 = scmp.eq.s32.totalorder %s33, 0
      %p54 = por %p52, %p53
      %p55 = scmp.ne.s32.totalorder %s41, %s42
      %p56 = scmp.eq.s32.totalorder %s34, 1
      %p57 = por %p55, %p56
      %p59 = scmp.ne.s32.totalorder %s42, %s58
      %p60 = scmp.eq.s32.totalorder %s34, 0
      %p61 = por %p59, %p60
      %s63 = sadd.s32 %s62, 1
      %p66 = scmp.eq.s32.totalorder %s28, 1
      %p67 = scmp.ne.s32.totalorder %s62, %s64
      %p68 = scmp.eq.s32.totalorder %s28, 0
      %p69 = por %p67, %p68
      %p70 = scmp.ne.s32.totalorder %s62, %s64
      %p71 = scmp.eq.s32.totalorder %s33, 1
      %p72 = por %p70, %p71
      %p73 = scmp.ne.s32.totalorder %s64, %s65
      %p74 = scmp.eq.s32.totalorder %s33, 0
      %p75 = por %p73, %p74
      %p76 = scmp.ne.s32.totalorder %s64, %s65
      %p77 = scmp.eq.s32.totalorder %s34, 1
      %p78 = por %p76, %p77
      %p80 = scmp.ne.s32.totalorder %s65, %s79
      %p81 = scmp.eq.s32.totalorder %s34, 0
      %p82 = por %p80, %p81
      %s84 = sadd.s32 %s83, 1
      %p87 = scmp.eq.s32.totalorder %s28, 1
      %p88 = scmp.ne.s32.totalorder %s83, %s85
      %p89 = scmp.eq.s32.totalorder %s28, 0
      %p90 = por %p88, %p89
      %p91 = scmp.ne.s32.totalorder %s83, %s85
      %p92 = scmp.eq.s32.totalorder %s33, 1
      %p93 = por %p91, %p92
      %p94 = scmp.ne.s32.totalorder %s85, %s86
      %p95 = scmp.eq.s32.totalorder %s33, 0
      %p96 = por %p94, %p95
      %p97 = scmp.ne.s32.totalorder %s85, %s86
      %p98 = scmp.eq.s32.totalorder %s34, 1
      %p99 = por %p97, %p98
      %p101 = scmp.ne.s32.totalorder %s86, %s100
      %p102 = scmp.eq.s32.totalorder %s34, 0
      %p103 = por %p101, %p102
      %s105 = sadd.s32 %s104, 1
      %p108 = scmp.eq.s32.totalorder %s28, 1
      %p109 = scmp.ne.s32.totalorder %s104, %s106
      %p110 = scmp.eq.s32.totalorder %s28, 0
      %p111 = por %p109, %p110
      %p112 = scmp.ne.s32.totalorder %s104, %s106
      %p113 = scmp.eq.s32.totalorder %s33, 1
      %p114 = por %p112, %p113
      %p115 = scmp.ne.s32.totalorder %s106, %s107
      %p116 = scmp.eq.s32.totalorder %s33, 0
      %p117 = por %p115, %p116
      %p118 = scmp.ne.s32.totalorder %s106, %s107
      %p119 = scmp.eq.s32.totalorder %s34, 1
      %p120 = por %p118, %p119
      %p122 = scmp.ne.s32.totalorder %s107, %s121
      %p123 = scmp.eq.s32.totalorder %s34, 0
      %p124 = por %p122, %p123
      %s126 = sadd.s32 %s125, 1
      %p129 = scmp.eq.s32.totalorder %s28, 1
      %p130 = scmp.ne.s32.totalorder %s125, %s127
      %p131 = scmp.eq.s32.totalorder %s28, 0
      %p132 = por %p130, %p131
      %p133 = scmp.ne.s32.totalorder %s125, %s127
      %p134 = scmp.eq.s32.totalorder %s33, 1
      %p135 = por %p133, %p134
      %p136 = scmp.ne.s32.totalorder %s127, %s128
      %p137 = scmp.eq.s32.totalorder %s33, 0
      %p138 = por %p136, %p137
      %p139 = scmp.ne.s32.totalorder %s127, %s128
      %p140 = scmp.eq.s32.totalorder %s34, 1
      %p141 = por %p139, %p140
      %p143 = scmp.ne.s32.totalorder %s128, %s142
      %p144 = scmp.eq.s32.totalorder %s34, 0
      %p145 = por %p143, %p144
      %s147 = sadd.s32 %s146, 1
      %p150 = scmp.eq.s32.totalorder %s28, 1
      %p151 = scmp.ne.s32.totalorder %s146, %s148
      %p152 = scmp.eq.s32.totalorder %s28, 0
      %p153 = por %p151, %p152
      %p154 = scmp.ne.s32.totalorder %s146, %s148
      %p155 = scmp.eq.s32.totalorder %s33, 1
      %p156 = por %p154, %p155
      %p157 = scmp.ne.s32.totalorder %s148, %s149
      %p158 = scmp.eq.s32.totalorder %s33, 0
      %p159 = por %p157, %p158
      %p160 = scmp.ne.s32.totalorder %s148, %s149
      %p161 = scmp.eq.s32.totalorder %s34, 1
      %p162 = por %p160, %p161
      %p164 = scmp.ne.s32.totalorder %s149, %s163
      %p165 = scmp.eq.s32.totalorder %s34, 0
      %p166 = por %p164, %p165
      %s168 = sadd.s32 %s167, 1
      %p171 = scmp.eq.s32.totalorder %s28, 1
      %p172 = scmp.ne.s32.totalorder %s167, %s169
      %p173 = scmp.eq.s32.totalorder %s28, 0
      %p174 = por %p172, %p173
      %p175 = scmp.ne.s32.totalorder %s167, %s169
      %p176 = scmp.eq.s32.totalorder %s33, 1
      %p177 = por %p175, %p176
      %p178 = scmp.ne.s32.totalorder %s169, %s170
      %p179 = scmp.eq.s32.totalorder %s33, 0
      %p180 = por %p178, %p179
      %p181 = scmp.ne.s32.totalorder %s169, %s170
      %p182 = scmp.eq.s32.totalorder %s34, 1
      %p183 = por %p181, %p182
      %p185 = scmp.ne.s32.totalorder %s170, %s184
      %p186 = scmp.eq.s32.totalorder %s34, 0
      %p187 = por %p185, %p186
      %s189 = sadd.s32 %s188, 1
      %p192 = scmp.eq.s32.totalorder %s28, 1
      %p193 = scmp.ne.s32.totalorder %s188, %s190
      %p194 = scmp.eq.s32.totalorder %s28, 0
      %p195 = por %p193, %p194
      %p196 = scmp.ne.s32.totalorder %s188, %s190
      %p197 = scmp.eq.s32.totalorder %s33, 1
      %p198 = por %p196, %p197
      %p199 = scmp.ne.s32.totalorder %s190, %s191
      %p200 = scmp.eq.s32.totalorder %s33, 0
      %p201 = por %p199, %p200
      %p202 = scmp.ne.s32.totalorder %s190, %s191
      %p203 = scmp.eq.s32.totalorder %s34, 1
      %p204 = por %p202, %p203
      %p206 = scmp.ne.s32.totalorder %s191, %s205
      %p207 = scmp.eq.s32.totalorder %s34, 0
      %p208 = por %p206, %p207
      %s210 = sadd.s32 %s209, 1
      %p213 = scmp.eq.s32.totalorder %s28, 1
      %p214 = scmp.ne.s32.totalorder %s209, %s211
      %p215 = scmp.eq.s32.totalorder %s28, 0
      %p216 = por %p214, %p215
      %p217 = scmp.ne.s32.totalorder %s209, %s211
      %p218 = scmp.eq.s32.totalorder %s33, 1
      %p219 = por %p217, %p218
      %p220 = scmp.ne.s32.totalorder %s211, %s212
      %p221 = scmp.eq.s32.totalorder %s33, 0
      %p222 = por %p220, %p221
      %p223 = scmp.ne.s32.totalorder %s211, %s212
      %p224 = scmp.eq.s32.totalorder %s34, 1
      %p225 = por %p223, %p224
      %p227 = scmp.ne.s32.totalorder %s212, %s226
      %p228 = scmp.eq.s32.totalorder %s34, 0
      %p229 = por %p227, %p228
      %s231 = sadd.s32 %s230, 1
      %p234 = scmp.eq.s32.totalorder %s28, 1
      %p235 = scmp.ne.s32.totalorder %s230, %s232
      %p236 = scmp.eq.s32.totalorder %s28, 0
      %p237 = por %p235, %p236
      %p238 = scmp.ne.s32.totalorder %s230, %s232
      %p239 = scmp.eq.s32.totalorder %s33, 1
      %p240 = por %p238, %p239
      %p241 = scmp.ne.s32.totalorder %s232, %s233
      %p242 = scmp.eq.s32.totalorder %s33, 0
      %p243 = por %p241, %p242
      %p244 = scmp.ne.s32.totalorder %s232, %s233
      %p245 = scmp.eq.s32.totalorder %s34, 1
      %p246 = por %p244, %p245
      %p248 = scmp.ne.s32.totalorder %s233, %s247
      %p249 = scmp.eq.s32.totalorder %s34, 0
      %p250 = por %p248, %p249
      %s252 = sadd.s32 %s251, 1
      %p255 = scmp.eq.s32.totalorder %s28, 1
      %p256 = scmp.ne.s32.totalorder %s251, %s253
      %p257 = scmp.eq.s32.totalorder %s28, 0
      %p258 = por %p256, %p257
      %p259 = scmp.ne.s32.totalorder %s251, %s253
      %p260 = scmp.eq.s32.totalorder %s33, 1
      %p261 = por %p259, %p260
      %p262 = scmp.ne.s32.totalorder %s253, %s254
      %p263 = scmp.eq.s32.totalorder %s33, 0
      %p264 = por %p262, %p263
      %p265 = scmp.ne.s32.totalorder %s253, %s254
      %p266 = scmp.eq.s32.totalorder %s34, 1
      %p267 = por %p265, %p266
      %p269 = scmp.ne.s32.totalorder %s254, %s268
      %p270 = scmp.eq.s32.totalorder %s34, 0
      %p271 = por %p269, %p270
      %s273 = sadd.s32 %s272, 1
      %p276 = scmp.eq.s32.totalorder %s28, 1
      %p277 = scmp.ne.s32.totalorder %s272, %s274
      %p278 = scmp.eq.s32.totalorder %s28, 0
      %p279 = por %p277, %p278
      %p280 = scmp.ne.s32.totalorder %s272, %s274
      %p281 = scmp.eq.s32.totalorder %s33, 1
      %p282 = por %p280, %p281
      %p283 = scmp.ne.s32.totalorder %s274, %s275
      %p284 = scmp.eq.s32.totalorder %s33, 0
      %p285 = por %p283, %p284
      %p286 = scmp.ne.s32.totalorder %s274, %s275
      %p287 = scmp.eq.s32.totalorder %s34, 1
      %p288 = por %p286, %p287
      %p290 = scmp.ne.s32.totalorder %s275, %s289
      %p291 = scmp.eq.s32.totalorder %s34, 0
      %p292 = por %p290, %p291
      %s294 = sadd.s32 %s293, 1
      %p297 = scmp.eq.s32.totalorder %s28, 1
      %p298 = scmp.ne.s32.totalorder %s293, %s295
      %p299 = scmp.eq.s32.totalorder %s28, 0
      %p300 = por %p298, %p299
      %p301 = scmp.ne.s32.totalorder %s293, %s295
      %p302 = scmp.eq.s32.totalorder %s33, 1
      %p303 = por %p301, %p302
      %p304 = scmp.ne.s32.totalorder %s295, %s296
      %p305 = scmp.eq.s32.totalorder %s33, 0
      %p306 = por %p304, %p305
      %p307 = scmp.ne.s32.totalorder %s295, %s296
      %p308 = scmp.eq.s32.totalorder %s34, 1
      %p309 = por %p307, %p308
      %p311 = scmp.ne.s32.totalorder %s296, %s310
      %p312 = scmp.eq.s32.totalorder %s34, 0
      %p313 = por %p311, %p312
      %s315 = sadd.s32 %s314, 1
      %p318 = scmp.eq.s32.totalorder %s28, 1
      %p319 = scmp.ne.s32.totalorder %s314, %s316
      %p320 = scmp.eq.s32.totalorder %s28, 0
      %p321 = por %p319, %p320
      %p322 = scmp.ne.s32.totalorder %s314, %s316
      %p323 = scmp.eq.s32.totalorder %s33, 1
      %p324 = por %p322, %p323
      %p325 = scmp.ne.s32.totalorder %s316, %s317
      %p326 = scmp.eq.s32.totalorder %s33, 0
      %p327 = por %p325, %p326
      %p328 = scmp.ne.s32.totalorder %s316, %s317
      %p329 = scmp.eq.s32.totalorder %s34, 1
      %p330 = por %p328, %p329
      %p332 = scmp.ne.s32.totalorder %s317, %s331
      %p333 = scmp.eq.s32.totalorder %s34, 0
      %p334 = por %p332, %p333
      %s336 = sadd.s32 %s335, 1
      %p339 = scmp.eq.s32.totalorder %s28, 1
      %p340 = scmp.ne.s32.totalorder %s335, %s337
      %p341 = scmp.eq.s32.totalorder %s28, 0
      %p342 = por %p340, %p341
      %p343 = scmp.ne.s32.totalorder %s335, %s337
      %p344 = scmp.eq.s32.totalorder %s33, 1
      %p345 = por %p343, %p344
      %p346 = scmp.ne.s32.totalorder %s337, %s338
      %p347 = scmp.eq.s32.totalorder %s33, 0
      %p348 = por %p346, %p347
      %p349 = scmp.ne.s32.totalorder %s337, %s338
      %p350 = scmp.eq.s32.totalorder %s34, 1
      %p351 = por %p349, %p350
      %p353 = scmp.ne.s32.totalorder %s338, %s352
      %p354 = scmp.eq.s32.totalorder %s34, 0
      %p355 = por %p353, %p354
      %s357 = sadd.s32 %s356, 1
      %p360 = scmp.eq.s32.totalorder %s28, 1
      %p361 = scmp.ne.s32.totalorder %s356, %s358
      %p362 = scmp.eq.s32.totalorder %s28, 0
      %p363 = por %p361, %p362
      %p364 = scmp.ne.s32.totalorder %s356, %s358
      %p365 = scmp.eq.s32.totalorder %s33, 1
      %p366 = por %p364, %p365
      %p367 = scmp.ne.s32.totalorder %s358, %s359
      %p368 = scmp.eq.s32.totalorder %s33, 0
      %p369 = por %p367, %p368
      %p370 = scmp.ne.s32.totalorder %s358, %s359
      %p371 = scmp.eq.s32.totalorder %s34, 1
      %p372 = por %p370, %p371
      %p374 = scmp.ne.s32.totalorder %s359, %s373
      %p375 = scmp.eq.s32.totalorder %s34, 0
      %p376 = por %p374, %p375
      %s378 = sadd.s32 %s377, 1
      %p381 = scmp.eq.s32.totalorder %s28, 1
      %p382 = scmp.ne.s32.totalorder %s377, %s379
      %p383 = scmp.eq.s32.totalorder %s28, 0
      %p384 = por %p382, %p383
      %p385 = scmp.ne.s32.totalorder %s377, %s379
      %p386 = scmp.eq.s32.totalorder %s33, 1
      %p387 = por %p385, %p386
      %p388 = scmp.ne.s32.totalorder %s379, %s380
      %p389 = scmp.eq.s32.totalorder %s33, 0
      %p390 = por %p388, %p389
      %p391 = scmp.ne.s32.totalorder %s379, %s380
      %p392 = scmp.eq.s32.totalorder %s34, 1
      %p393 = por %p391, %p392
      %p395 = scmp.ne.s32.totalorder %s380, %s394
      %p396 = scmp.eq.s32.totalorder %s34, 0
      %p397 = por %p395, %p396
      %s398 = ssub.s32 %s28, %s35
      %p399 = scmp.eq.s32.totalorder %s398, 0
      %s401 = sadd.s32 %s400, 1
      %s402 = scalar_select %p399, %s400, %s401
      %p405 = pneg %p399
      %p406 = scmp.eq.s32.totalorder %s28, 1
      %p407 = por %p405, %p406
      %p408 = scmp.ne.s32.totalorder %s400, %s403
      %p409 = scmp.eq.s32.totalorder %s28, 0
      %p410 = por %p408, %p409
      %p411 = scmp.ne.s32.totalorder %s400, %s403
      %p412 = scmp.eq.s32.totalorder %s33, 1
      %p413 = por %p411, %p412
      %p414 = scmp.ne.s32.totalorder %s403, %s404
      %p415 = scmp.eq.s32.totalorder %s33, 0
      %p416 = por %p414, %p415
      %p417 = scmp.ne.s32.totalorder %s403, %s404
      %p418 = scmp.eq.s32.totalorder %s34, 1
      %p419 = por %p417, %p418
      %p421 = scmp.ne.s32.totalorder %s404, %s420
      %p422 = scmp.eq.s32.totalorder %s34, 0
      %p423 = por %p421, %p422
      %s424 = ssub.s32 %s28, %s35
      %p425 = scmp.eq.s32.totalorder %s424, 0
      %s427 = sadd.s32 %s426, 1
      %s428 = scalar_select %p425, %s426, %s427
      %p431 = pneg %p425
      %p432 = scmp.eq.s32.totalorder %s28, 1
      %p433 = por %p431, %p432
      %p434 = scmp.ne.s32.totalorder %s426, %s429
      %p435 = scmp.eq.s32.totalorder %s28, 0
      %p436 = por %p434, %p435
      %p437 = scmp.ne.s32.totalorder %s426, %s429
      %p438 = scmp.eq.s32.totalorder %s33, 1
      %p439 = por %p437, %p438
      %p440 = scmp.ne.s32.totalorder %s429, %s430
      %p441 = scmp.eq.s32.totalorder %s33, 0
      %p442 = por %p440, %p441
      %p443 = scmp.ne.s32.totalorder %s429, %s430
      %p444 = scmp.eq.s32.totalorder %s34, 1
      %p445 = por %p443, %p444
      %p447 = scmp.ne.s32.totalorder %s430, %s446
      %p448 = scmp.eq.s32.totalorder %s34, 0
      %p449 = por %p447, %p448
      %p450 = scmp.le.s32.totalorder 1, %s28
      %p451 = scmp.lt.s32.totalorder %s28, 3
      %p452 = pnand %p450, %p451
      %p453 = pneg %p452
      // Predicated region
      $region9: #{dagmm_forward.1} parent=5 // pred_check
        _
      $region10: #{dagmm_forward.1} parent=5 // pred_check_branch
        %455 = sbr.rel (%p452) target = $region12
      $region11: #{dagmm_forward.1} parent=5 // pred_region
        %s456 = ssub.s32 %s28, 1
        // Predicated region
        $region13: #{dagmm_forward.1} parent=11 // pred_check
          %p457 = pneg %p75
        $region14: #{dagmm_forward.1} parent=11 // pred_check_branch
          %459 = sbr.rel (%p457) target = $region16
        $region15: #{dagmm_forward.1} parent=11 // pred_region
          _
        $region16: #{dagmm_forward.1} parent=11 // pred_fallthru
          _
        // Predicated region
        $region17: #{dagmm_forward.1} parent=11 // pred_check
          %p460 = pneg %p96
        $region18: #{dagmm_forward.1} parent=11 // pred_check_branch
          %462 = sbr.rel (%p460) target = $region20
        $region19: #{dagmm_forward.1} parent=11 // pred_region
          _
        $region20: #{dagmm_forward.1} parent=11 // pred_fallthru
          _
        // Predicated region
        $region21: #{dagmm_forward.1} parent=11 // pred_check
          %p463 = pneg %p117
        $region22: #{dagmm_forward.1} parent=11 // pred_check_branch
          %465 = sbr.rel (%p463) target = $region24
        $region23: #{dagmm_forward.1} parent=11 // pred_region
          _
        $region24: #{dagmm_forward.1} parent=11 // pred_fallthru
          _
        // Predicated region
        $region25: #{dagmm_forward.1} parent=11 // pred_check
          %p466 = pneg %p138
        $region26: #{dagmm_forward.1} parent=11 // pred_check_branch
          %468 = sbr.rel (%p466) target = $region28
        $region27: #{dagmm_forward.1} parent=11 // pred_region
          _
        $region28: #{dagmm_forward.1} parent=11 // pred_fallthru
          _
        // Predicated region
        $region29: #{dagmm_forward.1} parent=11 // pred_check
          %p469 = pneg %p159
        $region30: #{dagmm_forward.1} parent=11 // pred_check_branch
          %471 = sbr.rel (%p469) target = $region32
        $region31: #{dagmm_forward.1} parent=11 // pred_region
          _
        $region32: #{dagmm_forward.1} parent=11 // pred_fallthru
          _
        // Predicated region
        $region33: #{dagmm_forward.1} parent=11 // pred_check
          %p472 = pneg %p180
        $region34: #{dagmm_forward.1} parent=11 // pred_check_branch
          %474 = sbr.rel (%p472) target = $region36
        $region35: #{dagmm_forward.1} parent=11 // pred_region
          _
        $region36: #{dagmm_forward.1} parent=11 // pred_fallthru
          _
        // Predicated region
        $region37: #{dagmm_forward.1} parent=11 // pred_check
          %p475 = pneg %p201
        $region38: #{dagmm_forward.1} parent=11 // pred_check_branch
          %477 = sbr.rel (%p475) target = $region40
        $region39: #{dagmm_forward.1} parent=11 // pred_region
          _
        $region40: #{dagmm_forward.1} parent=11 // pred_fallthru
          _
        // Predicated region
        $region41: #{dagmm_forward.1} parent=11 // pred_check
          %p478 = pneg %p222
        $region42: #{dagmm_forward.1} parent=11 // pred_check_branch
          %480 = sbr.rel (%p478) target = $region44
        $region43: #{dagmm_forward.1} parent=11 // pred_region
          _
        $region44: #{dagmm_forward.1} parent=11 // pred_fallthru
          _
        // Predicated region
        $region45: #{dagmm_forward.1} parent=11 // pred_check
          %p481 = pneg %p243
        $region46: #{dagmm_forward.1} parent=11 // pred_check_branch
          %483 = sbr.rel (%p481) target = $region48
        $region47: #{dagmm_forward.1} parent=11 // pred_region
          _
        $region48: #{dagmm_forward.1} parent=11 // pred_fallthru
          _
        // Predicated region
        $region49: #{dagmm_forward.1} parent=11 // pred_check
          %p484 = pneg %p264
        $region50: #{dagmm_forward.1} parent=11 // pred_check_branch
          %486 = sbr.rel (%p484) target = $region52
        $region51: #{dagmm_forward.1} parent=11 // pred_region
          _
        $region52: #{dagmm_forward.1} parent=11 // pred_fallthru
          _
        // Predicated region
        $region53: #{dagmm_forward.1} parent=11 // pred_check
          %p487 = pneg %p285
        $region54: #{dagmm_forward.1} parent=11 // pred_check_branch
          %489 = sbr.rel (%p487) target = $region56
        $region55: #{dagmm_forward.1} parent=11 // pred_region
          _
        $region56: #{dagmm_forward.1} parent=11 // pred_fallthru
          _
        // Predicated region
        $region57: #{dagmm_forward.1} parent=11 // pred_check
          %p490 = pneg %p306
        $region58: #{dagmm_forward.1} parent=11 // pred_check_branch
          %492 = sbr.rel (%p490) target = $region60
        $region59: #{dagmm_forward.1} parent=11 // pred_region
          _
        $region60: #{dagmm_forward.1} parent=11 // pred_fallthru
          _
        // Predicated region
        $region61: #{dagmm_forward.1} parent=11 // pred_check
          %p493 = pneg %p327
        $region62: #{dagmm_forward.1} parent=11 // pred_check_branch
          %495 = sbr.rel (%p493) target = $region64
        $region63: #{dagmm_forward.1} parent=11 // pred_region
          _
        $region64: #{dagmm_forward.1} parent=11 // pred_fallthru
          _
        // Predicated region
        $region65: #{dagmm_forward.1} parent=11 // pred_check
          %p496 = pneg %p348
        $region66: #{dagmm_forward.1} parent=11 // pred_check_branch
          %498 = sbr.rel (%p496) target = $region68
        $region67: #{dagmm_forward.1} parent=11 // pred_region
          _
        $region68: #{dagmm_forward.1} parent=11 // pred_fallthru
          _
        // Predicated region
        $region69: #{dagmm_forward.1} parent=11 // pred_check
          %p499 = pneg %p369
        $region70: #{dagmm_forward.1} parent=11 // pred_check_branch
          %501 = sbr.rel (%p499) target = $region72
        $region71: #{dagmm_forward.1} parent=11 // pred_region
          _
        $region72: #{dagmm_forward.1} parent=11 // pred_fallthru
          _
        // Predicated region
        $region73: #{dagmm_forward.1} parent=11 // pred_check
          %p502 = pneg %p390
        $region74: #{dagmm_forward.1} parent=11 // pred_check_branch
          %504 = sbr.rel (%p502) target = $region76
        $region75: #{dagmm_forward.1} parent=11 // pred_region
          _
        $region76: #{dagmm_forward.1} parent=11 // pred_fallthru
          _
      $region12: #{dagmm_forward.1} parent=5 // pred_fallthru
        _
      %p505 = scmp.lt.s32.totalorder %s28, 2
      // Predicated region
      $region77: #{dagmm_forward.1} parent=5 // pred_check
        %p506 = pneg %p505
      $region78: #{dagmm_forward.1} parent=5 // pred_check_branch
        %508 = sbr.rel (%p506) target = $region80
      $region79: #{dagmm_forward.1} parent=5 // pred_region
        // Predicated region
        $region81: #{dagmm_forward.1} parent=79 // pred_check
          %p509 = pneg %p48
        $region82: #{dagmm_forward.1} parent=79 // pred_check_branch
          %511 = sbr.rel (%p509) target = $region84
        $region83: #{dagmm_forward.1} parent=79 // pred_region
          %s512 = smul.u32 32, %s28
          %p513 = scmp.lt.s32.totalorder %s512, 63
          %s514 = scalar_select %p513, %s512, 63
          %s515 = smul.addr %s514, 8
          %s516 = scalar_lea.vmem %s0, %s515
          %s517 = smul.u32 32, %s28
        $region84: #{dagmm_forward.1} parent=79 // pred_fallthru
          _
      $region80: #{dagmm_forward.1} parent=5 // pred_fallthru
        _
      %p518 = scmp.le.s32.totalorder 1, %s28
      %p519 = scmp.lt.s32.totalorder %s28, 3
      %p520 = pnand %p518, %p519
      %p521 = pneg %p520
      // Predicated region
      $region85: #{dagmm_forward.1} parent=5 // pred_check
        _
      $region86: #{dagmm_forward.1} parent=5 // pred_check_branch
        %523 = sbr.rel (%p520) target = $region88
      $region87: #{dagmm_forward.1} parent=5 // pred_region
        %s524 = ssub.s32 %s28, 1
        %s525 = smul.u32 32, %s33
        %p526 = scmp.lt.s32.totalorder %s525, 63
        %s527 = scalar_select %p526, %s525, 63
        %s528 = smul.addr %s527, 8
        %s529 = scalar_lea.vmem %s0, %s528
        %p530 = pneg %p54
        %p531 = pneg %p51
        %p532 = pneg %p75
        %p533 = pneg %p72
        %p534 = pneg %p96
        %p535 = pneg %p93
        %p536 = pneg %p117
        %p537 = pneg %p114
        %p538 = pneg %p138
        %p539 = pneg %p135
        %p540 = pneg %p159
        %p541 = pneg %p156
        %p542 = pneg %p180
        %p543 = pneg %p177
        %p544 = pneg %p201
        %p545 = pneg %p198
        %p546 = pneg %p222
        %p547 = pneg %p219
        %p548 = pneg %p243
        %p549 = pneg %p240
        %p550 = pneg %p264
        %p551 = pneg %p261
        %p552 = pneg %p285
        %p553 = pneg %p282
        %p554 = pneg %p306
        %p555 = pneg %p303
        %p556 = pneg %p327
        %p557 = pneg %p324
        %p558 = pneg %p348
        %p559 = pneg %p345
        %p560 = pneg %p369
        %p561 = pneg %p366
        %p562 = pneg %p390
        %p563 = pneg %p387
        %p564 = pneg %p416
        %p565 = pneg %p413
        %s566 = sand.u32 %s403, 1
        %s567 = scalar_lea.sflag [#allocation3], %s566
        %s568 = sand.u32 %s403, 1
        %s569 = smul.addr %s568, 32
        %s570 = scalar_lea.vmem [#allocation2], %s569
        %p571 = pneg %p442
        %p572 = pneg %p439
        %s573 = smul.u32 2, %s33
        %p574 = scmp.lt.s32.totalorder %s573, 3
        %s575 = scalar_select %p574, %s573, 3
        %s576 = smul.addr %s575, 8
        %s577 = scalar_lea.vmem %s18, %s576
        %s578 = smul.u32 32, %s33
        %p579 = scmp.lt.s32.totalorder %s578, 63
        %s580 = scalar_select %p579, %s578, 63
        %s581 = smul.addr %s580, 8
        %s582 = scalar_lea.vmem %s0, %s581
        %s583 = smul.u32 32, %s33
        %s584 = smul.u32 2, %s33
        %s585 = smul.u32 2, %s33
        %p586 = scmp.lt.s32.totalorder %s585, 3
        %s587 = scalar_select %p586, %s585, 3
        %s588 = smul.addr %s587, 8
        %s589 = scalar_lea.vmem %s18, %s588
        %s590 = smul.u32 2, %s33
        %v591 = vld [vmem:[%s582] sm:$0xff]
        %v592 = vld [vmem:[%s582 + $0x8] sm:$0xff]
        %v593 = vld [vmem:[%s582 + $0x10] sm:$0xff]
        %v594 = vld [vmem:[%s582 + $0x18] sm:$0xff]
        %v595 = vld [vmem:[%s582 + $0x20] sm:$0xff]
        %v596 = vld [vmem:[%s582 + $0x28] sm:$0xff]
        %v597 = vld [vmem:[%s582 + $0x30] sm:$0xff]
        %v598 = vld [vmem:[%s582 + $0x38] sm:$0xff]
        %v599 = vld [vmem:[%s582 + $0x40] sm:$0xff]
        %v600 = vld [vmem:[%s582 + $0x48] sm:$0xff]
        %v601 = vld [vmem:[%s582 + $0x50] sm:$0xff]
        %v602 = vld [vmem:[%s582 + $0x58] sm:$0xff]
        %v603 = vld [vmem:[%s582 + $0x60] sm:$0xff]
        %v604 = vld [vmem:[%s582 + $0x68] sm:$0xff]
        %v605 = vld [vmem:[%s582 + $0x70] sm:$0xff]
        %v606 = vld [vmem:[%s582 + $0x78] sm:$0xff]
        %v607 = vld [vmem:[%s582 + $0x80] sm:$0xff]
        %v608 = vld [vmem:[%s582 + $0x88] sm:$0xff]
        %v609 = vld [vmem:[%s582 + $0x90] sm:$0xff]
        %v610 = vld [vmem:[%s582 + $0x98] sm:$0xff]
        %v611 = vld [vmem:[%s582 + $0xa0] sm:$0xff]
        %v612 = vld [vmem:[%s582 + $0xa8] sm:$0xff]
        %v613 = vld [vmem:[%s582 + $0xb0] sm:$0xff]
        %v614 = vld [vmem:[%s582 + $0xb8] sm:$0xff]
        %v615 = vld [vmem:[%s582 + $0xc0] sm:$0xff]
        %v616 = vld [vmem:[%s582 + $0xc8] sm:$0xff]
        %v617 = vld [vmem:[%s582 + $0xd0] sm:$0xff]
        %v618 = vld [vmem:[%s582 + $0xd8] sm:$0xff]
        %v619 = vld [vmem:[%s582 + $0xe0] sm:$0xff]
        %v620 = vld [vmem:[%s582 + $0xe8] sm:$0xff]
        %v621 = vld [vmem:[%s582 + $0xf0] sm:$0xff]
        %v622 = vld [vmem:[%s582 + $0xf8] sm:$0xff]
        %v623 = vlaneseq
        %v624 = vshrl.u32 %v623, 7
        %v625 = vadd.s32 %v624, 8
        %v626 = vlaneseq
        %v627 = vand.u32 %v626, 127
        %vm628 = vcmp.eq.s32.totalorder %v624, %v627
        %vm629 = vcmp.eq.s32.totalorder %v625, %v627
        %v630 = vsel %vm628, 1, 0
        %v631 = vsel %vm629, 1, 0
        %v632 = vcvt.s32.f32 %v630
        %v633 = vcvt.s32.f32 %v631
        %vm634 = vcmask 130048
        %v636 = vsel %vm634, %v632, 0
        %v639 = vsel %vm634, %v633, 0
        %v642 = vsel %vm634, %v591, 0
        %v645 = vsel %vm634, %v592, 0
        %v648 = vsel %vm634, %v593, 0
        %v651 = vsel %vm634, %v594, 0
        %v654 = vsel %vm634, %v595, 0
        %v657 = vsel %vm634, %v596, 0
        %v660 = vsel %vm634, %v597, 0
        %v663 = vsel %vm634, %v598, 0
        %v666 = vsel %vm634, %v599, 0
        %v669 = vsel %vm634, %v600, 0
        %v672 = vsel %vm634, %v601, 0
        %v675 = vsel %vm634, %v602, 0
        %v678 = vsel %vm634, %v603, 0
        %v681 = vsel %vm634, %v604, 0
        %v684 = vsel %vm634, %v605, 0
        %v687 = vsel %vm634, %v606, 0
        %v690 = vsel %vm634, %v607, 0
        %v693 = vsel %vm634, %v608, 0
        %v696 = vsel %vm634, %v609, 0
        %v699 = vsel %vm634, %v610, 0
        %v702 = vsel %vm634, %v611, 0
        %v705 = vsel %vm634, %v612, 0
        %v708 = vsel %vm634, %v613, 0
        %v711 = vsel %vm634, %v614, 0
        %v714 = vsel %vm634, %v615, 0
        %v717 = vsel %vm634, %v616, 0
        %v720 = vsel %vm634, %v617, 0
        %v723 = vsel %vm634, %v618, 0
        %v726 = vsel %vm634, %v619, 0
        %v729 = vsel %vm634, %v620, 0
        %v732 = vsel %vm634, %v621, 0
        %v735 = vsel %vm634, %v622, 0
        %737 = vmatprep.subr.mxu0 0.0
        %v738 = vand.u32 %v687, 4294901760
        %739 = vmatpush1.xpose.msra.mxu0 %v738
        %740 = vmatprep.subr.mxu0 0.0
        %v741 = vand.u32 %v684, 4294901760
        %742 = vmatpush1.xpose.msra.mxu0 %v741
        %743 = vmatprep.subr.mxu0 0.0
        %v744 = vand.u32 %v681, 4294901760
        %745 = vmatpush1.xpose.msra.mxu0 %v744
        %746 = vmatprep.subr.mxu0 0.0
        %v747 = vand.u32 %v678, 4294901760
        %748 = vmatpush1.xpose.msra.mxu0 %v747
        %749 = vmatprep.subr.mxu0 0.0
        %v750 = vand.u32 %v675, 4294901760
        %751 = vmatpush1.xpose.msra.mxu0 %v750
        %752 = vmatprep.subr.mxu0 0.0
        %v753 = vand.u32 %v672, 4294901760
        %754 = vmatpush1.xpose.msra.mxu0 %v753
        %755 = vmatprep.subr.mxu0 0.0
        %v756 = vand.u32 %v669, 4294901760
        %757 = vmatpush1.xpose.msra.mxu0 %v756
        %758 = vmatprep.subr.mxu0 0.0
        %v759 = vand.u32 %v666, 4294901760
        %760 = vmatpush1.xpose.msra.mxu0 %v759
        %761 = vmatprep.subr.mxu0 0.0
        %v762 = vand.u32 %v663, 4294901760
        %763 = vmatpush1.xpose.msra.mxu0 %v762
        %764 = vmatprep.subr.mxu0 0.0
        %v765 = vand.u32 %v660, 4294901760
        %766 = vmatpush1.xpose.msra.mxu0 %v765
        %767 = vmatprep.subr.mxu0 0.0
        %v768 = vand.u32 %v657, 4294901760
        %769 = vmatpush1.xpose.msra.mxu0 %v768
        %770 = vmatprep.subr.mxu0 0.0
        %v771 = vand.u32 %v654, 4294901760
        %772 = vmatpush1.xpose.msra.mxu0 %v771
        %773 = vmatprep.subr.mxu0 0.0
        %v774 = vand.u32 %v651, 4294901760
        %775 = vmatpush1.xpose.msra.mxu0 %v774
        %776 = vmatprep.subr.mxu0 0.0
        %v777 = vand.u32 %v648, 4294901760
        %778 = vmatpush1.xpose.msra.mxu0 %v777
        %779 = vmatprep.subr.mxu0 0.0
        %v780 = vand.u32 %v645, 4294901760
        %781 = vmatpush1.xpose.msra.mxu0 %v780
        %782 = vmatprep.subr.mxu0 0.0
        %v783 = vand.u32 %v642, 4294901760
        %784 = vmatpush1.xpose.msra.mxu0 %v783
        %785 = vmatprep.subr.mxu0 0.0
        %v786 = vand.u32 %v735, 4294901760
        %787 = vmatpush2.xpose.msra.mxu0 %v786
        %788 = vmatprep.subr.mxu0 0.0
        %v789 = vand.u32 %v732, 4294901760
        %790 = vmatpush2.xpose.msra.mxu0 %v789
        %791 = vmatprep.subr.mxu0 0.0
        %v792 = vand.u32 %v729, 4294901760
        %793 = vmatpush2.xpose.msra.mxu0 %v792
        %794 = vmatprep.subr.mxu0 0.0
        %v795 = vand.u32 %v726, 4294901760
        %796 = vmatpush2.xpose.msra.mxu0 %v795
        %797 = vmatprep.subr.mxu0 0.0
        %v798 = vand.u32 %v723, 4294901760
        %799 = vmatpush2.xpose.msra.mxu0 %v798
        %800 = vmatprep.subr.mxu0 0.0
        %v801 = vand.u32 %v720, 4294901760
        %802 = vmatpush2.xpose.msra.mxu0 %v801
        %803 = vmatprep.subr.mxu0 0.0
        %v804 = vand.u32 %v717, 4294901760
        %805 = vmatpush2.xpose.msra.mxu0 %v804
        %806 = vmatprep.subr.mxu0 0.0
        %v807 = vand.u32 %v714, 4294901760
        %808 = vmatpush2.xpose.msra.mxu0 %v807
        %809 = vmatprep.subr.mxu0 0.0
        %v810 = vand.u32 %v711, 4294901760
        %811 = vmatpush2.xpose.msra.mxu0 %v810
        %812 = vmatprep.subr.mxu0 0.0
        %v813 = vand.u32 %v708, 4294901760
        %814 = vmatpush2.xpose.msra.mxu0 %v813
        %815 = vmatprep.subr.mxu0 0.0
        %v816 = vand.u32 %v705, 4294901760
        %817 = vmatpush2.xpose.msra.mxu0 %v816
        %818 = vmatprep.subr.mxu0 0.0
        %v819 = vand.u32 %v702, 4294901760
        %820 = vmatpush2.xpose.msra.mxu0 %v819
        %821 = vmatprep.subr.mxu0 0.0
        %v822 = vand.u32 %v699, 4294901760
        %823 = vmatpush2.xpose.msra.mxu0 %v822
        %824 = vmatprep.subr.mxu0 0.0
        %v825 = vand.u32 %v696, 4294901760
        %826 = vmatpush2.xpose.msra.mxu0 %v825
        %827 = vmatprep.subr.mxu0 0.0
        %v828 = vand.u32 %v693, 4294901760
        %829 = vmatpush2.xpose.msra.mxu0 %v828
        %830 = vmatprep.subr.mxu0 0.0
        %v831 = vand.u32 %v690, 4294901760
        %832 = vmatpush2.xpose.msra.mxu0 %v831
        %833 = vmatprep.mubr.f32.mxu0 0.0
        %v834 = vand.u32 %v636, 4294901760
        %v835 = vsub.f32 %v636, %v834
        %v836 = vand.u32 %v835, 4294901760
        %v837 = vsub.f32 %v835, %v836
        %v838 = vand.u32 %v837, 4294901760
        %839 = vmatmul.mubr.f32.gmra.mxu0 %v838
        %v840 = vpop.f32.mrf.mxu0
        %v841 = vadd.f32 0.0, %v840
        %v842 = vpop.f32.mrf.mxu0
        %v843 = vadd.f32 0.0, %v842
        %844 = vmatprep.mubr.f32.mxu0 0.0
        %v845 = vand.u32 %v639, 4294901760
        %v846 = vsub.f32 %v639, %v845
        %v847 = vand.u32 %v846, 4294901760
        %v848 = vsub.f32 %v846, %v847
        %v849 = vand.u32 %v848, 4294901760
        %850 = vmatmul.mubr.f32.gmra.mxu0 %v849
        %v851 = vpop.f32.mrf.mxu0
        %v852 = vadd.f32 0.0, %v851
        %v853 = vpop.f32.mrf.mxu0
        %v854 = vadd.f32 0.0, %v853
        %855 = vdwg.mxu0
        %856 = vmatprep.subr.mxu0 0.0
        %v857 = vand.u32 %v687, 4294901760
        %v858 = vsub.f32 %v687, %v857
        %v859 = vand.u32 %v858, 4294901760
        %v860 = vsub.f32 %v858, %v859
        %v861 = vand.u32 %v860, 4294901760
        %862 = vmatpush1.xpose.msra.mxu0 %v861
        %863 = vmatprep.subr.mxu0 0.0
        %v864 = vand.u32 %v684, 4294901760
        %v865 = vsub.f32 %v684, %v864
        %v866 = vand.u32 %v865, 4294901760
        %v867 = vsub.f32 %v865, %v866
        %v868 = vand.u32 %v867, 4294901760
        %869 = vmatpush1.xpose.msra.mxu0 %v868
        %870 = vmatprep.subr.mxu0 0.0
        %v871 = vand.u32 %v681, 4294901760
        %v872 = vsub.f32 %v681, %v871
        %v873 = vand.u32 %v872, 4294901760
        %v874 = vsub.f32 %v872, %v873
        %v875 = vand.u32 %v874, 4294901760
        %876 = vmatpush1.xpose.msra.mxu0 %v875
        %877 = vmatprep.subr.mxu0 0.0
        %v878 = vand.u32 %v678, 4294901760
        %v879 = vsub.f32 %v678, %v878
        %v880 = vand.u32 %v879, 4294901760
        %v881 = vsub.f32 %v879, %v880
        %v882 = vand.u32 %v881, 4294901760
        %883 = vmatpush1.xpose.msra.mxu0 %v882
        %884 = vmatprep.subr.mxu0 0.0
        %v885 = vand.u32 %v675, 4294901760
        %v886 = vsub.f32 %v675, %v885
        %v887 = vand.u32 %v886, 4294901760
        %v888 = vsub.f32 %v886, %v887
        %v889 = vand.u32 %v888, 4294901760
        %890 = vmatpush1.xpose.msra.mxu0 %v889
        %891 = vmatprep.subr.mxu0 0.0
        %v892 = vand.u32 %v672, 4294901760
        %v893 = vsub.f32 %v672, %v892
        %v894 = vand.u32 %v893, 4294901760
        %v895 = vsub.f32 %v893, %v894
        %v896 = vand.u32 %v895, 4294901760
        %897 = vmatpush1.xpose.msra.mxu0 %v896
        %898 = vmatprep.subr.mxu0 0.0
        %v899 = vand.u32 %v669, 4294901760
        %v900 = vsub.f32 %v669, %v899
        %v901 = vand.u32 %v900, 4294901760
        %v902 = vsub.f32 %v900, %v901
        %v903 = vand.u32 %v902, 4294901760
        %904 = vmatpush1.xpose.msra.mxu0 %v903
        %905 = vmatprep.subr.mxu0 0.0
        %v906 = vand.u32 %v666, 4294901760
        %v907 = vsub.f32 %v666, %v906
        %v908 = vand.u32 %v907, 4294901760
        %v909 = vsub.f32 %v907, %v908
        %v910 = vand.u32 %v909, 4294901760
        %911 = vmatpush1.xpose.msra.mxu0 %v910
        %912 = vmatprep.subr.mxu0 0.0
        %v913 = vand.u32 %v663, 4294901760
        %v914 = vsub.f32 %v663, %v913
        %v915 = vand.u32 %v914, 4294901760
        %v916 = vsub.f32 %v914, %v915
        %v917 = vand.u32 %v916, 4294901760
        %918 = vmatpush1.xpose.msra.mxu0 %v917
        %919 = vmatprep.subr.mxu0 0.0
        %v920 = vand.u32 %v660, 4294901760
        %v921 = vsub.f32 %v660, %v920
        %v922 = vand.u32 %v921, 4294901760
        %v923 = vsub.f32 %v921, %v922
        %v924 = vand.u32 %v923, 4294901760
        %925 = vmatpush1.xpose.msra.mxu0 %v924
        %926 = vmatprep.subr.mxu0 0.0
        %v927 = vand.u32 %v657, 4294901760
        %v928 = vsub.f32 %v657, %v927
        %v929 = vand.u32 %v928, 4294901760
        %v930 = vsub.f32 %v928, %v929
        %v931 = vand.u32 %v930, 4294901760
        %932 = vmatpush1.xpose.msra.mxu0 %v931
        %933 = vmatprep.subr.mxu0 0.0
        %v934 = vand.u32 %v654, 4294901760
        %v935 = vsub.f32 %v654, %v934
        %v936 = vand.u32 %v935, 4294901760
        %v937 = vsub.f32 %v935, %v936
        %v938 = vand.u32 %v937, 4294901760
        %939 = vmatpush1.xpose.msra.mxu0 %v938
        %940 = vmatprep.subr.mxu0 0.0
        %v941 = vand.u32 %v651, 4294901760
        %v942 = vsub.f32 %v651, %v941
        %v943 = vand.u32 %v942, 4294901760
        %v944 = vsub.f32 %v942, %v943
        %v945 = vand.u32 %v944, 4294901760
        %946 = vmatpush1.xpose.msra.mxu0 %v945
        %947 = vmatprep.subr.mxu0 0.0
        %v948 = vand.u32 %v648, 4294901760
        %v949 = vsub.f32 %v648, %v948
        %v950 = vand.u32 %v949, 4294901760
        %v951 = vsub.f32 %v949, %v950
        %v952 = vand.u32 %v951, 4294901760
        %953 = vmatpush1.xpose.msra.mxu0 %v952
        %954 = vmatprep.subr.mxu0 0.0
        %v955 = vand.u32 %v645, 4294901760
        %v956 = vsub.f32 %v645, %v955
        %v957 = vand.u32 %v956, 4294901760
        %v958 = vsub.f32 %v956, %v957
        %v959 = vand.u32 %v958, 4294901760
        %960 = vmatpush1.xpose.msra.mxu0 %v959
        %961 = vmatprep.subr.mxu0 0.0
        %v962 = vand.u32 %v642, 4294901760
        %v963 = vsub.f32 %v642, %v962
        %v964 = vand.u32 %v963, 4294901760
        %v965 = vsub.f32 %v963, %v964
        %v966 = vand.u32 %v965, 4294901760
        %967 = vmatpush1.xpose.msra.mxu0 %v966
        %968 = vmatprep.subr.mxu0 0.0
        %v969 = vand.u32 %v735, 4294901760
        %v970 = vsub.f32 %v735, %v969
        %v971 = vand.u32 %v970, 4294901760
        %v972 = vsub.f32 %v970, %v971
        %v973 = vand.u32 %v972, 4294901760
        %974 = vmatpush2.xpose.msra.mxu0 %v973
        %975 = vmatprep.subr.mxu0 0.0
        %v976 = vand.u32 %v732, 4294901760
        %v977 = vsub.f32 %v732, %v976
        %v978 = vand.u32 %v977, 4294901760
        %v979 = vsub.f32 %v977, %v978
        %v980 = vand.u32 %v979, 4294901760
        %981 = vmatpush2.xpose.msra.mxu0 %v980
        %982 = vmatprep.subr.mxu0 0.0
        %v983 = vand.u32 %v729, 4294901760
        %v984 = vsub.f32 %v729, %v983
        %v985 = vand.u32 %v984, 4294901760
        %v986 = vsub.f32 %v984, %v985
        %v987 = vand.u32 %v986, 4294901760
        %988 = vmatpush2.xpose.msra.mxu0 %v987
        %989 = vmatprep.subr.mxu0 0.0
        %v990 = vand.u32 %v726, 4294901760
        %v991 = vsub.f32 %v726, %v990
        %v992 = vand.u32 %v991, 4294901760
        %v993 = vsub.f32 %v991, %v992
        %v994 = vand.u32 %v993, 4294901760
        %995 = vmatpush2.xpose.msra.mxu0 %v994
        %996 = vmatprep.subr.mxu0 0.0
        %v997 = vand.u32 %v723, 4294901760
        %v998 = vsub.f32 %v723, %v997
        %v999 = vand.u32 %v998, 4294901760
        %v1000 = vsub.f32 %v998, %v999
        %v1001 = vand.u32 %v1000, 4294901760
        %1002 = vmatpush2.xpose.msra.mxu0 %v1001
        %1003 = vmatprep.subr.mxu0 0.0
        %v1004 = vand.u32 %v720, 4294901760
        %v1005 = vsub.f32 %v720, %v1004
        %v1006 = vand.u32 %v1005, 4294901760
        %v1007 = vsub.f32 %v1005, %v1006
        %v1008 = vand.u32 %v1007, 4294901760
        %1009 = vmatpush2.xpose.msra.mxu0 %v1008
        %1010 = vmatprep.subr.mxu0 0.0
        %v1011 = vand.u32 %v717, 4294901760
        %v1012 = vsub.f32 %v717, %v1011
        %v1013 = vand.u32 %v1012, 4294901760
        %v1014 = vsub.f32 %v1012, %v1013
        %v1015 = vand.u32 %v1014, 4294901760
        %1016 = vmatpush2.xpose.msra.mxu0 %v1015
        %1017 = vmatprep.subr.mxu0 0.0
        %v1018 = vand.u32 %v714, 4294901760
        %v1019 = vsub.f32 %v714, %v1018
        %v1020 = vand.u32 %v1019, 4294901760
        %v1021 = vsub.f32 %v1019, %v1020
        %v1022 = vand.u32 %v1021, 4294901760
        %1023 = vmatpush2.xpose.msra.mxu0 %v1022
        %1024 = vmatprep.subr.mxu0 0.0
        %v1025 = vand.u32 %v711, 4294901760
        %v1026 = vsub.f32 %v711, %v1025
        %v1027 = vand.u32 %v1026, 4294901760
        %v1028 = vsub.f32 %v1026, %v1027
        %v1029 = vand.u32 %v1028, 4294901760
        %1030 = vmatpush2.xpose.msra.mxu0 %v1029
        %1031 = vmatprep.subr.mxu0 0.0
        %v1032 = vand.u32 %v708, 4294901760
        %v1033 = vsub.f32 %v708, %v1032
        %v1034 = vand.u32 %v1033, 4294901760
        %v1035 = vsub.f32 %v1033, %v1034
        %v1036 = vand.u32 %v1035, 4294901760
        %1037 = vmatpush2.xpose.msra.mxu0 %v1036
        %1038 = vmatprep.subr.mxu0 0.0
        %v1039 = vand.u32 %v705, 4294901760
        %v1040 = vsub.f32 %v705, %v1039
        %v1041 = vand.u32 %v1040, 4294901760
        %v1042 = vsub.f32 %v1040, %v1041
        %v1043 = vand.u32 %v1042, 4294901760
        %1044 = vmatpush2.xpose.msra.mxu0 %v1043
        %1045 = vmatprep.subr.mxu0 0.0
        %v1046 = vand.u32 %v702, 4294901760
        %v1047 = vsub.f32 %v702, %v1046
        %v1048 = vand.u32 %v1047, 4294901760
        %v1049 = vsub.f32 %v1047, %v1048
        %v1050 = vand.u32 %v1049, 4294901760
        %1051 = vmatpush2.xpose.msra.mxu0 %v1050
        %1052 = vmatprep.subr.mxu0 0.0
        %v1053 = vand.u32 %v699, 4294901760
        %v1054 = vsub.f32 %v699, %v1053
        %v1055 = vand.u32 %v1054, 4294901760
        %v1056 = vsub.f32 %v1054, %v1055
        %v1057 = vand.u32 %v1056, 4294901760
        %1058 = vmatpush2.xpose.msra.mxu0 %v1057
        %1059 = vmatprep.subr.mxu0 0.0
        %v1060 = vand.u32 %v696, 4294901760
        %v1061 = vsub.f32 %v696, %v1060
        %v1062 = vand.u32 %v1061, 4294901760
        %v1063 = vsub.f32 %v1061, %v1062
        %v1064 = vand.u32 %v1063, 4294901760
        %1065 = vmatpush2.xpose.msra.mxu0 %v1064
        %1066 = vmatprep.subr.mxu0 0.0
        %v1067 = vand.u32 %v693, 4294901760
        %v1068 = vsub.f32 %v693, %v1067
        %v1069 = vand.u32 %v1068, 4294901760
        %v1070 = vsub.f32 %v1068, %v1069
        %v1071 = vand.u32 %v1070, 4294901760
        %1072 = vmatpush2.xpose.msra.mxu0 %v1071
        %1073 = vmatprep.subr.mxu0 0.0
        %v1074 = vand.u32 %v690, 4294901760
        %v1075 = vsub.f32 %v690, %v1074
        %v1076 = vand.u32 %v1075, 4294901760
        %v1077 = vsub.f32 %v1075, %v1076
        %v1078 = vand.u32 %v1077, 4294901760
        %1079 = vmatpush2.xpose.msra.mxu0 %v1078
        %1080 = vmatprep.mubr.f32.mxu0 0.0
        %v1081 = vand.u32 %v636, 4294901760
        %1082 = vmatmul.mubr.f32.gmra.mxu0 %v1081
        %v1083 = vpop.f32.mrf.mxu0
        %v1084 = vadd.f32 %v841, %v1083
        %v1085 = vpop.f32.mrf.mxu0
        %v1086 = vadd.f32 %v843, %v1085
        %1087 = vmatprep.mubr.f32.mxu0 0.0
        %v1088 = vand.u32 %v639, 4294901760
        %1089 = vmatmul.mubr.f32.gmra.mxu0 %v1088
        %v1090 = vpop.f32.mrf.mxu0
        %v1091 = vadd.f32 %v852, %v1090
        %v1092 = vpop.f32.mrf.mxu0
        %v1093 = vadd.f32 %v854, %v1092
        %1094 = vdwg.mxu0
        %1095 = vmatprep.subr.mxu0 0.0
        %v1096 = vand.u32 %v687, 4294901760
        %v1097 = vsub.f32 %v687, %v1096
        %1098 = vmatpush1.xpose.msra.mxu0 %v1097
        %1099 = vmatprep.subr.mxu0 0.0
        %v1100 = vand.u32 %v684, 4294901760
        %v1101 = vsub.f32 %v684, %v1100
        %1102 = vmatpush1.xpose.msra.mxu0 %v1101
        %1103 = vmatprep.subr.mxu0 0.0
        %v1104 = vand.u32 %v681, 4294901760
        %v1105 = vsub.f32 %v681, %v1104
        %1106 = vmatpush1.xpose.msra.mxu0 %v1105
        %1107 = vmatprep.subr.mxu0 0.0
        %v1108 = vand.u32 %v678, 4294901760
        %v1109 = vsub.f32 %v678, %v1108
        %1110 = vmatpush1.xpose.msra.mxu0 %v1109
        %1111 = vmatprep.subr.mxu0 0.0
        %v1112 = vand.u32 %v675, 4294901760
        %v1113 = vsub.f32 %v675, %v1112
        %1114 = vmatpush1.xpose.msra.mxu0 %v1113
        %1115 = vmatprep.subr.mxu0 0.0
        %v1116 = vand.u32 %v672, 4294901760
        %v1117 = vsub.f32 %v672, %v1116
        %1118 = vmatpush1.xpose.msra.mxu0 %v1117
        %1119 = vmatprep.subr.mxu0 0.0
        %v1120 = vand.u32 %v669, 4294901760
        %v1121 = vsub.f32 %v669, %v1120
        %1122 = vmatpush1.xpose.msra.mxu0 %v1121
        %1123 = vmatprep.subr.mxu0 0.0
        %v1124 = vand.u32 %v666, 4294901760
        %v1125 = vsub.f32 %v666, %v1124
        %1126 = vmatpush1.xpose.msra.mxu0 %v1125
        %1127 = vmatprep.subr.mxu0 0.0
        %v1128 = vand.u32 %v663, 4294901760
        %v1129 = vsub.f32 %v663, %v1128
        %1130 = vmatpush1.xpose.msra.mxu0 %v1129
        %1131 = vmatprep.subr.mxu0 0.0
        %v1132 = vand.u32 %v660, 4294901760
        %v1133 = vsub.f32 %v660, %v1132
        %1134 = vmatpush1.xpose.msra.mxu0 %v1133
        %1135 = vmatprep.subr.mxu0 0.0
        %v1136 = vand.u32 %v657, 4294901760
        %v1137 = vsub.f32 %v657, %v1136
        %1138 = vmatpush1.xpose.msra.mxu0 %v1137
        %1139 = vmatprep.subr.mxu0 0.0
        %v1140 = vand.u32 %v654, 4294901760
        %v1141 = vsub.f32 %v654, %v1140
        %1142 = vmatpush1.xpose.msra.mxu0 %v1141
        %1143 = vmatprep.subr.mxu0 0.0
        %v1144 = vand.u32 %v651, 4294901760
        %v1145 = vsub.f32 %v651, %v1144
        %1146 = vmatpush1.xpose.msra.mxu0 %v1145
        %1147 = vmatprep.subr.mxu0 0.0
        %v1148 = vand.u32 %v648, 4294901760
        %v1149 = vsub.f32 %v648, %v1148
        %1150 = vmatpush1.xpose.msra.mxu0 %v1149
        %1151 = vmatprep.subr.mxu0 0.0
        %v1152 = vand.u32 %v645, 4294901760
        %v1153 = vsub.f32 %v645, %v1152
        %1154 = vmatpush1.xpose.msra.mxu0 %v1153
        %1155 = vmatprep.subr.mxu0 0.0
        %v1156 = vand.u32 %v642, 4294901760
        %v1157 = vsub.f32 %v642, %v1156
        %1158 = vmatpush1.xpose.msra.mxu0 %v1157
        %1159 = vmatprep.subr.mxu0 0.0
        %v1160 = vand.u32 %v735, 4294901760
        %v1161 = vsub.f32 %v735, %v1160
        %1162 = vmatpush2.xpose.msra.mxu0 %v1161
        %1163 = vmatprep.subr.mxu0 0.0
        %v1164 = vand.u32 %v732, 4294901760
        %v1165 = vsub.f32 %v732, %v1164
        %1166 = vmatpush2.xpose.msra.mxu0 %v1165
        %1167 = vmatprep.subr.mxu0 0.0
        %v1168 = vand.u32 %v729, 4294901760
        %v1169 = vsub.f32 %v729, %v1168
        %1170 = vmatpush2.xpose.msra.mxu0 %v1169
        %1171 = vmatprep.subr.mxu0 0.0
        %v1172 = vand.u32 %v726, 4294901760
        %v1173 = vsub.f32 %v726, %v1172
        %1174 = vmatpush2.xpose.msra.mxu0 %v1173
        %1175 = vmatprep.subr.mxu0 0.0
        %v1176 = vand.u32 %v723, 4294901760
        %v1177 = vsub.f32 %v723, %v1176
        %1178 = vmatpush2.xpose.msra.mxu0 %v1177
        %1179 = vmatprep.subr.mxu0 0.0
        %v1180 = vand.u32 %v720, 4294901760
        %v1181 = vsub.f32 %v720, %v1180
        %1182 = vmatpush2.xpose.msra.mxu0 %v1181
        %1183 = vmatprep.subr.mxu0 0.0
        %v1184 = vand.u32 %v717, 4294901760
        %v1185 = vsub.f32 %v717, %v1184
        %1186 = vmatpush2.xpose.msra.mxu0 %v1185
        %1187 = vmatprep.subr.mxu0 0.0
        %v1188 = vand.u32 %v714, 4294901760
        %v1189 = vsub.f32 %v714, %v1188
        %1190 = vmatpush2.xpose.msra.mxu0 %v1189
        %1191 = vmatprep.subr.mxu0 0.0
        %v1192 = vand.u32 %v711, 4294901760
        %v1193 = vsub.f32 %v711, %v1192
        %1194 = vmatpush2.xpose.msra.mxu0 %v1193
        %1195 = vmatprep.subr.mxu0 0.0
        %v1196 = vand.u32 %v708, 4294901760
        %v1197 = vsub.f32 %v708, %v1196
        %1198 = vmatpush2.xpose.msra.mxu0 %v1197
        %1199 = vmatprep.subr.mxu0 0.0
        %v1200 = vand.u32 %v705, 4294901760
        %v1201 = vsub.f32 %v705, %v1200
        %1202 = vmatpush2.xpose.msra.mxu0 %v1201
        %1203 = vmatprep.subr.mxu0 0.0
        %v1204 = vand.u32 %v702, 4294901760
        %v1205 = vsub.f32 %v702, %v1204
        %1206 = vmatpush2.xpose.msra.mxu0 %v1205
        %1207 = vmatprep.subr.mxu0 0.0
        %v1208 = vand.u32 %v699, 4294901760
        %v1209 = vsub.f32 %v699, %v1208
        %1210 = vmatpush2.xpose.msra.mxu0 %v1209
        %1211 = vmatprep.subr.mxu0 0.0
        %v1212 = vand.u32 %v696, 4294901760
        %v1213 = vsub.f32 %v696, %v1212
        %1214 = vmatpush2.xpose.msra.mxu0 %v1213
        %1215 = vmatprep.subr.mxu0 0.0
        %v1216 = vand.u32 %v693, 4294901760
        %v1217 = vsub.f32 %v693, %v1216
        %1218 = vmatpush2.xpose.msra.mxu0 %v1217
        %1219 = vmatprep.subr.mxu0 0.0
        %v1220 = vand.u32 %v690, 4294901760
        %v1221 = vsub.f32 %v690, %v1220
        %1222 = vmatpush2.xpose.msra.mxu0 %v1221
        %1223 = vmatprep.mubr.f32.mxu0 0.0
        %v1224 = vand.u32 %v636, 4294901760
        %v1225 = vsub.f32 %v636, %v1224
        %1226 = vmatmul.mubr.f32.gmra.mxu0 %v1225
        %v1227 = vpop.f32.mrf.mxu0
        %v1228 = vadd.f32 %v1084, %v1227
        %v1229 = vpop.f32.mrf.mxu0
        %v1230 = vadd.f32 %v1086, %v1229
        %1231 = vmatprep.mubr.f32.mxu0 0.0
        %v1232 = vand.u32 %v639, 4294901760
        %v1233 = vsub.f32 %v639, %v1232
        %1234 = vmatmul.mubr.f32.gmra.mxu0 %v1233
        %v1235 = vpop.f32.mrf.mxu0
        %v1236 = vadd.f32 %v1091, %v1235
        %v1237 = vpop.f32.mrf.mxu0
        %v1238 = vadd.f32 %v1093, %v1237
        %1239 = vdwg.mxu0
        %1240 = vmatprep.subr.mxu0 0.0
        %v1241 = vand.u32 %v687, 4294901760
        %1242 = vmatpush1.xpose.msra.mxu0 %v1241
        %1243 = vmatprep.subr.mxu0 0.0
        %v1244 = vand.u32 %v684, 4294901760
        %1245 = vmatpush1.xpose.msra.mxu0 %v1244
        %1246 = vmatprep.subr.mxu0 0.0
        %v1247 = vand.u32 %v681, 4294901760
        %1248 = vmatpush1.xpose.msra.mxu0 %v1247
        %1249 = vmatprep.subr.mxu0 0.0
        %v1250 = vand.u32 %v678, 4294901760
        %1251 = vmatpush1.xpose.msra.mxu0 %v1250
        %1252 = vmatprep.subr.mxu0 0.0
        %v1253 = vand.u32 %v675, 4294901760
        %1254 = vmatpush1.xpose.msra.mxu0 %v1253
        %1255 = vmatprep.subr.mxu0 0.0
        %v1256 = vand.u32 %v672, 4294901760
        %1257 = vmatpush1.xpose.msra.mxu0 %v1256
        %1258 = vmatprep.subr.mxu0 0.0
        %v1259 = vand.u32 %v669, 4294901760
        %1260 = vmatpush1.xpose.msra.mxu0 %v1259
        %1261 = vmatprep.subr.mxu0 0.0
        %v1262 = vand.u32 %v666, 4294901760
        %1263 = vmatpush1.xpose.msra.mxu0 %v1262
        %1264 = vmatprep.subr.mxu0 0.0
        %v1265 = vand.u32 %v663, 4294901760
        %1266 = vmatpush1.xpose.msra.mxu0 %v1265
        %1267 = vmatprep.subr.mxu0 0.0
        %v1268 = vand.u32 %v660, 4294901760
        %1269 = vmatpush1.xpose.msra.mxu0 %v1268
        %1270 = vmatprep.subr.mxu0 0.0
        %v1271 = vand.u32 %v657, 4294901760
        %1272 = vmatpush1.xpose.msra.mxu0 %v1271
        %1273 = vmatprep.subr.mxu0 0.0
        %v1274 = vand.u32 %v654, 4294901760
        %1275 = vmatpush1.xpose.msra.mxu0 %v1274
        %1276 = vmatprep.subr.mxu0 0.0
        %v1277 = vand.u32 %v651, 4294901760
        %1278 = vmatpush1.xpose.msra.mxu0 %v1277
        %1279 = vmatprep.subr.mxu0 0.0
        %v1280 = vand.u32 %v648, 4294901760
        %1281 = vmatpush1.xpose.msra.mxu0 %v1280
        %1282 = vmatprep.subr.mxu0 0.0
        %v1283 = vand.u32 %v645, 4294901760
        %1284 = vmatpush1.xpose.msra.mxu0 %v1283
        %1285 = vmatprep.subr.mxu0 0.0
        %v1286 = vand.u32 %v642, 4294901760
        %1287 = vmatpush1.xpose.msra.mxu0 %v1286
        %1288 = vmatprep.subr.mxu0 0.0
        %v1289 = vand.u32 %v735, 4294901760
        %1290 = vmatpush2.xpose.msra.mxu0 %v1289
        %1291 = vmatprep.subr.mxu0 0.0
        %v1292 = vand.u32 %v732, 4294901760
        %1293 = vmatpush2.xpose.msra.mxu0 %v1292
        %1294 = vmatprep.subr.mxu0 0.0
        %v1295 = vand.u32 %v729, 4294901760
        %1296 = vmatpush2.xpose.msra.mxu0 %v1295
        %1297 = vmatprep.subr.mxu0 0.0
        %v1298 = vand.u32 %v726, 4294901760
        %1299 = vmatpush2.xpose.msra.mxu0 %v1298
        %1300 = vmatprep.subr.mxu0 0.0
        %v1301 = vand.u32 %v723, 4294901760
        %1302 = vmatpush2.xpose.msra.mxu0 %v1301
        %1303 = vmatprep.subr.mxu0 0.0
        %v1304 = vand.u32 %v720, 4294901760
        %1305 = vmatpush2.xpose.msra.mxu0 %v1304
        %1306 = vmatprep.subr.mxu0 0.0
        %v1307 = vand.u32 %v717, 4294901760
        %1308 = vmatpush2.xpose.msra.mxu0 %v1307
        %1309 = vmatprep.subr.mxu0 0.0
        %v1310 = vand.u32 %v714, 4294901760
        %1311 = vmatpush2.xpose.msra.mxu0 %v1310
        %1312 = vmatprep.subr.mxu0 0.0
        %v1313 = vand.u32 %v711, 4294901760
        %1314 = vmatpush2.xpose.msra.mxu0 %v1313
        %1315 = vmatprep.subr.mxu0 0.0
        %v1316 = vand.u32 %v708, 4294901760
        %1317 = vmatpush2.xpose.msra.mxu0 %v1316
        %1318 = vmatprep.subr.mxu0 0.0
        %v1319 = vand.u32 %v705, 4294901760
        %1320 = vmatpush2.xpose.msra.mxu0 %v1319
        %1321 = vmatprep.subr.mxu0 0.0
        %v1322 = vand.u32 %v702, 4294901760
        %1323 = vmatpush2.xpose.msra.mxu0 %v1322
        %1324 = vmatprep.subr.mxu0 0.0
        %v1325 = vand.u32 %v699, 4294901760
        %1326 = vmatpush2.xpose.msra.mxu0 %v1325
        %1327 = vmatprep.subr.mxu0 0.0
        %v1328 = vand.u32 %v696, 4294901760
        %1329 = vmatpush2.xpose.msra.mxu0 %v1328
        %1330 = vmatprep.subr.mxu0 0.0
        %v1331 = vand.u32 %v693, 4294901760
        %1332 = vmatpush2.xpose.msra.mxu0 %v1331
        %1333 = vmatprep.subr.mxu0 0.0
        %v1334 = vand.u32 %v690, 4294901760
        %1335 = vmatpush2.xpose.msra.mxu0 %v1334
        %1336 = vmatprep.mubr.f32.mxu0 0.0
        %v1337 = vand.u32 %v636, 4294901760
        %v1338 = vsub.f32 %v636, %v1337
        %v1339 = vand.u32 %v1338, 4294901760
        %1340 = vmatmul.mubr.f32.gmra.mxu0 %v1339
        %v1341 = vpop.f32.mrf.mxu0
        %v1342 = vadd.f32 %v1228, %v1341
        %v1343 = vpop.f32.mrf.mxu0
        %v1344 = vadd.f32 %v1230, %v1343
        %1345 = vmatprep.mubr.f32.mxu0 0.0
        %v1346 = vand.u32 %v639, 4294901760
        %v1347 = vsub.f32 %v639, %v1346
        %v1348 = vand.u32 %v1347, 4294901760
        %1349 = vmatmul.mubr.f32.gmra.mxu0 %v1348
        %v1350 = vpop.f32.mrf.mxu0
        %v1351 = vadd.f32 %v1236, %v1350
        %v1352 = vpop.f32.mrf.mxu0
        %v1353 = vadd.f32 %v1238, %v1352
        %1354 = vdwg.mxu0
        %1355 = vmatprep.subr.mxu0 0.0
        %v1356 = vand.u32 %v687, 4294901760
        %v1357 = vsub.f32 %v687, %v1356
        %v1358 = vand.u32 %v1357, 4294901760
        %1359 = vmatpush1.xpose.msra.mxu0 %v1358
        %1360 = vmatprep.subr.mxu0 0.0
        %v1361 = vand.u32 %v684, 4294901760
        %v1362 = vsub.f32 %v684, %v1361
        %v1363 = vand.u32 %v1362, 4294901760
        %1364 = vmatpush1.xpose.msra.mxu0 %v1363
        %1365 = vmatprep.subr.mxu0 0.0
        %v1366 = vand.u32 %v681, 4294901760
        %v1367 = vsub.f32 %v681, %v1366
        %v1368 = vand.u32 %v1367, 4294901760
        %1369 = vmatpush1.xpose.msra.mxu0 %v1368
        %1370 = vmatprep.subr.mxu0 0.0
        %v1371 = vand.u32 %v678, 4294901760
        %v1372 = vsub.f32 %v678, %v1371
        %v1373 = vand.u32 %v1372, 4294901760
        %1374 = vmatpush1.xpose.msra.mxu0 %v1373
        %1375 = vmatprep.subr.mxu0 0.0
        %v1376 = vand.u32 %v675, 4294901760
        %v1377 = vsub.f32 %v675, %v1376
        %v1378 = vand.u32 %v1377, 4294901760
        %1379 = vmatpush1.xpose.msra.mxu0 %v1378
        %1380 = vmatprep.subr.mxu0 0.0
        %v1381 = vand.u32 %v672, 4294901760
        %v1382 = vsub.f32 %v672, %v1381
        %v1383 = vand.u32 %v1382, 4294901760
        %1384 = vmatpush1.xpose.msra.mxu0 %v1383
        %1385 = vmatprep.subr.mxu0 0.0
        %v1386 = vand.u32 %v669, 4294901760
        %v1387 = vsub.f32 %v669, %v1386
        %v1388 = vand.u32 %v1387, 4294901760
        %1389 = vmatpush1.xpose.msra.mxu0 %v1388
        %1390 = vmatprep.subr.mxu0 0.0
        %v1391 = vand.u32 %v666, 4294901760
        %v1392 = vsub.f32 %v666, %v1391
        %v1393 = vand.u32 %v1392, 4294901760
        %1394 = vmatpush1.xpose.msra.mxu0 %v1393
        %1395 = vmatprep.subr.mxu0 0.0
        %v1396 = vand.u32 %v663, 4294901760
        %v1397 = vsub.f32 %v663, %v1396
        %v1398 = vand.u32 %v1397, 4294901760
        %1399 = vmatpush1.xpose.msra.mxu0 %v1398
        %1400 = vmatprep.subr.mxu0 0.0
        %v1401 = vand.u32 %v660, 4294901760
        %v1402 = vsub.f32 %v660, %v1401
        %v1403 = vand.u32 %v1402, 4294901760
        %1404 = vmatpush1.xpose.msra.mxu0 %v1403
        %1405 = vmatprep.subr.mxu0 0.0
        %v1406 = vand.u32 %v657, 4294901760
        %v1407 = vsub.f32 %v657, %v1406
        %v1408 = vand.u32 %v1407, 4294901760
        %1409 = vmatpush1.xpose.msra.mxu0 %v1408
        %1410 = vmatprep.subr.mxu0 0.0
        %v1411 = vand.u32 %v654, 4294901760
        %v1412 = vsub.f32 %v654, %v1411
        %v1413 = vand.u32 %v1412, 4294901760
        %1414 = vmatpush1.xpose.msra.mxu0 %v1413
        %1415 = vmatprep.subr.mxu0 0.0
        %v1416 = vand.u32 %v651, 4294901760
        %v1417 = vsub.f32 %v651, %v1416
        %v1418 = vand.u32 %v1417, 4294901760
        %1419 = vmatpush1.xpose.msra.mxu0 %v1418
        %1420 = vmatprep.subr.mxu0 0.0
        %v1421 = vand.u32 %v648, 4294901760
        %v1422 = vsub.f32 %v648, %v1421
        %v1423 = vand.u32 %v1422, 4294901760
        %1424 = vmatpush1.xpose.msra.mxu0 %v1423
        %1425 = vmatprep.subr.mxu0 0.0
        %v1426 = vand.u32 %v645, 4294901760
        %v1427 = vsub.f32 %v645, %v1426
        %v1428 = vand.u32 %v1427, 4294901760
        %1429 = vmatpush1.xpose.msra.mxu0 %v1428
        %1430 = vmatprep.subr.mxu0 0.0
        %v1431 = vand.u32 %v642, 4294901760
        %v1432 = vsub.f32 %v642, %v1431
        %v1433 = vand.u32 %v1432, 4294901760
        %1434 = vmatpush1.xpose.msra.mxu0 %v1433
        %1435 = vmatprep.subr.mxu0 0.0
        %v1436 = vand.u32 %v735, 4294901760
        %v1437 = vsub.f32 %v735, %v1436
        %v1438 = vand.u32 %v1437, 4294901760
        %1439 = vmatpush2.xpose.msra.mxu0 %v1438
        %1440 = vmatprep.subr.mxu0 0.0
        %v1441 = vand.u32 %v732, 4294901760
        %v1442 = vsub.f32 %v732, %v1441
        %v1443 = vand.u32 %v1442, 4294901760
        %1444 = vmatpush2.xpose.msra.mxu0 %v1443
        %1445 = vmatprep.subr.mxu0 0.0
        %v1446 = vand.u32 %v729, 4294901760
        %v1447 = vsub.f32 %v729, %v1446
        %v1448 = vand.u32 %v1447, 4294901760
        %1449 = vmatpush2.xpose.msra.mxu0 %v1448
        %1450 = vmatprep.subr.mxu0 0.0
        %v1451 = vand.u32 %v726, 4294901760
        %v1452 = vsub.f32 %v726, %v1451
        %v1453 = vand.u32 %v1452, 4294901760
        %1454 = vmatpush2.xpose.msra.mxu0 %v1453
        %1455 = vmatprep.subr.mxu0 0.0
        %v1456 = vand.u32 %v723, 4294901760
        %v1457 = vsub.f32 %v723, %v1456
        %v1458 = vand.u32 %v1457, 4294901760
        %1459 = vmatpush2.xpose.msra.mxu0 %v1458
        %1460 = vmatprep.subr.mxu0 0.0
        %v1461 = vand.u32 %v720, 4294901760
        %v1462 = vsub.f32 %v720, %v1461
        %v1463 = vand.u32 %v1462, 4294901760
        %1464 = vmatpush2.xpose.msra.mxu0 %v1463
        %1465 = vmatprep.subr.mxu0 0.0
        %v1466 = vand.u32 %v717, 4294901760
        %v1467 = vsub.f32 %v717, %v1466
        %v1468 = vand.u32 %v1467, 4294901760
        %1469 = vmatpush2.xpose.msra.mxu0 %v1468
        %1470 = vmatprep.subr.mxu0 0.0
        %v1471 = vand.u32 %v714, 4294901760
        %v1472 = vsub.f32 %v714, %v1471
        %v1473 = vand.u32 %v1472, 4294901760
        %1474 = vmatpush2.xpose.msra.mxu0 %v1473
        %1475 = vmatprep.subr.mxu0 0.0
        %v1476 = vand.u32 %v711, 4294901760
        %v1477 = vsub.f32 %v711, %v1476
        %v1478 = vand.u32 %v1477, 4294901760
        %1479 = vmatpush2.xpose.msra.mxu0 %v1478
        %1480 = vmatprep.subr.mxu0 0.0
        %v1481 = vand.u32 %v708, 4294901760
        %v1482 = vsub.f32 %v708, %v1481
        %v1483 = vand.u32 %v1482, 4294901760
        %1484 = vmatpush2.xpose.msra.mxu0 %v1483
        %1485 = vmatprep.subr.mxu0 0.0
        %v1486 = vand.u32 %v705, 4294901760
        %v1487 = vsub.f32 %v705, %v1486
        %v1488 = vand.u32 %v1487, 4294901760
        %1489 = vmatpush2.xpose.msra.mxu0 %v1488
        %1490 = vmatprep.subr.mxu0 0.0
        %v1491 = vand.u32 %v702, 4294901760
        %v1492 = vsub.f32 %v702, %v1491
        %v1493 = vand.u32 %v1492, 4294901760
        %1494 = vmatpush2.xpose.msra.mxu0 %v1493
        %1495 = vmatprep.subr.mxu0 0.0
        %v1496 = vand.u32 %v699, 4294901760
        %v1497 = vsub.f32 %v699, %v1496
        %v1498 = vand.u32 %v1497, 4294901760
        %1499 = vmatpush2.xpose.msra.mxu0 %v1498
        %1500 = vmatprep.subr.mxu0 0.0
        %v1501 = vand.u32 %v696, 4294901760
        %v1502 = vsub.f32 %v696, %v1501
        %v1503 = vand.u32 %v1502, 4294901760
        %1504 = vmatpush2.xpose.msra.mxu0 %v1503
        %1505 = vmatprep.subr.mxu0 0.0
        %v1506 = vand.u32 %v693, 4294901760
        %v1507 = vsub.f32 %v693, %v1506
        %v1508 = vand.u32 %v1507, 4294901760
        %1509 = vmatpush2.xpose.msra.mxu0 %v1508
        %1510 = vmatprep.subr.mxu0 0.0
        %v1511 = vand.u32 %v690, 4294901760
        %v1512 = vsub.f32 %v690, %v1511
        %v1513 = vand.u32 %v1512, 4294901760
        %1514 = vmatpush2.xpose.msra.mxu0 %v1513
        %1515 = vmatprep.mubr.f32.mxu0 0.0
        %v1516 = vand.u32 %v636, 4294901760
        %1517 = vmatmul.mubr.f32.gmra.mxu0 %v1516
        %v1518 = vpop.f32.mrf.mxu0
        %v1519 = vadd.f32 %v1342, %v1518
        %v1520 = vpop.f32.mrf.mxu0
        %v1521 = vadd.f32 %v1344, %v1520
        %1522 = vmatprep.mubr.f32.mxu0 0.0
        %v1523 = vand.u32 %v639, 4294901760
        %1524 = vmatmul.mubr.f32.gmra.mxu0 %v1523
        %v1525 = vpop.f32.mrf.mxu0
        %v1526 = vadd.f32 %v1351, %v1525
        %v1527 = vpop.f32.mrf.mxu0
        %v1528 = vadd.f32 %v1353, %v1527
        %1529 = vdwg.mxu0
        %1530 = vmatprep.subr.mxu0 0.0
        %v1531 = vand.u32 %v687, 4294901760
        %1532 = vmatpush1.xpose.msra.mxu0 %v1531
        %1533 = vmatprep.subr.mxu0 0.0
        %v1534 = vand.u32 %v684, 4294901760
        %1535 = vmatpush1.xpose.msra.mxu0 %v1534
        %1536 = vmatprep.subr.mxu0 0.0
        %v1537 = vand.u32 %v681, 4294901760
        %1538 = vmatpush1.xpose.msra.mxu0 %v1537
        %1539 = vmatprep.subr.mxu0 0.0
        %v1540 = vand.u32 %v678, 4294901760
        %1541 = vmatpush1.xpose.msra.mxu0 %v1540
        %1542 = vmatprep.subr.mxu0 0.0
        %v1543 = vand.u32 %v675, 4294901760
        %1544 = vmatpush1.xpose.msra.mxu0 %v1543
        %1545 = vmatprep.subr.mxu0 0.0
        %v1546 = vand.u32 %v672, 4294901760
        %1547 = vmatpush1.xpose.msra.mxu0 %v1546
        %1548 = vmatprep.subr.mxu0 0.0
        %v1549 = vand.u32 %v669, 4294901760
        %1550 = vmatpush1.xpose.msra.mxu0 %v1549
        %1551 = vmatprep.subr.mxu0 0.0
        %v1552 = vand.u32 %v666, 4294901760
        %1553 = vmatpush1.xpose.msra.mxu0 %v1552
        %1554 = vmatprep.subr.mxu0 0.0
        %v1555 = vand.u32 %v663, 4294901760
        %1556 = vmatpush1.xpose.msra.mxu0 %v1555
        %1557 = vmatprep.subr.mxu0 0.0
        %v1558 = vand.u32 %v660, 4294901760
        %1559 = vmatpush1.xpose.msra.mxu0 %v1558
        %1560 = vmatprep.subr.mxu0 0.0
        %v1561 = vand.u32 %v657, 4294901760
        %1562 = vmatpush1.xpose.msra.mxu0 %v1561
        %1563 = vmatprep.subr.mxu0 0.0
        %v1564 = vand.u32 %v654, 4294901760
        %1565 = vmatpush1.xpose.msra.mxu0 %v1564
        %1566 = vmatprep.subr.mxu0 0.0
        %v1567 = vand.u32 %v651, 4294901760
        %1568 = vmatpush1.xpose.msra.mxu0 %v1567
        %1569 = vmatprep.subr.mxu0 0.0
        %v1570 = vand.u32 %v648, 4294901760
        %1571 = vmatpush1.xpose.msra.mxu0 %v1570
        %1572 = vmatprep.subr.mxu0 0.0
        %v1573 = vand.u32 %v645, 4294901760
        %1574 = vmatpush1.xpose.msra.mxu0 %v1573
        %1575 = vmatprep.subr.mxu0 0.0
        %v1576 = vand.u32 %v642, 4294901760
        %1577 = vmatpush1.xpose.msra.mxu0 %v1576
        %1578 = vmatprep.subr.mxu0 0.0
        %v1579 = vand.u32 %v735, 4294901760
        %1580 = vmatpush2.xpose.msra.mxu0 %v1579
        %1581 = vmatprep.subr.mxu0 0.0
        %v1582 = vand.u32 %v732, 4294901760
        %1583 = vmatpush2.xpose.msra.mxu0 %v1582
        %1584 = vmatprep.subr.mxu0 0.0
        %v1585 = vand.u32 %v729, 4294901760
        %1586 = vmatpush2.xpose.msra.mxu0 %v1585
        %1587 = vmatprep.subr.mxu0 0.0
        %v1588 = vand.u32 %v726, 4294901760
        %1589 = vmatpush2.xpose.msra.mxu0 %v1588
        %1590 = vmatprep.subr.mxu0 0.0
        %v1591 = vand.u32 %v723, 4294901760
        %1592 = vmatpush2.xpose.msra.mxu0 %v1591
        %1593 = vmatprep.subr.mxu0 0.0
        %v1594 = vand.u32 %v720, 4294901760
        %1595 = vmatpush2.xpose.msra.mxu0 %v1594
        %1596 = vmatprep.subr.mxu0 0.0
        %v1597 = vand.u32 %v717, 4294901760
        %1598 = vmatpush2.xpose.msra.mxu0 %v1597
        %1599 = vmatprep.subr.mxu0 0.0
        %v1600 = vand.u32 %v714, 4294901760
        %1601 = vmatpush2.xpose.msra.mxu0 %v1600
        %1602 = vmatprep.subr.mxu0 0.0
        %v1603 = vand.u32 %v711, 4294901760
        %1604 = vmatpush2.xpose.msra.mxu0 %v1603
        %1605 = vmatprep.subr.mxu0 0.0
        %v1606 = vand.u32 %v708, 4294901760
        %1607 = vmatpush2.xpose.msra.mxu0 %v1606
        %1608 = vmatprep.subr.mxu0 0.0
        %v1609 = vand.u32 %v705, 4294901760
        %1610 = vmatpush2.xpose.msra.mxu0 %v1609
        %1611 = vmatprep.subr.mxu0 0.0
        %v1612 = vand.u32 %v702, 4294901760
        %1613 = vmatpush2.xpose.msra.mxu0 %v1612
        %1614 = vmatprep.subr.mxu0 0.0
        %v1615 = vand.u32 %v699, 4294901760
        %1616 = vmatpush2.xpose.msra.mxu0 %v1615
        %1617 = vmatprep.subr.mxu0 0.0
        %v1618 = vand.u32 %v696, 4294901760
        %1619 = vmatpush2.xpose.msra.mxu0 %v1618
        %1620 = vmatprep.subr.mxu0 0.0
        %v1621 = vand.u32 %v693, 4294901760
        %1622 = vmatpush2.xpose.msra.mxu0 %v1621
        %1623 = vmatprep.subr.mxu0 0.0
        %v1624 = vand.u32 %v690, 4294901760
        %1625 = vmatpush2.xpose.msra.mxu0 %v1624
        %1626 = vmatprep.mubr.f32.mxu0 0.0
        %v1627 = vand.u32 %v636, 4294901760
        %1628 = vmatmul.mubr.f32.gmra.mxu0 %v1627
        %v1629 = vpop.f32.mrf.mxu0
        %v1630 = vadd.f32 %v1519, %v1629
        %v1631 = vpop.f32.mrf.mxu0
        %v1632 = vadd.f32 %v1521, %v1631
        %1633 = vmatprep.mubr.f32.mxu0 0.0
        %v1634 = vand.u32 %v639, 4294901760
        %1635 = vmatmul.mubr.f32.gmra.mxu0 %v1634
        %v1636 = vpop.f32.mrf.mxu0
        %v1637 = vadd.f32 %v1526, %v1636
        %v1638 = vpop.f32.mrf.mxu0
        %v1639 = vadd.f32 %v1528, %v1638
        %1640 = vdwg.mxu0
        %v1641 = vld [vmem:[%s1] sm:$0xff]
        %v1642 = vld [vmem:[%s1 + $0x8] sm:$0xff]
        %v1643 = vld [vmem:[%s1 + $0x10] sm:$0xff]
        %v1644 = vld [vmem:[%s1 + $0x18] sm:$0xff]
        %v1645 = vld [vmem:[%s2] sm:$0xff]
        %v1646 = vld [vmem:[%s2 + $0x8] sm:$0xff]
        %v1647 = vld [vmem:[%s2 + $0x10] sm:$0xff]
        %v1648 = vld [vmem:[%s2 + $0x18] sm:$0xff]
        %1650 = vset.pattern.permute.xlu0 0
        %1651 = vperm.xlu0 %1650, %v1645
        %v1652 = vpop.permute.xlu0 %1651
        %1655 = vset.pattern.permute.xlu0 0
        %1656 = vperm.xlu0 %1655, %v1646
        %v1657 = vpop.permute.xlu0 %1656
        %1660 = vset.pattern.permute.xlu0 0
        %1661 = vperm.xlu0 %1660, %v1647
        %v1662 = vpop.permute.xlu0 %1661
        %1665 = vset.pattern.permute.xlu0 0
        %1666 = vperm.xlu0 %1665, %v1648
        %v1667 = vpop.permute.xlu0 %1666
        %v1670 = vsel %vm634, %v1641, 0
        %v1673 = vsel %vm634, %v1642, 0
        %v1676 = vsel %vm634, %v1643, 0
        %v1679 = vsel %vm634, %v1644, 0
        %1681 = vmatprep.subr.mxu0 0.0
        %1682 = vmatpush1.msra.mxu0 0.0
        %1683 = vmatprep.subr.mxu0 0.0
        %1684 = vmatpush1.msra.mxu0 0.0
        %1685 = vmatprep.subr.mxu0 0.0
        %1686 = vmatpush1.msra.mxu0 0.0
        %1687 = vmatprep.subr.mxu0 0.0
        %1688 = vmatpush1.msra.mxu0 0.0
        %1689 = vmatprep.subr.mxu0 0.0
        %1690 = vmatpush1.msra.mxu0 0.0
        %1691 = vmatprep.subr.mxu0 0.0
        %1692 = vmatpush1.msra.mxu0 0.0
        %1693 = vmatprep.subr.mxu0 0.0
        %1694 = vmatpush1.msra.mxu0 0.0
        %1695 = vmatprep.subr.mxu0 0.0
        %1696 = vmatpush1.msra.mxu0 0.0
        %1697 = vmatprep.subr.mxu0 0.0
        %1698 = vmatpush1.msra.mxu0 0.0
        %1699 = vmatprep.subr.mxu0 0.0
        %1700 = vmatpush1.msra.mxu0 0.0
        %1701 = vmatprep.subr.mxu0 0.0
        %1702 = vmatpush1.msra.mxu0 0.0
        %1703 = vmatprep.subr.mxu0 0.0
        %1704 = vmatpush1.msra.mxu0 0.0
        %1705 = vmatprep.subr.mxu0 0.0
        %1706 = vmatpush1.msra.mxu0 0.0
        %1707 = vmatprep.subr.mxu0 0.0
        %1708 = vmatpush1.msra.mxu0 0.0
        %1709 = vmatprep.subr.mxu0 %v1639
        %1710 = vmatpush1.msra.mxu0 %v1637
        %1711 = vmatprep.subr.mxu0 %v1632
        %1712 = vmatpush1.msra.mxu0 %v1630
        %1713 = vmatprep.subr.mxu0 0.0
        %1714 = vmatpush2.msra.mxu0 0.0
        %1715 = vmatprep.subr.mxu0 0.0
        %1716 = vmatpush2.msra.mxu0 0.0
        %1717 = vmatprep.subr.mxu0 0.0
        %1718 = vmatpush2.msra.mxu0 0.0
        %1719 = vmatprep.subr.mxu0 0.0
        %1720 = vmatpush2.msra.mxu0 0.0
        %1721 = vmatprep.subr.mxu0 0.0
        %1722 = vmatpush2.msra.mxu0 0.0
        %1723 = vmatprep.subr.mxu0 0.0
        %1724 = vmatpush2.msra.mxu0 0.0
        %1725 = vmatprep.subr.mxu0 0.0
        %1726 = vmatpush2.msra.mxu0 0.0
        %1727 = vmatprep.subr.mxu0 0.0
        %1728 = vmatpush2.msra.mxu0 0.0
        %1729 = vmatprep.subr.mxu0 0.0
        %1730 = vmatpush2.msra.mxu0 0.0
        %1731 = vmatprep.subr.mxu0 0.0
        %1732 = vmatpush2.msra.mxu0 0.0
        %1733 = vmatprep.subr.mxu0 0.0
        %1734 = vmatpush2.msra.mxu0 0.0
        %1735 = vmatprep.subr.mxu0 0.0
        %1736 = vmatpush2.msra.mxu0 0.0
        %1737 = vmatprep.subr.mxu0 0.0
        %1738 = vmatpush2.msra.mxu0 0.0
        %1739 = vmatprep.subr.mxu0 0.0
        %1740 = vmatpush2.msra.mxu0 0.0
        %1741 = vmatprep.subr.mxu0 0.0
        %1742 = vmatpush2.msra.mxu0 0.0
        %1743 = vmatprep.subr.mxu0 0.0
        %1744 = vmatpush2.msra.mxu0 0.0
        %1745 = vmatprep.mubr.f32.mxu0 0.0
        %1746 = vmatmul.mubr.f32.gmra.mxu0 %v1670
        %v1747 = vpop.f32.mrf.mxu0
        %v1748 = vadd.f32 %v1652, %v1747
        %v1749 = vpop.f32.mrf.mxu0
        %v1750 = vadd.f32 %v1652, %v1749
        %1751 = vmatprep.mubr.f32.mxu0 0.0
        %1752 = vmatmul.mubr.f32.gmra.mxu0 %v1673
        %v1753 = vpop.f32.mrf.mxu0
        %v1754 = vadd.f32 %v1657, %v1753
        %v1755 = vpop.f32.mrf.mxu0
        %v1756 = vadd.f32 %v1657, %v1755
        %1757 = vmatprep.mubr.f32.mxu0 0.0
        %1758 = vmatmul.mubr.f32.gmra.mxu0 %v1676
        %v1759 = vpop.f32.mrf.mxu0
        %v1760 = vadd.f32 %v1662, %v1759
        %v1761 = vpop.f32.mrf.mxu0
        %v1762 = vadd.f32 %v1662, %v1761
        %1763 = vmatprep.mubr.f32.mxu0 0.0
        %1764 = vmatmul.mubr.f32.gmra.mxu0 %v1679
        %v1765 = vpop.f32.mrf.mxu0
        %v1766 = vadd.f32 %v1667, %v1765
        %v1767 = vpop.f32.mrf.mxu0
        %v1768 = vadd.f32 %v1667, %v1767
        %1769 = vdwg.mxu0
        %vm1770 = vcmp.gt.f32.partialorder %v1748, 0.0
        %vm1771 = vcmp.gt.f32.partialorder %v1750, 0.0
        %vm1772 = vcmp.gt.f32.partialorder %v1754, 0.0
        %vm1773 = vcmp.gt.f32.partialorder %v1756, 0.0
        %vm1774 = vcmp.gt.f32.partialorder %v1760, 0.0
        %vm1775 = vcmp.gt.f32.partialorder %v1762, 0.0
        %vm1776 = vcmp.gt.f32.partialorder %v1766, 0.0
        %vm1777 = vcmp.gt.f32.partialorder %v1768, 0.0
        %v1778 = vmul.f32 %v1748, 0.1
        %v1779 = vmul.f32 %v1750, 0.1
        %v1780 = vmul.f32 %v1754, 0.1
        %v1781 = vmul.f32 %v1756, 0.1
        %v1782 = vmul.f32 %v1760, 0.1
        %v1783 = vmul.f32 %v1762, 0.1
        %v1784 = vmul.f32 %v1766, 0.1
        %v1785 = vmul.f32 %v1768, 0.1
        %v1786 = vsel %vm1770, %v1748, %v1778
        %v1787 = vsel %vm1771, %v1750, %v1779
        %v1788 = vsel %vm1772, %v1754, %v1780
        %v1789 = vsel %vm1773, %v1756, %v1781
        %v1790 = vsel %vm1774, %v1760, %v1782
        %v1791 = vsel %vm1775, %v1762, %v1783
        %v1792 = vsel %vm1776, %v1766, %v1784
        %v1793 = vsel %vm1777, %v1768, %v1785
        %v1794 = vld [vmem:[%s3] sm:$0xff]
        %v1795 = vld [vmem:[%s3 + $0x8] sm:$0xff]
        %v1796 = vld [vmem:[%s3 + $0x10] sm:$0xff]
        %v1797 = vld [vmem:[%s3 + $0x18] sm:$0xff]
        %v1798 = vld [vmem:[%s4] sm:$0xff]
        %v1799 = vld [vmem:[%s4 + $0x8] sm:$0xff]
        %v1800 = vld [vmem:[%s4 + $0x10] sm:$0xff]
        %v1801 = vld [vmem:[%s4 + $0x18] sm:$0xff]
        %1803 = vset.pattern.permute.xlu0 0
        %1804 = vperm.xlu0 %1803, %v1798
        %v1805 = vpop.permute.xlu0 %1804
        %1808 = vset.pattern.permute.xlu0 0
        %1809 = vperm.xlu0 %1808, %v1799
        %v1810 = vpop.permute.xlu0 %1809
        %1813 = vset.pattern.permute.xlu0 0
        %1814 = vperm.xlu0 %1813, %v1800
        %v1815 = vpop.permute.xlu0 %1814
        %1818 = vset.pattern.permute.xlu0 0
        %1819 = vperm.xlu0 %1818, %v1801
        %v1820 = vpop.permute.xlu0 %1819
        %vm1822 = vcmask 261120
        %v1824 = vsel %vm1822, %v1794, 0
        %v1827 = vsel %vm1822, %v1795, 0
        %v1830 = vsel %vm1822, %v1796, 0
        %v1833 = vsel %vm1822, %v1797, 0
        %1835 = vmatprep.subr.mxu0 0.0
        %1836 = vmatpush1.msra.mxu0 0.0
        %1837 = vmatprep.subr.mxu0 0.0
        %1838 = vmatpush1.msra.mxu0 0.0
        %1839 = vmatprep.subr.mxu0 0.0
        %1840 = vmatpush1.msra.mxu0 0.0
        %1841 = vmatprep.subr.mxu0 0.0
        %1842 = vmatpush1.msra.mxu0 0.0
        %1843 = vmatprep.subr.mxu0 0.0
        %1844 = vmatpush1.msra.mxu0 0.0
        %1845 = vmatprep.subr.mxu0 0.0
        %1846 = vmatpush1.msra.mxu0 0.0
        %1847 = vmatprep.subr.mxu0 0.0
        %1848 = vmatpush1.msra.mxu0 0.0
        %1849 = vmatprep.subr.mxu0 0.0
        %1850 = vmatpush1.msra.mxu0 0.0
        %1851 = vmatprep.subr.mxu0 0.0
        %1852 = vmatpush1.msra.mxu0 0.0
        %1853 = vmatprep.subr.mxu0 0.0
        %1854 = vmatpush1.msra.mxu0 0.0
        %1855 = vmatprep.subr.mxu0 0.0
        %1856 = vmatpush1.msra.mxu0 0.0
        %1857 = vmatprep.subr.mxu0 0.0
        %1858 = vmatpush1.msra.mxu0 0.0
        %1859 = vmatprep.subr.mxu0 %v1793
        %1860 = vmatpush1.msra.mxu0 %v1792
        %1861 = vmatprep.subr.mxu0 %v1791
        %1862 = vmatpush1.msra.mxu0 %v1790
        %1863 = vmatprep.subr.mxu0 %v1789
        %1864 = vmatpush1.msra.mxu0 %v1788
        %1865 = vmatprep.subr.mxu0 %v1787
        %1866 = vmatpush1.msra.mxu0 %v1786
        %1867 = vmatprep.subr.mxu0 0.0
        %1868 = vmatpush2.msra.mxu0 0.0
        %1869 = vmatprep.subr.mxu0 0.0
        %1870 = vmatpush2.msra.mxu0 0.0
        %1871 = vmatprep.subr.mxu0 0.0
        %1872 = vmatpush2.msra.mxu0 0.0
        %1873 = vmatprep.subr.mxu0 0.0
        %1874 = vmatpush2.msra.mxu0 0.0
        %1875 = vmatprep.subr.mxu0 0.0
        %1876 = vmatpush2.msra.mxu0 0.0
        %1877 = vmatprep.subr.mxu0 0.0
        %1878 = vmatpush2.msra.mxu0 0.0
        %1879 = vmatprep.subr.mxu0 0.0
        %1880 = vmatpush2.msra.mxu0 0.0
        %1881 = vmatprep.subr.mxu0 0.0
        %1882 = vmatpush2.msra.mxu0 0.0
        %1883 = vmatprep.subr.mxu0 0.0
        %1884 = vmatpush2.msra.mxu0 0.0
        %1885 = vmatprep.subr.mxu0 0.0
        %1886 = vmatpush2.msra.mxu0 0.0
        %1887 = vmatprep.subr.mxu0 0.0
        %1888 = vmatpush2.msra.mxu0 0.0
        %1889 = vmatprep.subr.mxu0 0.0
        %1890 = vmatpush2.msra.mxu0 0.0
        %1891 = vmatprep.subr.mxu0 0.0
        %1892 = vmatpush2.msra.mxu0 0.0
        %1893 = vmatprep.subr.mxu0 0.0
        %1894 = vmatpush2.msra.mxu0 0.0
        %1895 = vmatprep.subr.mxu0 0.0
        %1896 = vmatpush2.msra.mxu0 0.0
        %1897 = vmatprep.subr.mxu0 0.0
        %1898 = vmatpush2.msra.mxu0 0.0
        %1899 = vmatprep.mubr.f32.mxu0 0.0
        %1900 = vmatmul.mubr.f32.gmra.mxu0 %v1824
        %v1901 = vpop.f32.mrf.mxu0
        %v1902 = vadd.f32 %v1805, %v1901
        %v1903 = vpop.f32.mrf.mxu0
        %v1904 = vadd.f32 %v1805, %v1903
        %1905 = vmatprep.mubr.f32.mxu0 0.0
        %1906 = vmatmul.mubr.f32.gmra.mxu0 %v1827
        %v1907 = vpop.f32.mrf.mxu0
        %v1908 = vadd.f32 %v1810, %v1907
        %v1909 = vpop.f32.mrf.mxu0
        %v1910 = vadd.f32 %v1810, %v1909
        %1911 = vmatprep.mubr.f32.mxu0 0.0
        %1912 = vmatmul.mubr.f32.gmra.mxu0 %v1830
        %v1913 = vpop.f32.mrf.mxu0
        %v1914 = vadd.f32 %v1815, %v1913
        %v1915 = vpop.f32.mrf.mxu0
        %v1916 = vadd.f32 %v1815, %v1915
        %1917 = vmatprep.mubr.f32.mxu0 0.0
        %1918 = vmatmul.mubr.f32.gmra.mxu0 %v1833
        %v1919 = vpop.f32.mrf.mxu0
        %v1920 = vadd.f32 %v1820, %v1919
        %v1921 = vpop.f32.mrf.mxu0
        %v1922 = vadd.f32 %v1820, %v1921
        %1923 = vdwg.mxu0
        %vm1924 = vcmp.gt.f32.partialorder %v1902, 0.0
        %vm1925 = vcmp.gt.f32.partialorder %v1904, 0.0
        %vm1926 = vcmp.gt.f32.partialorder %v1908, 0.0
        %vm1927 = vcmp.gt.f32.partialorder %v1910, 0.0
        %vm1928 = vcmp.gt.f32.partialorder %v1914, 0.0
        %vm1929 = vcmp.gt.f32.partialorder %v1916, 0.0
        %vm1930 = vcmp.gt.f32.partialorder %v1920, 0.0
        %vm1931 = vcmp.gt.f32.partialorder %v1922, 0.0
        %v1932 = vmul.f32 %v1902, 0.1
        %v1933 = vmul.f32 %v1904, 0.1
        %v1934 = vmul.f32 %v1908, 0.1
        %v1935 = vmul.f32 %v1910, 0.1
        %v1936 = vmul.f32 %v1914, 0.1
        %v1937 = vmul.f32 %v1916, 0.1
        %v1938 = vmul.f32 %v1920, 0.1
        %v1939 = vmul.f32 %v1922, 0.1
        %v1940 = vsel %vm1924, %v1902, %v1932
        %v1941 = vsel %vm1925, %v1904, %v1933
        %v1942 = vsel %vm1926, %v1908, %v1934
        %v1943 = vsel %vm1927, %v1910, %v1935
        %v1944 = vsel %vm1928, %v1914, %v1936
        %v1945 = vsel %vm1929, %v1916, %v1937
        %v1946 = vsel %vm1930, %v1920, %v1938
        %v1947 = vsel %vm1931, %v1922, %v1939
        %v1948 = vld [vmem:[%s5] sm:$0xf]
        %v1949 = vld [vmem:[%s6] sm:$0xf]
        %1951 = vset.pattern.permute.xlu0 0
        %1952 = vperm.xlu0 %1951, %v1949
        %v1953 = vpop.permute.xlu0 %1952
        %v1956 = vsel %vm1822, %v1948, 0
        %1958 = vmatprep.subr.mxu0 0.0
        %1959 = vmatpush1.msra.mxu0 0.0
        %1960 = vmatprep.subr.mxu0 0.0
        %1961 = vmatpush1.msra.mxu0 0.0
        %1962 = vmatprep.subr.mxu0 0.0
        %1963 = vmatpush1.msra.mxu0 0.0
        %1964 = vmatprep.subr.mxu0 0.0
        %1965 = vmatpush1.msra.mxu0 0.0
        %1966 = vmatprep.subr.mxu0 0.0
        %1967 = vmatpush1.msra.mxu0 0.0
        %1968 = vmatprep.subr.mxu0 0.0
        %1969 = vmatpush1.msra.mxu0 0.0
        %1970 = vmatprep.subr.mxu0 0.0
        %1971 = vmatpush1.msra.mxu0 0.0
        %1972 = vmatprep.subr.mxu0 0.0
        %1973 = vmatpush1.msra.mxu0 0.0
        %1974 = vmatprep.subr.mxu0 0.0
        %1975 = vmatpush1.msra.mxu0 0.0
        %1976 = vmatprep.subr.mxu0 0.0
        %1977 = vmatpush1.msra.mxu0 0.0
        %1978 = vmatprep.subr.mxu0 0.0
        %1979 = vmatpush1.msra.mxu0 0.0
        %1980 = vmatprep.subr.mxu0 0.0
        %1981 = vmatpush1.msra.mxu0 0.0
        %1982 = vmatprep.subr.mxu0 %v1947
        %1983 = vmatpush1.msra.mxu0 %v1946
        %1984 = vmatprep.subr.mxu0 %v1945
        %1985 = vmatpush1.msra.mxu0 %v1944
        %1986 = vmatprep.subr.mxu0 %v1943
        %1987 = vmatpush1.msra.mxu0 %v1942
        %1988 = vmatprep.subr.mxu0 %v1941
        %1989 = vmatpush1.msra.mxu0 %v1940
        %1990 = vmatprep.subr.mxu0 0.0
        %1991 = vmatpush2.msra.mxu0 0.0
        %1992 = vmatprep.subr.mxu0 0.0
        %1993 = vmatpush2.msra.mxu0 0.0
        %1994 = vmatprep.subr.mxu0 0.0
        %1995 = vmatpush2.msra.mxu0 0.0
        %1996 = vmatprep.subr.mxu0 0.0
        %1997 = vmatpush2.msra.mxu0 0.0
        %1998 = vmatprep.subr.mxu0 0.0
        %1999 = vmatpush2.msra.mxu0 0.0
        %2000 = vmatprep.subr.mxu0 0.0
        %2001 = vmatpush2.msra.mxu0 0.0
        %2002 = vmatprep.subr.mxu0 0.0
        %2003 = vmatpush2.msra.mxu0 0.0
        %2004 = vmatprep.subr.mxu0 0.0
        %2005 = vmatpush2.msra.mxu0 0.0
        %2006 = vmatprep.subr.mxu0 0.0
        %2007 = vmatpush2.msra.mxu0 0.0
        %2008 = vmatprep.subr.mxu0 0.0
        %2009 = vmatpush2.msra.mxu0 0.0
        %2010 = vmatprep.subr.mxu0 0.0
        %2011 = vmatpush2.msra.mxu0 0.0
        %2012 = vmatprep.subr.mxu0 0.0
        %2013 = vmatpush2.msra.mxu0 0.0
        %2014 = vmatprep.subr.mxu0 0.0
        %2015 = vmatpush2.msra.mxu0 0.0
        %2016 = vmatprep.subr.mxu0 0.0
        %2017 = vmatpush2.msra.mxu0 0.0
        %2018 = vmatprep.subr.mxu0 0.0
        %2019 = vmatpush2.msra.mxu0 0.0
        %2020 = vmatprep.subr.mxu0 0.0
        %2021 = vmatpush2.msra.mxu0 0.0
        %2022 = vmatprep.mubr.f32.mxu0 0.0
        %2023 = vmatmul.mubr.f32.gmra.mxu0 %v1956
        %v2024 = vpop.f32.mrf.mxu0
        %v2025 = vadd.f32 %v1953, %v2024
        %v2026 = vpop.f32.mrf.mxu0
        %v2027 = vadd.f32 %v1953, %v2026
        %2028 = vdwg.mxu0
        %vm2029 = vcmp.gt.f32.partialorder %v2025, 0.0
        %vm2030 = vcmp.gt.f32.partialorder %v2027, 0.0
        %v2031 = vmul.f32 %v2025, 0.1
        %v2032 = vmul.f32 %v2027, 0.1
        %v2033 = vsel %vm2029, %v2025, %v2031
        %v2034 = vsel %vm2030, %v2027, %v2032
        %v2035 = vld [vmem:[%s7] sm:$0xff]
        %v2036 = vld [vmem:[%s7 + $0x8] sm:$0xff]
        %v2037 = vld [vmem:[%s7 + $0x10] sm:$0xff]
        %v2038 = vld [vmem:[%s7 + $0x18] sm:$0xff]
        %v2039 = vld [vmem:[%s8] sm:$0xff]
        %v2040 = vld [vmem:[%s8 + $0x8] sm:$0xff]
        %v2041 = vld [vmem:[%s8 + $0x10] sm:$0xff]
        %v2042 = vld [vmem:[%s8 + $0x18] sm:$0xff]
        %2044 = vset.pattern.permute.xlu0 0
        %2045 = vperm.xlu0 %2044, %v2039
        %v2046 = vpop.permute.xlu0 %2045
        %2049 = vset.pattern.permute.xlu0 0
        %2050 = vperm.xlu0 %2049, %v2040
        %v2051 = vpop.permute.xlu0 %2050
        %2054 = vset.pattern.permute.xlu0 0
        %2055 = vperm.xlu0 %2054, %v2041
        %v2056 = vpop.permute.xlu0 %2055
        %2059 = vset.pattern.permute.xlu0 0
        %2060 = vperm.xlu0 %2059, %v2042
        %v2061 = vpop.permute.xlu0 %2060
        %vm2063 = vcmask 31744
        %v2065 = vsel %vm2063, %v2035, 0
        %v2068 = vsel %vm2063, %v2036, 0
        %v2071 = vsel %vm2063, %v2037, 0
        %v2074 = vsel %vm2063, %v2038, 0
        %vm2076 = vcmask 1043456
        %v2078 = vsel %vm2076, %v2033, 0
        %v2081 = vsel %vm2076, %v2034, 0
        %2083 = vmatprep.subr.mxu0 0.0
        %2084 = vmatpush1.msra.mxu0 0.0
        %2085 = vmatprep.subr.mxu0 0.0
        %2086 = vmatpush1.msra.mxu0 0.0
        %2087 = vmatprep.subr.mxu0 0.0
        %2088 = vmatpush1.msra.mxu0 0.0
        %2089 = vmatprep.subr.mxu0 0.0
        %2090 = vmatpush1.msra.mxu0 0.0
        %2091 = vmatprep.subr.mxu0 0.0
        %2092 = vmatpush1.msra.mxu0 0.0
        %2093 = vmatprep.subr.mxu0 0.0
        %2094 = vmatpush1.msra.mxu0 0.0
        %2095 = vmatprep.subr.mxu0 0.0
        %2096 = vmatpush1.msra.mxu0 0.0
        %2097 = vmatprep.subr.mxu0 0.0
        %2098 = vmatpush1.msra.mxu0 0.0
        %2099 = vmatprep.subr.mxu0 0.0
        %2100 = vmatpush1.msra.mxu0 0.0
        %2101 = vmatprep.subr.mxu0 0.0
        %2102 = vmatpush1.msra.mxu0 0.0
        %2103 = vmatprep.subr.mxu0 0.0
        %2104 = vmatpush1.msra.mxu0 0.0
        %2105 = vmatprep.subr.mxu0 0.0
        %2106 = vmatpush1.msra.mxu0 0.0
        %2107 = vmatprep.subr.mxu0 0.0
        %2108 = vmatpush1.msra.mxu0 0.0
        %2109 = vmatprep.subr.mxu0 0.0
        %2110 = vmatpush1.msra.mxu0 0.0
        %2111 = vmatprep.subr.mxu0 0.0
        %2112 = vmatpush1.msra.mxu0 0.0
        %2113 = vmatprep.subr.mxu0 %v2081
        %2114 = vmatpush1.msra.mxu0 %v2078
        %2115 = vmatprep.subr.mxu0 0.0
        %2116 = vmatpush2.msra.mxu0 0.0
        %2117 = vmatprep.subr.mxu0 0.0
        %2118 = vmatpush2.msra.mxu0 0.0
        %2119 = vmatprep.subr.mxu0 0.0
        %2120 = vmatpush2.msra.mxu0 0.0
        %2121 = vmatprep.subr.mxu0 0.0
        %2122 = vmatpush2.msra.mxu0 0.0
        %2123 = vmatprep.subr.mxu0 0.0
        %2124 = vmatpush2.msra.mxu0 0.0
        %2125 = vmatprep.subr.mxu0 0.0
        %2126 = vmatpush2.msra.mxu0 0.0
        %2127 = vmatprep.subr.mxu0 0.0
        %2128 = vmatpush2.msra.mxu0 0.0
        %2129 = vmatprep.subr.mxu0 0.0
        %2130 = vmatpush2.msra.mxu0 0.0
        %2131 = vmatprep.subr.mxu0 0.0
        %2132 = vmatpush2.msra.mxu0 0.0
        %2133 = vmatprep.subr.mxu0 0.0
        %2134 = vmatpush2.msra.mxu0 0.0
        %2135 = vmatprep.subr.mxu0 0.0
        %2136 = vmatpush2.msra.mxu0 0.0
        %2137 = vmatprep.subr.mxu0 0.0
        %2138 = vmatpush2.msra.mxu0 0.0
        %2139 = vmatprep.subr.mxu0 0.0
        %2140 = vmatpush2.msra.mxu0 0.0
        %2141 = vmatprep.subr.mxu0 0.0
        %2142 = vmatpush2.msra.mxu0 0.0
        %2143 = vmatprep.subr.mxu0 0.0
        %2144 = vmatpush2.msra.mxu0 0.0
        %2145 = vmatprep.subr.mxu0 0.0
        %2146 = vmatpush2.msra.mxu0 0.0
        %2147 = vmatprep.mubr.f32.mxu0 0.0
        %2148 = vmatmul.mubr.f32.gmra.mxu0 %v2065
        %v2149 = vpop.f32.mrf.mxu0
        %v2150 = vadd.f32 %v2046, %v2149
        %v2151 = vpop.f32.mrf.mxu0
        %v2152 = vadd.f32 %v2046, %v2151
        %2153 = vmatprep.mubr.f32.mxu0 0.0
        %2154 = vmatmul.mubr.f32.gmra.mxu0 %v2068
        %v2155 = vpop.f32.mrf.mxu0
        %v2156 = vadd.f32 %v2051, %v2155
        %v2157 = vpop.f32.mrf.mxu0
        %v2158 = vadd.f32 %v2051, %v2157
        %2159 = vmatprep.mubr.f32.mxu0 0.0
        %2160 = vmatmul.mubr.f32.gmra.mxu0 %v2071
        %v2161 = vpop.f32.mrf.mxu0
        %v2162 = vadd.f32 %v2056, %v2161
        %v2163 = vpop.f32.mrf.mxu0
        %v2164 = vadd.f32 %v2056, %v2163
        %2165 = vmatprep.mubr.f32.mxu0 0.0
        %2166 = vmatmul.mubr.f32.gmra.mxu0 %v2074
        %v2167 = vpop.f32.mrf.mxu0
        %v2168 = vadd.f32 %v2061, %v2167
        %v2169 = vpop.f32.mrf.mxu0
        %v2170 = vadd.f32 %v2061, %v2169
        %2171 = vdwg.mxu0
        %vm2172 = vcmp.gt.f32.partialorder %v2150, 0.0
        %vm2173 = vcmp.gt.f32.partialorder %v2152, 0.0
        %vm2174 = vcmp.gt.f32.partialorder %v2156, 0.0
        %vm2175 = vcmp.gt.f32.partialorder %v2158, 0.0
        %vm2176 = vcmp.gt.f32.partialorder %v2162, 0.0
        %vm2177 = vcmp.gt.f32.partialorder %v2164, 0.0
        %vm2178 = vcmp.gt.f32.partialorder %v2168, 0.0
        %vm2179 = vcmp.gt.f32.partialorder %v2170, 0.0
        %v2180 = vmul.f32 %v2150, 0.1
        %v2181 = vmul.f32 %v2152, 0.1
        %v2182 = vmul.f32 %v2156, 0.1
        %v2183 = vmul.f32 %v2158, 0.1
        %v2184 = vmul.f32 %v2162, 0.1
        %v2185 = vmul.f32 %v2164, 0.1
        %v2186 = vmul.f32 %v2168, 0.1
        %v2187 = vmul.f32 %v2170, 0.1
        %v2188 = vsel %vm2172, %v2150, %v2180
        %v2189 = vsel %vm2173, %v2152, %v2181
        %v2190 = vsel %vm2174, %v2156, %v2182
        %v2191 = vsel %vm2175, %v2158, %v2183
        %v2192 = vsel %vm2176, %v2162, %v2184
        %v2193 = vsel %vm2177, %v2164, %v2185
        %v2194 = vsel %vm2178, %v2168, %v2186
        %v2195 = vsel %vm2179, %v2170, %v2187
        %v2196 = vld [vmem:[%s9] sm:$0xff]
        %v2197 = vld [vmem:[%s9 + $0x8] sm:$0xff]
        %v2198 = vld [vmem:[%s9 + $0x10] sm:$0xff]
        %v2199 = vld [vmem:[%s9 + $0x18] sm:$0xff]
        %v2200 = vld [vmem:[%s10] sm:$0xff]
        %v2201 = vld [vmem:[%s10 + $0x8] sm:$0xff]
        %v2202 = vld [vmem:[%s10 + $0x10] sm:$0xff]
        %v2203 = vld [vmem:[%s10 + $0x18] sm:$0xff]
        %2205 = vset.pattern.permute.xlu0 0
        %2206 = vperm.xlu0 %2205, %v2200
        %v2207 = vpop.permute.xlu0 %2206
        %2210 = vset.pattern.permute.xlu0 0
        %2211 = vperm.xlu0 %2210, %v2201
        %v2212 = vpop.permute.xlu0 %2211
        %2215 = vset.pattern.permute.xlu0 0
        %2216 = vperm.xlu0 %2215, %v2202
        %v2217 = vpop.permute.xlu0 %2216
        %2220 = vset.pattern.permute.xlu0 0
        %2221 = vperm.xlu0 %2220, %v2203
        %v2222 = vpop.permute.xlu0 %2221
        %v2225 = vsel %vm1822, %v2196, 0
        %v2228 = vsel %vm1822, %v2197, 0
        %v2231 = vsel %vm1822, %v2198, 0
        %v2234 = vsel %vm1822, %v2199, 0
        %2236 = vmatprep.subr.mxu0 0.0
        %2237 = vmatpush1.msra.mxu0 0.0
        %2238 = vmatprep.subr.mxu0 0.0
        %2239 = vmatpush1.msra.mxu0 0.0
        %2240 = vmatprep.subr.mxu0 0.0
        %2241 = vmatpush1.msra.mxu0 0.0
        %2242 = vmatprep.subr.mxu0 0.0
        %2243 = vmatpush1.msra.mxu0 0.0
        %2244 = vmatprep.subr.mxu0 0.0
        %2245 = vmatpush1.msra.mxu0 0.0
        %2246 = vmatprep.subr.mxu0 0.0
        %2247 = vmatpush1.msra.mxu0 0.0
        %2248 = vmatprep.subr.mxu0 0.0
        %2249 = vmatpush1.msra.mxu0 0.0
        %2250 = vmatprep.subr.mxu0 0.0
        %2251 = vmatpush1.msra.mxu0 0.0
        %2252 = vmatprep.subr.mxu0 0.0
        %2253 = vmatpush1.msra.mxu0 0.0
        %2254 = vmatprep.subr.mxu0 0.0
        %2255 = vmatpush1.msra.mxu0 0.0
        %2256 = vmatprep.subr.mxu0 0.0
        %2257 = vmatpush1.msra.mxu0 0.0
        %2258 = vmatprep.subr.mxu0 0.0
        %2259 = vmatpush1.msra.mxu0 0.0
        %2260 = vmatprep.subr.mxu0 %v2195
        %2261 = vmatpush1.msra.mxu0 %v2194
        %2262 = vmatprep.subr.mxu0 %v2193
        %2263 = vmatpush1.msra.mxu0 %v2192
        %2264 = vmatprep.subr.mxu0 %v2191
        %2265 = vmatpush1.msra.mxu0 %v2190
        %2266 = vmatprep.subr.mxu0 %v2189
        %2267 = vmatpush1.msra.mxu0 %v2188
        %2268 = vmatprep.subr.mxu0 0.0
        %2269 = vmatpush2.msra.mxu0 0.0
        %2270 = vmatprep.subr.mxu0 0.0
        %2271 = vmatpush2.msra.mxu0 0.0
        %2272 = vmatprep.subr.mxu0 0.0
        %2273 = vmatpush2.msra.mxu0 0.0
        %2274 = vmatprep.subr.mxu0 0.0
        %2275 = vmatpush2.msra.mxu0 0.0
        %2276 = vmatprep.subr.mxu0 0.0
        %2277 = vmatpush2.msra.mxu0 0.0
        %2278 = vmatprep.subr.mxu0 0.0
        %2279 = vmatpush2.msra.mxu0 0.0
        %2280 = vmatprep.subr.mxu0 0.0
        %2281 = vmatpush2.msra.mxu0 0.0
        %2282 = vmatprep.subr.mxu0 0.0
        %2283 = vmatpush2.msra.mxu0 0.0
        %2284 = vmatprep.subr.mxu0 0.0
        %2285 = vmatpush2.msra.mxu0 0.0
        %2286 = vmatprep.subr.mxu0 0.0
        %2287 = vmatpush2.msra.mxu0 0.0
        %2288 = vmatprep.subr.mxu0 0.0
        %2289 = vmatpush2.msra.mxu0 0.0
        %2290 = vmatprep.subr.mxu0 0.0
        %2291 = vmatpush2.msra.mxu0 0.0
        %2292 = vmatprep.subr.mxu0 0.0
        %2293 = vmatpush2.msra.mxu0 0.0
        %2294 = vmatprep.subr.mxu0 0.0
        %2295 = vmatpush2.msra.mxu0 0.0
        %2296 = vmatprep.subr.mxu0 0.0
        %2297 = vmatpush2.msra.mxu0 0.0
        %2298 = vmatprep.subr.mxu0 0.0
        %2299 = vmatpush2.msra.mxu0 0.0
        %2300 = vmatprep.mubr.f32.mxu0 0.0
        %2301 = vmatmul.mubr.f32.gmra.mxu0 %v2225
        %v2302 = vpop.f32.mrf.mxu0
        %v2303 = vadd.f32 %v2207, %v2302
        %v2304 = vpop.f32.mrf.mxu0
        %v2305 = vadd.f32 %v2207, %v2304
        %2306 = vmatprep.mubr.f32.mxu0 0.0
        %2307 = vmatmul.mubr.f32.gmra.mxu0 %v2228
        %v2308 = vpop.f32.mrf.mxu0
        %v2309 = vadd.f32 %v2212, %v2308
        %v2310 = vpop.f32.mrf.mxu0
        %v2311 = vadd.f32 %v2212, %v2310
        %2312 = vmatprep.mubr.f32.mxu0 0.0
        %2313 = vmatmul.mubr.f32.gmra.mxu0 %v2231
        %v2314 = vpop.f32.mrf.mxu0
        %v2315 = vadd.f32 %v2217, %v2314
        %v2316 = vpop.f32.mrf.mxu0
        %v2317 = vadd.f32 %v2217, %v2316
        %2318 = vmatprep.mubr.f32.mxu0 0.0
        %2319 = vmatmul.mubr.f32.gmra.mxu0 %v2234
        %v2320 = vpop.f32.mrf.mxu0
        %v2321 = vadd.f32 %v2222, %v2320
        %v2322 = vpop.f32.mrf.mxu0
        %v2323 = vadd.f32 %v2222, %v2322
        %2324 = vdwg.mxu0
        %vm2325 = vcmp.gt.f32.partialorder %v2303, 0.0
        %vm2326 = vcmp.gt.f32.partialorder %v2305, 0.0
        %vm2327 = vcmp.gt.f32.partialorder %v2309, 0.0
        %vm2328 = vcmp.gt.f32.partialorder %v2311, 0.0
        %vm2329 = vcmp.gt.f32.partialorder %v2315, 0.0
        %vm2330 = vcmp.gt.f32.partialorder %v2317, 0.0
        %vm2331 = vcmp.gt.f32.partialorder %v2321, 0.0
        %vm2332 = vcmp.gt.f32.partialorder %v2323, 0.0
        %v2333 = vmul.f32 %v2303, 0.1
        %v2334 = vmul.f32 %v2305, 0.1
        %v2335 = vmul.f32 %v2309, 0.1
        %v2336 = vmul.f32 %v2311, 0.1
        %v2337 = vmul.f32 %v2315, 0.1
        %v2338 = vmul.f32 %v2317, 0.1
        %v2339 = vmul.f32 %v2321, 0.1
        %v2340 = vmul.f32 %v2323, 0.1
        %v2341 = vsel %vm2325, %v2303, %v2333
        %v2342 = vsel %vm2326, %v2305, %v2334
        %v2343 = vsel %vm2327, %v2309, %v2335
        %v2344 = vsel %vm2328, %v2311, %v2336
        %v2345 = vsel %vm2329, %v2315, %v2337
        %v2346 = vsel %vm2330, %v2317, %v2338
        %v2347 = vsel %vm2331, %v2321, %v2339
        %v2348 = vsel %vm2332, %v2323, %v2340
        %v2349 = vld [vmem:[%s11] sm:$0xff]
        %v2350 = vld [vmem:[%s11 + $0x8] sm:$0xff]
        %v2351 = vld [vmem:[%s12] sm:$0xff]
        %v2352 = vld [vmem:[%s12 + $0x8] sm:$0xff]
        %2354 = vset.pattern.permute.xlu0 0
        %2355 = vperm.xlu0 %2354, %v2351
        %v2356 = vpop.permute.xlu0 %2355
        %2359 = vset.pattern.permute.xlu0 0
        %2360 = vperm.xlu0 %2359, %v2352
        %v2361 = vpop.permute.xlu0 %2360
        %v2364 = vsel %vm1822, %v2349, 0
        %v2367 = vsel %vm1822, %v2350, 0
        %2369 = vmatprep.subr.mxu0 0.0
        %2370 = vmatpush1.msra.mxu0 0.0
        %2371 = vmatprep.subr.mxu0 0.0
        %2372 = vmatpush1.msra.mxu0 0.0
        %2373 = vmatprep.subr.mxu0 0.0
        %2374 = vmatpush1.msra.mxu0 0.0
        %2375 = vmatprep.subr.mxu0 0.0
        %2376 = vmatpush1.msra.mxu0 0.0
        %2377 = vmatprep.subr.mxu0 0.0
        %2378 = vmatpush1.msra.mxu0 0.0
        %2379 = vmatprep.subr.mxu0 0.0
        %2380 = vmatpush1.msra.mxu0 0.0
        %2381 = vmatprep.subr.mxu0 0.0
        %2382 = vmatpush1.msra.mxu0 0.0
        %2383 = vmatprep.subr.mxu0 0.0
        %2384 = vmatpush1.msra.mxu0 0.0
        %2385 = vmatprep.subr.mxu0 0.0
        %2386 = vmatpush1.msra.mxu0 0.0
        %2387 = vmatprep.subr.mxu0 0.0
        %2388 = vmatpush1.msra.mxu0 0.0
        %2389 = vmatprep.subr.mxu0 0.0
        %2390 = vmatpush1.msra.mxu0 0.0
        %2391 = vmatprep.subr.mxu0 0.0
        %2392 = vmatpush1.msra.mxu0 0.0
        %2393 = vmatprep.subr.mxu0 %v2348
        %2394 = vmatpush1.msra.mxu0 %v2347
        %2395 = vmatprep.subr.mxu0 %v2346
        %2396 = vmatpush1.msra.mxu0 %v2345
        %2397 = vmatprep.subr.mxu0 %v2344
        %2398 = vmatpush1.msra.mxu0 %v2343
        %2399 = vmatprep.subr.mxu0 %v2342
        %2400 = vmatpush1.msra.mxu0 %v2341
        %2401 = vmatprep.subr.mxu0 0.0
        %2402 = vmatpush2.msra.mxu0 0.0
        %2403 = vmatprep.subr.mxu0 0.0
        %2404 = vmatpush2.msra.mxu0 0.0
        %2405 = vmatprep.subr.mxu0 0.0
        %2406 = vmatpush2.msra.mxu0 0.0
        %2407 = vmatprep.subr.mxu0 0.0
        %2408 = vmatpush2.msra.mxu0 0.0
        %2409 = vmatprep.subr.mxu0 0.0
        %2410 = vmatpush2.msra.mxu0 0.0
        %2411 = vmatprep.subr.mxu0 0.0
        %2412 = vmatpush2.msra.mxu0 0.0
        %2413 = vmatprep.subr.mxu0 0.0
        %2414 = vmatpush2.msra.mxu0 0.0
        %2415 = vmatprep.subr.mxu0 0.0
        %2416 = vmatpush2.msra.mxu0 0.0
        %2417 = vmatprep.subr.mxu0 0.0
        %2418 = vmatpush2.msra.mxu0 0.0
        %2419 = vmatprep.subr.mxu0 0.0
        %2420 = vmatpush2.msra.mxu0 0.0
        %2421 = vmatprep.subr.mxu0 0.0
        %2422 = vmatpush2.msra.mxu0 0.0
        %2423 = vmatprep.subr.mxu0 0.0
        %2424 = vmatpush2.msra.mxu0 0.0
        %2425 = vmatprep.subr.mxu0 0.0
        %2426 = vmatpush2.msra.mxu0 0.0
        %2427 = vmatprep.subr.mxu0 0.0
        %2428 = vmatpush2.msra.mxu0 0.0
        %2429 = vmatprep.subr.mxu0 0.0
        %2430 = vmatpush2.msra.mxu0 0.0
        %2431 = vmatprep.subr.mxu0 0.0
        %2432 = vmatpush2.msra.mxu0 0.0
        %2433 = vmatprep.mubr.f32.mxu0 0.0
        %2434 = vmatmul.mubr.f32.gmra.mxu0 %v2364
        %v2435 = vpop.f32.mrf.mxu0
        %v2436 = vadd.f32 %v2356, %v2435
        %v2437 = vpop.f32.mrf.mxu0
        %v2438 = vadd.f32 %v2356, %v2437
        %2439 = vmatprep.mubr.f32.mxu0 0.0
        %2440 = vmatmul.mubr.f32.gmra.mxu0 %v2367
        %v2441 = vpop.f32.mrf.mxu0
        %v2442 = vadd.f32 %v2361, %v2441
        %v2443 = vpop.f32.mrf.mxu0
        %v2444 = vadd.f32 %v2361, %v2443
        %2445 = vdwg.mxu0
        %v2446 = vsub.f32 0.0, %v2436
        %v2447 = vsub.f32 0.0, %v2438
        %v2448 = vsub.f32 0.0, %v2442
        %v2449 = vsub.f32 0.0, %v2444
        %v2450 = vmul.f32 %v2446, 1.442695
        %v2451 = vpow.pop %v2450
        %v2452 = vmul.f32 %v2447, 1.442695
        %v2453 = vpow.pop %v2452
        %v2454 = vmul.f32 %v2448, 1.442695
        %v2455 = vpow.pop %v2454
        %v2456 = vmul.f32 %v2449, 1.442695
        %v2457 = vpow.pop %v2456
        %v2458 = vadd.f32 %v2451, 1.0
        %v2459 = vadd.f32 %v2453, 1.0
        %v2460 = vadd.f32 %v2455, 1.0
        %v2461 = vadd.f32 %v2457, 1.0
        %v2462 = vrcp.pop %v2458
        %v2463 = vmul.f32 1.0, %v2462
        %v2464 = vrcp.pop %v2459
        %v2465 = vmul.f32 1.0, %v2464
        %v2466 = vrcp.pop %v2460
        %v2467 = vmul.f32 1.0, %v2466
        %v2468 = vrcp.pop %v2461
        %v2469 = vmul.f32 1.0, %v2468
        %2470 = vst [vmem:[%s570] sm:$0xff] %v2463
        %2471 = vst [vmem:[%s570 + $0x8] sm:$0xff] %v2465
        %2472 = vst [vmem:[%s570 + $0x10] sm:$0xff] %v2467
        %2473 = vst [vmem:[%s570 + $0x18] sm:$0xff] %v2469
        %v2474 = vmul.f32 %v1630, %v1630
        %v2475 = vmul.f32 %v1632, %v1632
        %v2476 = vmul.f32 %v1637, %v1637
        %v2477 = vmul.f32 %v1639, %v1639
        %v2478 = vadd.f32 %v2474, %v2476
        %v2479 = vrot.slane %v2478, 4
        %v2480 = vadd.f32 %v2478, %v2479
        %v2481 = vrot.slane %v2480, 2
        %v2482 = vadd.f32 %v2480, %v2481
        %v2483 = vrot.slane %v2482, 1
        %v2484 = vadd.f32 %v2482, %v2483
        %v2485 = vadd.f32 %v2475, %v2477
        %v2486 = vrot.slane %v2485, 4
        %v2487 = vadd.f32 %v2485, %v2486
        %v2488 = vrot.slane %v2487, 2
        %v2489 = vadd.f32 %v2487, %v2488
        %v2490 = vrot.slane %v2489, 1
        %v2491 = vadd.f32 %v2489, %v2490
        %v2492 = vmul.f32 %v2463, %v2463
        %v2493 = vmul.f32 %v2465, %v2465
        %v2494 = vmul.f32 %v2467, %v2467
        %v2495 = vmul.f32 %v2469, %v2469
        %v2496 = vadd.f32 %v2492, %v2494
        %v2497 = vrot.slane %v2496, 4
        %v2498 = vadd.f32 %v2496, %v2497
        %v2499 = vrot.slane %v2498, 2
        %v2500 = vadd.f32 %v2498, %v2499
        %v2501 = vrot.slane %v2500, 1
        %v2502 = vadd.f32 %v2500, %v2501
        %v2503 = vadd.f32 %v2493, %v2495
        %v2504 = vrot.slane %v2503, 4
        %v2505 = vadd.f32 %v2503, %v2504
        %v2506 = vrot.slane %v2505, 2
        %v2507 = vadd.f32 %v2505, %v2506
        %v2508 = vrot.slane %v2507, 1
        %v2509 = vadd.f32 %v2507, %v2508
        %v2510 = vmul.f32 %v1630, %v2463
        %v2511 = vmul.f32 %v1632, %v2465
        %v2512 = vmul.f32 %v1637, %v2467
        %v2513 = vmul.f32 %v1639, %v2469
        %v2514 = vadd.f32 %v2510, %v2512
        %v2515 = vrot.slane %v2514, 4
        %v2516 = vadd.f32 %v2514, %v2515
        %v2517 = vrot.slane %v2516, 2
        %v2518 = vadd.f32 %v2516, %v2517
        %v2519 = vrot.slane %v2518, 1
        %v2520 = vadd.f32 %v2518, %v2519
        %v2521 = vadd.f32 %v2511, %v2513
        %v2522 = vrot.slane %v2521, 4
        %v2523 = vadd.f32 %v2521, %v2522
        %v2524 = vrot.slane %v2523, 2
        %v2525 = vadd.f32 %v2523, %v2524
        %v2526 = vrot.slane %v2525, 1
        %v2527 = vadd.f32 %v2525, %v2526
        %v2528 = vrsqrt.pop %v2484
        %v2529 = vmul.f32 %v2484, %v2528
        %vm2530 = vcmp.eq.f32.partialorder %v2484, inf
        %v2531 = vsel %vm2530, %v2484, %v2529
        %vm2532 = vcmp.eq.f32.partialorder %v2484, 0.0
        %v2533 = vand.u32 %v2484, 2147483648
        %v2534 = vsel %vm2532, %v2533, %v2531
        %v2535 = vrsqrt.pop %v2491
        %v2536 = vmul.f32 %v2491, %v2535
        %vm2537 = vcmp.eq.f32.partialorder %v2491, inf
        %v2538 = vsel %vm2537, %v2491, %v2536
        %vm2539 = vcmp.eq.f32.partialorder %v2491, 0.0
        %v2540 = vand.u32 %v2491, 2147483648
        %v2541 = vsel %vm2539, %v2540, %v2538
        %v2542 = vmax.f32 %v2534, 1e-08
        %v2543 = vmax.f32 %v2541, 1e-08
        %v2544 = vrsqrt.pop %v2502
        %v2545 = vmul.f32 %v2502, %v2544
        %vm2546 = vcmp.eq.f32.partialorder %v2502, inf
        %v2547 = vsel %vm2546, %v2502, %v2545
        %vm2548 = vcmp.eq.f32.partialorder %v2502, 0.0
        %v2549 = vand.u32 %v2502, 2147483648
        %v2550 = vsel %vm2548, %v2549, %v2547
        %v2551 = vrsqrt.pop %v2509
        %v2552 = vmul.f32 %v2509, %v2551
        %vm2553 = vcmp.eq.f32.partialorder %v2509, inf
        %v2554 = vsel %vm2553, %v2509, %v2552
        %vm2555 = vcmp.eq.f32.partialorder %v2509, 0.0
        %v2556 = vand.u32 %v2509, 2147483648
        %v2557 = vsel %vm2555, %v2556, %v2554
        %v2558 = vmax.f32 %v2550, 1e-08
        %v2559 = vmax.f32 %v2557, 1e-08
        %v2560 = vmul.f32 %v2542, %v2558
        %v2561 = vmul.f32 %v2543, %v2559
        %v2562 = vrcp.pop %v2560
        %v2563 = vmul.f32 %v2520, %v2562
        %v2564 = vrcp.pop %v2561
        %v2565 = vmul.f32 %v2527, %v2564
        %v2566 = vsub.f32 %v1630, %v2463
        %v2567 = vsub.f32 %v1632, %v2465
        %v2568 = vsub.f32 %v1637, %v2467
        %v2569 = vsub.f32 %v1639, %v2469
        %v2570 = vmul.f32 %v2566, %v2566
        %v2571 = vmul.f32 %v2567, %v2567
        %v2572 = vmul.f32 %v2568, %v2568
        %v2573 = vmul.f32 %v2569, %v2569
        %v2574 = vadd.f32 %v2570, %v2572
        %v2575 = vrot.slane %v2574, 4
        %v2576 = vadd.f32 %v2574, %v2575
        %v2577 = vrot.slane %v2576, 2
        %v2578 = vadd.f32 %v2576, %v2577
        %v2579 = vrot.slane %v2578, 1
        %v2580 = vadd.f32 %v2578, %v2579
        %v2581 = vadd.f32 %v2571, %v2573
        %v2582 = vrot.slane %v2581, 4
        %v2583 = vadd.f32 %v2581, %v2582
        %v2584 = vrot.slane %v2583, 2
        %v2585 = vadd.f32 %v2583, %v2584
        %v2586 = vrot.slane %v2585, 1
        %v2587 = vadd.f32 %v2585, %v2586
        %v2588 = vrsqrt.pop %v2580
        %v2589 = vmul.f32 %v2580, %v2588
        %vm2590 = vcmp.eq.f32.partialorder %v2580, inf
        %v2591 = vsel %vm2590, %v2580, %v2589
        %vm2592 = vcmp.eq.f32.partialorder %v2580, 0.0
        %v2593 = vand.u32 %v2580, 2147483648
        %v2594 = vsel %vm2592, %v2593, %v2591
        %v2595 = vrsqrt.pop %v2587
        %v2596 = vmul.f32 %v2587, %v2595
        %vm2597 = vcmp.eq.f32.partialorder %v2587, inf
        %v2598 = vsel %vm2597, %v2587, %v2596
        %vm2599 = vcmp.eq.f32.partialorder %v2587, 0.0
        %v2600 = vand.u32 %v2587, 2147483648
        %v2601 = vsel %vm2599, %v2600, %v2598
        %v2602 = vrcp.pop %v2542
        %v2603 = vmul.f32 %v2594, %v2602
        %v2604 = vrcp.pop %v2543
        %v2605 = vmul.f32 %v2601, %v2604
        %v2606 = vsel %vm2076, %v2025, %v2603
        %v2607 = vsel %vm2076, %v2027, %v2605
        %vm2608 = vcmask 1044480
        %v2609 = vsel %vm2608, %v2606, %v2563
        %v2610 = vsel %vm2608, %v2607, %v2565
        %v2611 = vld [vmem:[%s13] sm:$0xff]
        %v2612 = vld [vmem:[%s13 + $0x8] sm:$0x3]
        %v2613 = vld [vmem:[%s14] sm:$0xff]
        %v2614 = vld [vmem:[%s14 + $0x8] sm:$0x3]
        %2616 = vset.pattern.permute.xlu0 0
        %2617 = vperm.xlu0 %2616, %v2613
        %v2618 = vpop.permute.xlu0 %2617
        %2621 = vset.pattern.permute.xlu0 0
        %2622 = vperm.xlu0 %2621, %v2614
        %v2623 = vpop.permute.xlu0 %2622
        %vm2625 = vcmask 48128
        %v2627 = vsel %vm2625, %v2611, 0
        %v2630 = vsel %vm2625, %v2612, 0
        %vm2632 = vcmask 1045504
        %v2634 = vsel %vm2632, %v2609, 0
        %v2637 = vsel %vm2632, %v2610, 0
        %2639 = vmatprep.subr.mxu0 0.0
        %2640 = vmatpush1.msra.mxu0 0.0
        %2641 = vmatprep.subr.mxu0 0.0
        %2642 = vmatpush1.msra.mxu0 0.0
        %2643 = vmatprep.subr.mxu0 0.0
        %2644 = vmatpush1.msra.mxu0 0.0
        %2645 = vmatprep.subr.mxu0 0.0
        %2646 = vmatpush1.msra.mxu0 0.0
        %2647 = vmatprep.subr.mxu0 0.0
        %2648 = vmatpush1.msra.mxu0 0.0
        %2649 = vmatprep.subr.mxu0 0.0
        %2650 = vmatpush1.msra.mxu0 0.0
        %2651 = vmatprep.subr.mxu0 0.0
        %2652 = vmatpush1.msra.mxu0 0.0
        %2653 = vmatprep.subr.mxu0 0.0
        %2654 = vmatpush1.msra.mxu0 0.0
        %2655 = vmatprep.subr.mxu0 0.0
        %2656 = vmatpush1.msra.mxu0 0.0
        %2657 = vmatprep.subr.mxu0 0.0
        %2658 = vmatpush1.msra.mxu0 0.0
        %2659 = vmatprep.subr.mxu0 0.0
        %2660 = vmatpush1.msra.mxu0 0.0
        %2661 = vmatprep.subr.mxu0 0.0
        %2662 = vmatpush1.msra.mxu0 0.0
        %2663 = vmatprep.subr.mxu0 0.0
        %2664 = vmatpush1.msra.mxu0 0.0
        %2665 = vmatprep.subr.mxu0 0.0
        %2666 = vmatpush1.msra.mxu0 0.0
        %2667 = vmatprep.subr.mxu0 0.0
        %2668 = vmatpush1.msra.mxu0 0.0
        %2669 = vmatprep.subr.mxu0 %v2637
        %2670 = vmatpush1.msra.mxu0 %v2634
        %2671 = vmatprep.subr.mxu0 0.0
        %2672 = vmatpush2.msra.mxu0 0.0
        %2673 = vmatprep.subr.mxu0 0.0
        %2674 = vmatpush2.msra.mxu0 0.0
        %2675 = vmatprep.subr.mxu0 0.0
        %2676 = vmatpush2.msra.mxu0 0.0
        %2677 = vmatprep.subr.mxu0 0.0
        %2678 = vmatpush2.msra.mxu0 0.0
        %2679 = vmatprep.subr.mxu0 0.0
        %2680 = vmatpush2.msra.mxu0 0.0
        %2681 = vmatprep.subr.mxu0 0.0
        %2682 = vmatpush2.msra.mxu0 0.0
        %2683 = vmatprep.subr.mxu0 0.0
        %2684 = vmatpush2.msra.mxu0 0.0
        %2685 = vmatprep.subr.mxu0 0.0
        %2686 = vmatpush2.msra.mxu0 0.0
        %2687 = vmatprep.subr.mxu0 0.0
        %2688 = vmatpush2.msra.mxu0 0.0
        %2689 = vmatprep.subr.mxu0 0.0
        %2690 = vmatpush2.msra.mxu0 0.0
        %2691 = vmatprep.subr.mxu0 0.0
        %2692 = vmatpush2.msra.mxu0 0.0
        %2693 = vmatprep.subr.mxu0 0.0
        %2694 = vmatpush2.msra.mxu0 0.0
        %2695 = vmatprep.subr.mxu0 0.0
        %2696 = vmatpush2.msra.mxu0 0.0
        %2697 = vmatprep.subr.mxu0 0.0
        %2698 = vmatpush2.msra.mxu0 0.0
        %2699 = vmatprep.subr.mxu0 0.0
        %2700 = vmatpush2.msra.mxu0 0.0
        %2701 = vmatprep.subr.mxu0 0.0
        %2702 = vmatpush2.msra.mxu0 0.0
        %2703 = vmatprep.mubr.f32.mxu0 0.0
        %2704 = vmatmul.mubr.f32.gmra.mxu0 %v2627
        %v2705 = vpop.f32.mrf.mxu0
        %v2706 = vadd.f32 %v2618, %v2705
        %v2707 = vpop.f32.mrf.mxu0
        %v2708 = vadd.f32 %v2618, %v2707
        %2709 = vmatprep.mubr.f32.mxu0 0.0
        %2710 = vmatmul.mubr.f32.gmra.mxu0 %v2630
        %v2711 = vpop.f32.mrf.mxu0
        %v2712 = vadd.f32 %v2623, %v2711
        %v2713 = vpop.f32.mrf.mxu0
        %v2714 = vadd.f32 %v2623, %v2713
        %2715 = vdwg.mxu0
        %v2716 = vtanh.pop %v2706
        %v2717 = vtanh.pop %v2708
        %v2718 = vtanh.pop %v2712
        %v2719 = vtanh.pop %v2714
        %v2720 = vld [vmem:[%s15] sm:$0x3]
        %v2721 = vld [vmem:[%s16] sm:$0x3]
        %2723 = vset.pattern.permute.xlu0 0
        %2724 = vperm.xlu0 %2723, %v2721
        %v2725 = vpop.permute.xlu0 %2724
        %vm2727 = vcmask 80896
        %v2729 = vsel %vm2727, %v2720, 0
        %vm2731 = vcmask 1041408
        %v2733 = vsel %vm2731, %v2718, 0
        %v2736 = vsel %vm2731, %v2719, 0
        %2738 = vmatprep.subr.mxu0 0.0
        %2739 = vmatpush1.msra.mxu0 0.0
        %2740 = vmatprep.subr.mxu0 0.0
        %2741 = vmatpush1.msra.mxu0 0.0
        %2742 = vmatprep.subr.mxu0 0.0
        %2743 = vmatpush1.msra.mxu0 0.0
        %2744 = vmatprep.subr.mxu0 0.0
        %2745 = vmatpush1.msra.mxu0 0.0
        %2746 = vmatprep.subr.mxu0 0.0
        %2747 = vmatpush1.msra.mxu0 0.0
        %2748 = vmatprep.subr.mxu0 0.0
        %2749 = vmatpush1.msra.mxu0 0.0
        %2750 = vmatprep.subr.mxu0 0.0
        %2751 = vmatpush1.msra.mxu0 0.0
        %2752 = vmatprep.subr.mxu0 0.0
        %2753 = vmatpush1.msra.mxu0 0.0
        %2754 = vmatprep.subr.mxu0 0.0
        %2755 = vmatpush1.msra.mxu0 0.0
        %2756 = vmatprep.subr.mxu0 0.0
        %2757 = vmatpush1.msra.mxu0 0.0
        %2758 = vmatprep.subr.mxu0 0.0
        %2759 = vmatpush1.msra.mxu0 0.0
        %2760 = vmatprep.subr.mxu0 0.0
        %2761 = vmatpush1.msra.mxu0 0.0
        %2762 = vmatprep.subr.mxu0 0.0
        %2763 = vmatpush1.msra.mxu0 0.0
        %2764 = vmatprep.subr.mxu0 0.0
        %2765 = vmatpush1.msra.mxu0 0.0
        %2766 = vmatprep.subr.mxu0 %v2736
        %2767 = vmatpush1.msra.mxu0 %v2733
        %2768 = vmatprep.subr.mxu0 %v2717
        %2769 = vmatpush1.msra.mxu0 %v2716
        %2770 = vmatprep.subr.mxu0 0.0
        %2771 = vmatpush2.msra.mxu0 0.0
        %2772 = vmatprep.subr.mxu0 0.0
        %2773 = vmatpush2.msra.mxu0 0.0
        %2774 = vmatprep.subr.mxu0 0.0
        %2775 = vmatpush2.msra.mxu0 0.0
        %2776 = vmatprep.subr.mxu0 0.0
        %2777 = vmatpush2.msra.mxu0 0.0
        %2778 = vmatprep.subr.mxu0 0.0
        %2779 = vmatpush2.msra.mxu0 0.0
        %2780 = vmatprep.subr.mxu0 0.0
        %2781 = vmatpush2.msra.mxu0 0.0
        %2782 = vmatprep.subr.mxu0 0.0
        %2783 = vmatpush2.msra.mxu0 0.0
        %2784 = vmatprep.subr.mxu0 0.0
        %2785 = vmatpush2.msra.mxu0 0.0
        %2786 = vmatprep.subr.mxu0 0.0
        %2787 = vmatpush2.msra.mxu0 0.0
        %2788 = vmatprep.subr.mxu0 0.0
        %2789 = vmatpush2.msra.mxu0 0.0
        %2790 = vmatprep.subr.mxu0 0.0
        %2791 = vmatpush2.msra.mxu0 0.0
        %2792 = vmatprep.subr.mxu0 0.0
        %2793 = vmatpush2.msra.mxu0 0.0
        %2794 = vmatprep.subr.mxu0 0.0
        %2795 = vmatpush2.msra.mxu0 0.0
        %2796 = vmatprep.subr.mxu0 0.0
        %2797 = vmatpush2.msra.mxu0 0.0
        %2798 = vmatprep.subr.mxu0 0.0
        %2799 = vmatpush2.msra.mxu0 0.0
        %2800 = vmatprep.subr.mxu0 0.0
        %2801 = vmatpush2.msra.mxu0 0.0
        %2802 = vmatprep.mubr.f32.mxu0 0.0
        %2803 = vmatmul.mubr.f32.gmra.mxu0 %v2729
        %v2804 = vpop.f32.mrf.mxu0
        %v2805 = vadd.f32 %v2725, %v2804
        %v2806 = vpop.f32.mrf.mxu0
        %v2807 = vadd.f32 %v2725, %v2806
        %2808 = vdwg.mxu0
        %v2809 = vsel %vm2731, %v2805, -inf
        %v2810 = vrot.slane %v2809, 4
        %v2811 = vmax.f32 %v2809, %v2810
        %v2812 = vrot.slane %v2811, 2
        %v2813 = vmax.f32 %v2811, %v2812
        %v2814 = vrot.slane %v2813, 1
        %v2815 = vmax.f32 %v2813, %v2814
        %v2816 = vsel %vm2731, %v2807, -inf
        %v2817 = vrot.slane %v2816, 4
        %v2818 = vmax.f32 %v2816, %v2817
        %v2819 = vrot.slane %v2818, 2
        %v2820 = vmax.f32 %v2818, %v2819
        %v2821 = vrot.slane %v2820, 1
        %v2822 = vmax.f32 %v2820, %v2821
        %v2823 = vsub.f32 %v2805, %v2815
        %v2824 = vsub.f32 %v2807, %v2822
        %v2825 = vmul.f32 %v2823, 1.442695
        %v2826 = vpow.pop %v2825
        %v2827 = vmul.f32 %v2824, 1.442695
        %v2828 = vpow.pop %v2827
        %v2829 = vsel %vm2731, %v2826, 0.0
        %v2830 = vrot.slane %v2829, 4
        %v2831 = vadd.f32 %v2829, %v2830
        %v2832 = vrot.slane %v2831, 2
        %v2833 = vadd.f32 %v2831, %v2832
        %v2834 = vrot.slane %v2833, 1
        %v2835 = vadd.f32 %v2833, %v2834
        %v2836 = vsel %vm2731, %v2828, 0.0
        %v2837 = vrot.slane %v2836, 4
        %v2838 = vadd.f32 %v2836, %v2837
        %v2839 = vrot.slane %v2838, 2
        %v2840 = vadd.f32 %v2838, %v2839
        %v2841 = vrot.slane %v2840, 1
        %v2842 = vadd.f32 %v2840, %v2841
        %v2843 = vrcp.pop %v2835
        %v2844 = vmul.f32 %v2826, %v2843
        %v2845 = vrcp.pop %v2842
        %v2846 = vmul.f32 %v2828, %v2845
        %v2849 = vrot.slane %v2844, 2
        %v2850 = vrot.slane %v2846, 2
        %v2853 = vsel %vm2632, %v2609, %v2849
        %v2854 = vsel %vm2632, %v2610, %v2850
        %2855 = vst [vmem:[%s589] sm:$0xff] %v2853
        %2856 = vst [vmem:[%s589 + $0x8] sm:$0xff] %v2854
        %s2857 = sand.u32 %s403, 1
        %s2858 = scalar_lea.sflag [#allocation3], %s2857
        %s2859 = sand.u32 %s403, 1
        %s2860 = smul.addr %s2859, 32
        %s2861 = scalar_lea.vmem [#allocation2], %s2860
        %s2862 = smul.u32 2, %s33
        %p2863 = scmp.lt.s32.totalorder %s2862, 3
        %s2864 = scalar_select %p2863, %s2862, 3
        %s2865 = smul.addr %s2864, 8
        %s2866 = scalar_lea.vmem %s18, %s2865
        // Predicated region
        $region89: #{dagmm_forward.1} parent=87 // pred_check
          %p2867 = pneg %p413
        $region90: #{dagmm_forward.1} parent=87 // pred_check_branch
          %2869 = sbr.rel (%p2867) target = $region92
        $region91: #{dagmm_forward.1} parent=87 // pred_region
          %s2870 = smul.u32 2, %s33
          %s2872 = ssub.s32 512, 512
          %2873 = vsyncadd %s2858, %s2872
          %s2874 = smul.addr %s2870, 128
          %s2875 = scalar_lea.hbm %s17, %s2874
          %s2876 = sshll.u32 %s2861, 4
          %s2877 = int_to_ptr.vmem [resolvable:$true] %s2876
          %2882 = dma.vmem_to_hbm [thread:$0]  %s2877, 512, %s2875, %s2858, 256, 512, 16
        $region92: #{dagmm_forward.1} parent=87 // pred_fallthru
          _
        // Predicated region
        $region93: #{dagmm_forward.1} parent=87 // pred_check
          %p2883 = pneg %p439
        $region94: #{dagmm_forward.1} parent=87 // pred_check_branch
          %2885 = sbr.rel (%p2883) target = $region96
        $region95: #{dagmm_forward.1} parent=87 // pred_region
          %s2886 = smul.u32 2, %s33
        $region96: #{dagmm_forward.1} parent=87 // pred_fallthru
          _
      $region88: #{dagmm_forward.1} parent=5 // pred_fallthru
        _
      %p2887 = scmp.le.s32.totalorder 2, %s28
      // Predicated region
      $region97: #{dagmm_forward.1} parent=5 // pred_check
        %p2888 = pneg %p2887
      $region98: #{dagmm_forward.1} parent=5 // pred_check_branch
        %2890 = sbr.rel (%p2888) target = $region100
      $region99: #{dagmm_forward.1} parent=5 // pred_region
        %s2891 = ssub.s32 %s28, 2
        // Predicated region
        $region101: #{dagmm_forward.1} parent=99 // pred_check
          %p2892 = pneg %p419
        $region102: #{dagmm_forward.1} parent=99 // pred_check_branch
          %2894 = sbr.rel (%p2892) target = $region104
        $region103: #{dagmm_forward.1} parent=99 // pred_region
          %s2895 = sand.u32 %s404, 1
          %s2896 = scalar_lea.sflag [#allocation3], %s2895
          %s2897 = sand.u32 %s404, 1
          %s2898 = smul.addr %s2897, 32
          %s2899 = scalar_lea.vmem [#allocation2], %s2898
          %2900 = dma.done %s2896, 512
        $region104: #{dagmm_forward.1} parent=99 // pred_fallthru
          _
        // Predicated region
        $region105: #{dagmm_forward.1} parent=99 // pred_check
          %p2901 = pneg %p445
        $region106: #{dagmm_forward.1} parent=99 // pred_check_branch
          %2903 = sbr.rel (%p2901) target = $region108
        $region107: #{dagmm_forward.1} parent=99 // pred_region
          %s2904 = smul.u32 2, %s34
          %p2905 = scmp.lt.s32.totalorder %s2904, 3
          %s2906 = scalar_select %p2905, %s2904, 3
          %s2907 = smul.addr %s2906, 8
          %s2908 = scalar_lea.vmem %s18, %s2907
        $region108: #{dagmm_forward.1} parent=99 // pred_fallthru
          _
      $region100: #{dagmm_forward.1} parent=5 // pred_fallthru
        _
    $region6: #{dagmm_forward.1} parent=1 // loop_footer
      %s32 = sadd.s32 1, %s28
    $region7: #{dagmm_forward.1} parent=1 // loop_footer_branch
      %27 = sbr.rel target = $region3
    $region8: #{dagmm_forward.1} parent=1 // loop_exit
      _
    %2909 = vsyncpa [#allocation3], 1
    %s2910 = scalar_lea.sflag [#allocation3], 1
    %2911 = vsyncpa %s2910, 1

</llo_original>
